<compile_context>
chip_gen: v7x
topology: tpu7x:2x2x1
jax: 0.10.0
libtpu: 0.0.40
codegen_flags: <defaults>
</compile_context>

<pallas_src>
import functools

import jax
import jax.numpy as jnp
from jax.experimental import pallas as pl
from jax.experimental.pallas import tpu as pltpu


# ---------------------------------------------------------------------------
# Fused kernel: GEMM + agreement routing for a tile of batch elements.
#
#   x_ref  : (rows, in_dim)        rows = TB * in_caps
#   a_ref  : (rows, 1)             per-input-capsule attention weights
#   w_ref  : (in_dim, ocd)         ocd = out_caps * out_dim
#   e_ref  : (ocd, out_caps)       E[k, j] = 1  iff  k // out_dim == j
#   et_ref : (out_caps, ocd)       E^T
#   p_ref  : (rows, TB)            P[r, b] = 1  iff  r // in_caps == b
#   pt_ref : (TB, rows)            P^T
#   o_ref  : (TB, ocd)             routed output capsules, flat
# ---------------------------------------------------------------------------
def _caps_fused_kernel(x_ref, a_ref, w_ref, e_ref, et_ref, p_ref, pt_ref,
                       o_ref, *, n_iterations):
    # alpha folded into the GEMM input: (alpha * x) @ W == alpha * (x @ W)
    xs = x_ref[...].astype(jnp.float32) * a_ref[...].astype(jnp.float32)
    u = jnp.dot(xs, w_ref[...].astype(jnp.float32),
                preferred_element_type=jnp.float32)          # (rows, ocd)

    e = e_ref[...]
    et = et_ref[...]
    p = p_ref[...]
    pt = pt_ref[...]

    rows = u.shape[0]
    out_caps = e.shape[1]

    def softmax_rows(logits):                                # (rows, out_caps)
        m = jnp.max(logits, axis=-1, keepdims=True)
        ex = jnp.exp(logits - m)
        inv = pl.reciprocal(jnp.sum(ex, axis=-1, keepdims=True), approx=True)
        return ex * inv

    def step(c):                                             # c: (rows, out_caps)
        # expand coupling coeffs to flat (rows, ocd) via MXU
        c_exp = jnp.dot(c, et, preferred_element_type=jnp.float32)
        # weighted sum over input capsules within each batch element (MXU)
        s = jnp.dot(pt, c_exp * u, preferred_element_type=jnp.float32)   # (TB, ocd)
        # squash: per-output-capsule squared norm via indicator matmul (MXU)
        n2 = jnp.dot(s * s, e, preferred_element_type=jnp.float32)       # (TB, out_caps)
        f = n2 * pl.reciprocal(1.0 + n2, approx=True) * jax.lax.rsqrt(n2 + 1e-9)
        return jnp.dot(f, et, preferred_element_type=jnp.float32) * s    # (TB, ocd)

    b = jnp.zeros((rows, out_caps), jnp.float32)
    v = step(softmax_rows(b))
    for _ in range(n_iterations):                            # static, short -> unrolled
        # broadcast v back to rows (MXU) and update agreement logits (MXU)
        v_rows = jnp.dot(p, v, preferred_element_type=jnp.float32)       # (rows, ocd)
        b = b + jnp.dot(u * v_rows, e, preferred_element_type=jnp.float32)
        v = step(softmax_rows(b))

    o_ref[...] = v.astype(o_ref.dtype)


# ---------------------------------------------------------------------------
# Wrapper == CapsLayer.forward
# ---------------------------------------------------------------------------
def caps_layer_forward(caps_output, alpha, weights, out_caps, out_dim,
                       n_iterations=3, batch_tile=None):
    B, in_caps, in_dim = caps_output.shape
    ocd = out_caps * out_dim

    # Batch tile: target M = TB * in_caps ~ 128 rows for the MXU, capped at B.
    if batch_tile is None:
        batch_tile = max(1, min(B, pl.cdiv(128, in_caps)))
    grid = pl.cdiv(B, batch_tile)
    b_pad = grid * batch_tile
    rows = batch_tile * in_caps

    # Flatten batch into the GEMM M dimension; pad to a whole number of tiles
    # (padded rows carry alpha = 0 -> contribute nothing, sliced off at the end).
    x2d = caps_output.reshape(B * in_caps, in_dim).astype(jnp.float32)
    a2d = alpha.reshape(B * in_caps, 1).astype(jnp.float32)
    if b_pad != B:
        pad_rows = (b_pad - B) * in_caps
        x2d = jnp.pad(x2d, ((0, pad_rows), (0, 0)))
        a2d = jnp.pad(a2d, ((0, pad_rows), (0, 0)))

    # Static 0/1 indicator matrices (exact sums when used as MXU contractions).
    e = jnp.repeat(jnp.eye(out_caps, dtype=jnp.float32), out_dim, axis=0)      # (ocd, out_caps)
    et = e.T                                                                   # (out_caps, ocd)
    p = jnp.repeat(jnp.eye(batch_tile, dtype=jnp.float32), in_caps, axis=0)    # (rows, TB)
    pt = p.T                                                                   # (TB, rows)

    v2d = pl.pallas_call(
        functools.partial(_caps_fused_kernel, n_iterations=n_iterations),
        out_shape=jax.ShapeDtypeStruct((b_pad, ocd), jnp.float32),
        grid=(grid,),
        in_specs=[
            pl.BlockSpec((rows, in_dim), lambda b: (b, 0)),
            pl.BlockSpec((rows, 1), lambda b: (b, 0)),
            pl.BlockSpec((in_dim, ocd), lambda b: (0, 0)),
            pl.BlockSpec((ocd, out_caps), lambda b: (0, 0)),
            pl.BlockSpec((out_caps, ocd), lambda b: (0, 0)),
            pl.BlockSpec((rows, batch_tile), lambda b: (0, 0)),
            pl.BlockSpec((batch_tile, rows), lambda b: (0, 0)),
        ],
        out_specs=pl.BlockSpec((batch_tile, ocd), lambda b: (b, 0)),
        compiler_params=pltpu.CompilerParams(dimension_semantics=("parallel",)),
    )(x2d, a2d, weights.astype(jnp.float32), e, et, p, pt)

    return v2d[:B].reshape(B, out_caps, out_dim)


# ---------------------------------------------------------------------------
# Pure-JAX reference (mirrors the previous kernel's semantics) for validation.
# ---------------------------------------------------------------------------
def caps_layer_reference(caps_output, alpha, weights, out_caps, out_dim,
                         n_iterations=3):
    B, in_caps, in_dim = caps_output.shape
    u = jnp.einsum("bid,dk->bik", caps_output, weights)
    u = u.reshape(B, in_caps, out_caps, out_dim) * alpha[:, :, None, None]

    def squash(s):
        n2 = jnp.sum(s * s, axis=-1, keepdims=True)
        return (n2 / (1.0 + n2)) * s * jax.lax.rsqrt(n2 + 1e-9)

    def step(b):
        c = jax.nn.softmax(b, axis=-1)
        s = jnp.sum(c[..., None] * u, axis=1)
        return squash(s)

    b = jnp.zeros((B, in_caps, out_caps), jnp.float32)
    v = step(b)
    for _ in range(n_iterations):
        b = b + jnp.sum(u * v[:, None, :, :], axis=-1)
        v = step(b)
    return v


if __name__ == "__main__":
    # Small shapes consistent with the module's forward; B chosen so the batch
    # tiling gives M = 128 GEMM rows and a grid of 2 (keeps both v7x TCs busy).
    B, in_caps, in_dim, out_caps, out_dim = 32, 8, 16, 4, 8

    key = jax.random.PRNGKey(0)
    k_x, k_a, k_w = jax.random.split(key, 3)

    caps_output = jax.random.normal(k_x, (B, in_caps, in_dim), jnp.float32)
    alpha = jax.nn.softmax(jax.random.normal(k_a, (B, in_caps), jnp.float32), axis=-1)

    # nn.Parameter(torch.randn(in_dim, out_caps*out_dim)) + xavier_uniform_
    fan_in, fan_out = in_dim, out_caps * out_dim
    bound = (6.0 / (fan_in + fan_out)) ** 0.5
    weights = jax.random.uniform(
        k_w, (in_dim, out_caps * out_dim), jnp.float32, -bound, bound
    )

    v = caps_layer_forward(caps_output, alpha, weights, out_caps, out_dim)
    v = jax.block_until_ready(v)
    assert v.shape == (B, out_caps, out_dim)
    assert bool(jnp.all(jnp.isfinite(v)))

    v_ref = caps_layer_reference(caps_output, alpha, weights, out_caps, out_dim)
    assert bool(jnp.allclose(v, v_ref, atol=3e-2, rtol=3e-2)), (
        "mismatch vs reference: max abs err = "
        f"{float(jnp.max(jnp.abs(v - v_ref)))}"
    )
    print("KERNEL_OK")
</pallas_src>

<mosaic_0001>
module attributes {stable_mosaic.version = 11 : i64} {
  func.func @_caps_fused_kernel(%arg0: i32, %arg1: memref<128x16xf32, #tpu.memory_space<vmem>>, %arg2: memref<128x1xf32, #tpu.memory_space<vmem>>, %arg3: memref<16x32xf32, #tpu.memory_space<vmem>>, %arg4: memref<32x4xf32, #tpu.memory_space<vmem>>, %arg5: memref<4x32xf32, #tpu.memory_space<vmem>>, %arg6: memref<128x16xf32, #tpu.memory_space<vmem>>, %arg7: memref<16x128xf32, #tpu.memory_space<vmem>>, %arg8: memref<16x32xf32, #tpu.memory_space<vmem>>) attributes {dimension_semantics = [#tpu.dimension_semantics<parallel>], iteration_bounds = array<i64: 2>, scalar_prefetch = 0 : i64, scratch_operands = 0 : i64, tpu.core_type = #tpu.core_type<tc>, window_params = [{transform_indices = @transform_0, window_bounds = array<i64: 128, 16>}, {transform_indices = @transform_1, window_bounds = array<i64: 128, 1>}, {pipeline_mode = #tpu.pipeline_mode<synchronous>, transform_indices = @transform_2, window_bounds = array<i64: 16, 32>}, {pipeline_mode = #tpu.pipeline_mode<synchronous>, transform_indices = @transform_3, window_bounds = array<i64: 32, 4>}, {pipeline_mode = #tpu.pipeline_mode<synchronous>, transform_indices = @transform_4, window_bounds = array<i64: 4, 32>}, {pipeline_mode = #tpu.pipeline_mode<synchronous>, transform_indices = @transform_5, window_bounds = array<i64: 128, 16>}, {pipeline_mode = #tpu.pipeline_mode<synchronous>, transform_indices = @transform_6, window_bounds = array<i64: 16, 128>}, {transform_indices = @transform_7, window_bounds = array<i64: 16, 32>}]} {
    %c0 = arith.constant 0 : index
    %c0_0 = arith.constant 0 : index
    %0 = vector.load %arg1[%c0, %c0_0] : memref<128x16xf32, #tpu.memory_space<vmem>>, vector<128x16xf32>
    %c0_1 = arith.constant 0 : index
    %c0_2 = arith.constant 0 : index
    %1 = vector.load %arg2[%c0_1, %c0_2] : memref<128x1xf32, #tpu.memory_space<vmem>>, vector<128x1xf32>
    %2 = vector.broadcast %1 : vector<128x1xf32> to vector<128x16xf32>
    %3 = arith.mulf %0, %2 : vector<128x16xf32>
    %c0_3 = arith.constant 0 : index
    %c0_4 = arith.constant 0 : index
    %4 = vector.load %arg3[%c0_3, %c0_4] : memref<16x32xf32, #tpu.memory_space<vmem>>, vector<16x32xf32>
    %cst = arith.constant dense<0.000000e+00> : vector<128x32xf32>
    %5 = tpu.matmul %3, %4, %cst {dimension_numbers = #tpu.dot_dimension_numbers<[1], [0], [0], [1], [0, 0, 1, 1], [], []>} : vector<128x16xf32>, vector<16x32xf32>, vector<128x32xf32> -> vector<128x32xf32>
    %c0_5 = arith.constant 0 : index
    %c0_6 = arith.constant 0 : index
    %6 = vector.load %arg4[%c0_5, %c0_6] : memref<32x4xf32, #tpu.memory_space<vmem>>, vector<32x4xf32>
    %c0_7 = arith.constant 0 : index
    %c0_8 = arith.constant 0 : index
    %7 = vector.load %arg5[%c0_7, %c0_8] : memref<4x32xf32, #tpu.memory_space<vmem>>, vector<4x32xf32>
    %c0_9 = arith.constant 0 : index
    %c0_10 = arith.constant 0 : index
    %8 = vector.load %arg6[%c0_9, %c0_10] : memref<128x16xf32, #tpu.memory_space<vmem>>, vector<128x16xf32>
    %c0_11 = arith.constant 0 : index
    %c0_12 = arith.constant 0 : index
    %9 = vector.load %arg7[%c0_11, %c0_12] : memref<16x128xf32, #tpu.memory_space<vmem>>, vector<16x128xf32>
    %cst_13 = arith.constant 0.000000e+00 : f32
    %10 = vector.broadcast %cst_13 : f32 to vector<128x4xf32>
    %cst_14 = arith.constant dense<0xFF800000> : vector<128xf32>
    %11 = vector.multi_reduction <maximumf>, %10, %cst_14 [1] : vector<128x4xf32> to vector<128xf32>
    %12 = vector.shape_cast %11 : vector<128xf32> to vector<128x1xf32>
    %13 = vector.broadcast %12 : vector<128x1xf32> to vector<128x4xf32>
    %14 = arith.subf %10, %13 : vector<128x4xf32>
    %15 = math.exp %14 : vector<128x4xf32>
    %cst_15 = arith.constant dense<0.000000e+00> : vector<128xf32>
    %16 = vector.multi_reduction <add>, %15, %cst_15 [1] : vector<128x4xf32> to vector<128xf32>
    %17 = vector.shape_cast %16 : vector<128xf32> to vector<128x1xf32>
    %18 = tpu.reciprocal %17 {approx = true} : vector<128x1xf32> -> vector<128x1xf32>
    %19 = vector.broadcast %18 : vector<128x1xf32> to vector<128x4xf32>
    %20 = arith.mulf %15, %19 : vector<128x4xf32>
    %cst_16 = arith.constant dense<0.000000e+00> : vector<128x32xf32>
    %21 = tpu.matmul %20, %7, %cst_16 {dimension_numbers = #tpu.dot_dimension_numbers<[1], [0], [0], [1], [0, 0, 1, 1], [], []>} : vector<128x4xf32>, vector<4x32xf32>, vector<128x32xf32> -> vector<128x32xf32>
    %22 = arith.mulf %21, %5 : vector<128x32xf32>
    %cst_17 = arith.constant dense<0.000000e+00> : vector<16x32xf32>
    %23 = tpu.matmul %9, %22, %cst_17 {dimension_numbers = #tpu.dot_dimension_numbers<[1], [0], [0], [1], [0, 0, 1, 1], [], []>} : vector<16x128xf32>, vector<128x32xf32>, vector<16x32xf32> -> vector<16x32xf32>
    %24 = arith.mulf %23, %23 : vector<16x32xf32>
    %cst_18 = arith.constant dense<0.000000e+00> : vector<16x4xf32>
    %25 = tpu.matmul %24, %6, %cst_18 {dimension_numbers = #tpu.dot_dimension_numbers<[1], [0], [0], [1], [0, 0, 1, 1], [], []>} : vector<16x32xf32>, vector<32x4xf32>, vector<16x4xf32> -> vector<16x4xf32>
    %cst_19 = arith.constant 1.000000e+00 : f32
    %26 = vector.broadcast %cst_19 : f32 to vector<16x4xf32>
    %27 = arith.addf %26, %25 : vector<16x4xf32>
    %28 = tpu.reciprocal %27 {approx = true} : vector<16x4xf32> -> vector<16x4xf32>
    %29 = arith.mulf %25, %28 : vector<16x4xf32>
    %cst_20 = arith.constant 9.99999971E-10 : f32
    %30 = vector.broadcast %cst_20 : f32 to vector<16x4xf32>
    %31 = arith.addf %25, %30 : vector<16x4xf32>
    %32 = math.rsqrt %31 : vector<16x4xf32>
    %33 = arith.mulf %29, %32 : vector<16x4xf32>
    %cst_21 = arith.constant dense<0.000000e+00> : vector<16x32xf32>
    %34 = tpu.matmul %33, %7, %cst_21 {dimension_numbers = #tpu.dot_dimension_numbers<[1], [0], [0], [1], [0, 0, 1, 1], [], []>} : vector<16x4xf32>, vector<4x32xf32>, vector<16x32xf32> -> vector<16x32xf32>
    %35 = arith.mulf %34, %23 : vector<16x32xf32>
    %cst_22 = arith.constant dense<0.000000e+00> : vector<128x32xf32>
    %36 = tpu.matmul %8, %35, %cst_22 {dimension_numbers = #tpu.dot_dimension_numbers<[1], [0], [0], [1], [0, 0, 1, 1], [], []>} : vector<128x16xf32>, vector<16x32xf32>, vector<128x32xf32> -> vector<128x32xf32>
    %37 = arith.mulf %5, %36 : vector<128x32xf32>
    %cst_23 = arith.constant dense<0.000000e+00> : vector<128x4xf32>
    %38 = tpu.matmul %37, %6, %cst_23 {dimension_numbers = #tpu.dot_dimension_numbers<[1], [0], [0], [1], [0, 0, 1, 1], [], []>} : vector<128x32xf32>, vector<32x4xf32>, vector<128x4xf32> -> vector<128x4xf32>
    %39 = arith.addf %10, %38 : vector<128x4xf32>
    %cst_24 = arith.constant dense<0xFF800000> : vector<128xf32>
    %40 = vector.multi_reduction <maximumf>, %39, %cst_24 [1] : vector<128x4xf32> to vector<128xf32>
    %41 = vector.shape_cast %40 : vector<128xf32> to vector<128x1xf32>
    %42 = vector.broadcast %41 : vector<128x1xf32> to vector<128x4xf32>
    %43 = arith.subf %39, %42 : vector<128x4xf32>
    %44 = math.exp %43 : vector<128x4xf32>
    %cst_25 = arith.constant dense<0.000000e+00> : vector<128xf32>
    %45 = vector.multi_reduction <add>, %44, %cst_25 [1] : vector<128x4xf32> to vector<128xf32>
    %46 = vector.shape_cast %45 : vector<128xf32> to vector<128x1xf32>
    %47 = tpu.reciprocal %46 {approx = true} : vector<128x1xf32> -> vector<128x1xf32>
    %48 = vector.broadcast %47 : vector<128x1xf32> to vector<128x4xf32>
    %49 = arith.mulf %44, %48 : vector<128x4xf32>
    %cst_26 = arith.constant dense<0.000000e+00> : vector<128x32xf32>
    %50 = tpu.matmul %49, %7, %cst_26 {dimension_numbers = #tpu.dot_dimension_numbers<[1], [0], [0], [1], [0, 0, 1, 1], [], []>} : vector<128x4xf32>, vector<4x32xf32>, vector<128x32xf32> -> vector<128x32xf32>
    %51 = arith.mulf %50, %5 : vector<128x32xf32>
    %cst_27 = arith.constant dense<0.000000e+00> : vector<16x32xf32>
    %52 = tpu.matmul %9, %51, %cst_27 {dimension_numbers = #tpu.dot_dimension_numbers<[1], [0], [0], [1], [0, 0, 1, 1], [], []>} : vector<16x128xf32>, vector<128x32xf32>, vector<16x32xf32> -> vector<16x32xf32>
    %53 = arith.mulf %52, %52 : vector<16x32xf32>
    %cst_28 = arith.constant dense<0.000000e+00> : vector<16x4xf32>
    %54 = tpu.matmul %53, %6, %cst_28 {dimension_numbers = #tpu.dot_dimension_numbers<[1], [0], [0], [1], [0, 0, 1, 1], [], []>} : vector<16x32xf32>, vector<32x4xf32>, vector<16x4xf32> -> vector<16x4xf32>
    %cst_29 = arith.constant 1.000000e+00 : f32
    %55 = vector.broadcast %cst_29 : f32 to vector<16x4xf32>
    %56 = arith.addf %55, %54 : vector<16x4xf32>
    %57 = tpu.reciprocal %56 {approx = true} : vector<16x4xf32> -> vector<16x4xf32>
    %58 = arith.mulf %54, %57 : vector<16x4xf32>
    %cst_30 = arith.constant 9.99999971E-10 : f32
    %59 = vector.broadcast %cst_30 : f32 to vector<16x4xf32>
    %60 = arith.addf %54, %59 : vector<16x4xf32>
    %61 = math.rsqrt %60 : vector<16x4xf32>
    %62 = arith.mulf %58, %61 : vector<16x4xf32>
    %cst_31 = arith.constant dense<0.000000e+00> : vector<16x32xf32>
    %63 = tpu.matmul %62, %7, %cst_31 {dimension_numbers = #tpu.dot_dimension_numbers<[1], [0], [0], [1], [0, 0, 1, 1], [], []>} : vector<16x4xf32>, vector<4x32xf32>, vector<16x32xf32> -> vector<16x32xf32>
    %64 = arith.mulf %63, %52 : vector<16x32xf32>
    %cst_32 = arith.constant dense<0.000000e+00> : vector<128x32xf32>
    %65 = tpu.matmul %8, %64, %cst_32 {dimension_numbers = #tpu.dot_dimension_numbers<[1], [0], [0], [1], [0, 0, 1, 1], [], []>} : vector<128x16xf32>, vector<16x32xf32>, vector<128x32xf32> -> vector<128x32xf32>
    %66 = arith.mulf %5, %65 : vector<128x32xf32>
    %cst_33 = arith.constant dense<0.000000e+00> : vector<128x4xf32>
    %67 = tpu.matmul %66, %6, %cst_33 {dimension_numbers = #tpu.dot_dimension_numbers<[1], [0], [0], [1], [0, 0, 1, 1], [], []>} : vector<128x32xf32>, vector<32x4xf32>, vector<128x4xf32> -> vector<128x4xf32>
    %68 = arith.addf %39, %67 : vector<128x4xf32>
    %cst_34 = arith.constant dense<0xFF800000> : vector<128xf32>
    %69 = vector.multi_reduction <maximumf>, %68, %cst_34 [1] : vector<128x4xf32> to vector<128xf32>
    %70 = vector.shape_cast %69 : vector<128xf32> to vector<128x1xf32>
    %71 = vector.broadcast %70 : vector<128x1xf32> to vector<128x4xf32>
    %72 = arith.subf %68, %71 : vector<128x4xf32>
    %73 = math.exp %72 : vector<128x4xf32>
    %cst_35 = arith.constant dense<0.000000e+00> : vector<128xf32>
    %74 = vector.multi_reduction <add>, %73, %cst_35 [1] : vector<128x4xf32> to vector<128xf32>
    %75 = vector.shape_cast %74 : vector<128xf32> to vector<128x1xf32>
    %76 = tpu.reciprocal %75 {approx = true} : vector<128x1xf32> -> vector<128x1xf32>
    %77 = vector.broadcast %76 : vector<128x1xf32> to vector<128x4xf32>
    %78 = arith.mulf %73, %77 : vector<128x4xf32>
    %cst_36 = arith.constant dense<0.000000e+00> : vector<128x32xf32>
    %79 = tpu.matmul %78, %7, %cst_36 {dimension_numbers = #tpu.dot_dimension_numbers<[1], [0], [0], [1], [0, 0, 1, 1], [], []>} : vector<128x4xf32>, vector<4x32xf32>, vector<128x32xf32> -> vector<128x32xf32>
    %80 = arith.mulf %79, %5 : vector<128x32xf32>
    %cst_37 = arith.constant dense<0.000000e+00> : vector<16x32xf32>
    %81 = tpu.matmul %9, %80, %cst_37 {dimension_numbers = #tpu.dot_dimension_numbers<[1], [0], [0], [1], [0, 0, 1, 1], [], []>} : vector<16x128xf32>, vector<128x32xf32>, vector<16x32xf32> -> vector<16x32xf32>
    %82 = arith.mulf %81, %81 : vector<16x32xf32>
    %cst_38 = arith.constant dense<0.000000e+00> : vector<16x4xf32>
    %83 = tpu.matmul %82, %6, %cst_38 {dimension_numbers = #tpu.dot_dimension_numbers<[1], [0], [0], [1], [0, 0, 1, 1], [], []>} : vector<16x32xf32>, vector<32x4xf32>, vector<16x4xf32> -> vector<16x4xf32>
    %cst_39 = arith.constant 1.000000e+00 : f32
    %84 = vector.broadcast %cst_39 : f32 to vector<16x4xf32>
    %85 = arith.addf %84, %83 : vector<16x4xf32>
    %86 = tpu.reciprocal %85 {approx = true} : vector<16x4xf32> -> vector<16x4xf32>
    %87 = arith.mulf %83, %86 : vector<16x4xf32>
    %cst_40 = arith.constant 9.99999971E-10 : f32
    %88 = vector.broadcast %cst_40 : f32 to vector<16x4xf32>
    %89 = arith.addf %83, %88 : vector<16x4xf32>
    %90 = math.rsqrt %89 : vector<16x4xf32>
    %91 = arith.mulf %87, %90 : vector<16x4xf32>
    %cst_41 = arith.constant dense<0.000000e+00> : vector<16x32xf32>
    %92 = tpu.matmul %91, %7, %cst_41 {dimension_numbers = #tpu.dot_dimension_numbers<[1], [0], [0], [1], [0, 0, 1, 1], [], []>} : vector<16x4xf32>, vector<4x32xf32>, vector<16x32xf32> -> vector<16x32xf32>
    %93 = arith.mulf %92, %81 : vector<16x32xf32>
    %cst_42 = arith.constant dense<0.000000e+00> : vector<128x32xf32>
    %94 = tpu.matmul %8, %93, %cst_42 {dimension_numbers = #tpu.dot_dimension_numbers<[1], [0], [0], [1], [0, 0, 1, 1], [], []>} : vector<128x16xf32>, vector<16x32xf32>, vector<128x32xf32> -> vector<128x32xf32>
    %95 = arith.mulf %5, %94 : vector<128x32xf32>
    %cst_43 = arith.constant dense<0.000000e+00> : vector<128x4xf32>
    %96 = tpu.matmul %95, %6, %cst_43 {dimension_numbers = #tpu.dot_dimension_numbers<[1], [0], [0], [1], [0, 0, 1, 1], [], []>} : vector<128x32xf32>, vector<32x4xf32>, vector<128x4xf32> -> vector<128x4xf32>
    %97 = arith.addf %68, %96 : vector<128x4xf32>
    %cst_44 = arith.constant dense<0xFF800000> : vector<128xf32>
    %98 = vector.multi_reduction <maximumf>, %97, %cst_44 [1] : vector<128x4xf32> to vector<128xf32>
    %99 = vector.shape_cast %98 : vector<128xf32> to vector<128x1xf32>
    %100 = vector.broadcast %99 : vector<128x1xf32> to vector<128x4xf32>
    %101 = arith.subf %97, %100 : vector<128x4xf32>
    %102 = math.exp %101 : vector<128x4xf32>
    %cst_45 = arith.constant dense<0.000000e+00> : vector<128xf32>
    %103 = vector.multi_reduction <add>, %102, %cst_45 [1] : vector<128x4xf32> to vector<128xf32>
    %104 = vector.shape_cast %103 : vector<128xf32> to vector<128x1xf32>
    %105 = tpu.reciprocal %104 {approx = true} : vector<128x1xf32> -> vector<128x1xf32>
    %106 = vector.broadcast %105 : vector<128x1xf32> to vector<128x4xf32>
    %107 = arith.mulf %102, %106 : vector<128x4xf32>
    %cst_46 = arith.constant dense<0.000000e+00> : vector<128x32xf32>
    %108 = tpu.matmul %107, %7, %cst_46 {dimension_numbers = #tpu.dot_dimension_numbers<[1], [0], [0], [1], [0, 0, 1, 1], [], []>} : vector<128x4xf32>, vector<4x32xf32>, vector<128x32xf32> -> vector<128x32xf32>
    %109 = arith.mulf %108, %5 : vector<128x32xf32>
    %cst_47 = arith.constant dense<0.000000e+00> : vector<16x32xf32>
    %110 = tpu.matmul %9, %109, %cst_47 {dimension_numbers = #tpu.dot_dimension_numbers<[1], [0], [0], [1], [0, 0, 1, 1], [], []>} : vector<16x128xf32>, vector<128x32xf32>, vector<16x32xf32> -> vector<16x32xf32>
    %111 = arith.mulf %110, %110 : vector<16x32xf32>
    %cst_48 = arith.constant dense<0.000000e+00> : vector<16x4xf32>
    %112 = tpu.matmul %111, %6, %cst_48 {dimension_numbers = #tpu.dot_dimension_numbers<[1], [0], [0], [1], [0, 0, 1, 1], [], []>} : vector<16x32xf32>, vector<32x4xf32>, vector<16x4xf32> -> vector<16x4xf32>
    %cst_49 = arith.constant 1.000000e+00 : f32
    %113 = vector.broadcast %cst_49 : f32 to vector<16x4xf32>
    %114 = arith.addf %113, %112 : vector<16x4xf32>
    %115 = tpu.reciprocal %114 {approx = true} : vector<16x4xf32> -> vector<16x4xf32>
    %116 = arith.mulf %112, %115 : vector<16x4xf32>
    %cst_50 = arith.constant 9.99999971E-10 : f32
    %117 = vector.broadcast %cst_50 : f32 to vector<16x4xf32>
    %118 = arith.addf %112, %117 : vector<16x4xf32>
    %119 = math.rsqrt %118 : vector<16x4xf32>
    %120 = arith.mulf %116, %119 : vector<16x4xf32>
    %cst_51 = arith.constant dense<0.000000e+00> : vector<16x32xf32>
    %121 = tpu.matmul %120, %7, %cst_51 {dimension_numbers = #tpu.dot_dimension_numbers<[1], [0], [0], [1], [0, 0, 1, 1], [], []>} : vector<16x4xf32>, vector<4x32xf32>, vector<16x32xf32> -> vector<16x32xf32>
    %122 = arith.mulf %121, %110 : vector<16x32xf32>
    %c0_52 = arith.constant 0 : index
    %c0_53 = arith.constant 0 : index
    %123 = vector.load %arg8[%c0_52, %c0_53] : memref<16x32xf32, #tpu.memory_space<vmem>>, vector<16x32xf32>
    tpu.vector_store %arg8[%c0_52, %c0_53], %122 {strides = array<i32>} : memref<16x32xf32, #tpu.memory_space<vmem>>, vector<16x32xf32>,
    return
  }
  func.func @transform_0(%arg0: i32) -> (i32, i32) {
    %c0_i32 = arith.constant 0 : i32
    %c0_i32_0 = arith.constant 0 : i32
    return %arg0, %c0_i32 : i32, i32
  }
  func.func @transform_1(%arg0: i32) -> (i32, i32) {
    %c0_i32 = arith.constant 0 : i32
    %c0_i32_0 = arith.constant 0 : i32
    return %arg0, %c0_i32 : i32, i32
  }
  func.func @transform_2(%arg0: i32) -> (i32, i32) {
    %c0_i32 = arith.constant 0 : i32
    %c0_i32_0 = arith.constant 0 : i32
    %c0_i32_1 = arith.constant 0 : i32
    return %c0_i32, %c0_i32_0 : i32, i32
  }
  func.func @transform_3(%arg0: i32) -> (i32, i32) {
    %c0_i32 = arith.constant 0 : i32
    %c0_i32_0 = arith.constant 0 : i32
    %c0_i32_1 = arith.constant 0 : i32
    return %c0_i32, %c0_i32_0 : i32, i32
  }
  func.func @transform_4(%arg0: i32) -> (i32, i32) {
    %c0_i32 = arith.constant 0 : i32
    %c0_i32_0 = arith.constant 0 : i32
    %c0_i32_1 = arith.constant 0 : i32
    return %c0_i32, %c0_i32_0 : i32, i32
  }
  func.func @transform_5(%arg0: i32) -> (i32, i32) {
    %c0_i32 = arith.constant 0 : i32
    %c0_i32_0 = arith.constant 0 : i32
    %c0_i32_1 = arith.constant 0 : i32
    return %c0_i32, %c0_i32_0 : i32, i32
  }
  func.func @transform_6(%arg0: i32) -> (i32, i32) {
    %c0_i32 = arith.constant 0 : i32
    %c0_i32_0 = arith.constant 0 : i32
    %c0_i32_1 = arith.constant 0 : i32
    return %c0_i32, %c0_i32_0 : i32, i32
  }
  func.func @transform_7(%arg0: i32) -> (i32, i32) {
    %c0_i32 = arith.constant 0 : i32
    %c0_i32_0 = arith.constant 0 : i32
    return %arg0, %c0_i32 : i32, i32
  }
}

</mosaic_0001>

<llo_original>
// kernel: tpu_custom_call.1
$region0: #{tpu_custom_call.1}
  #allocation0 [shape = 'u32[]', space=smem, size = 0x4, offset = 0x4, fixed_abs, tag = 'smem constant byte address 0x4 - core index']
  #allocation1 [shape = 'u32[144,128]{1,0:T(1,128)}', space=vmem, size = 0x12000, scoped, tag = 'internal scratch']
  %s0 = inlined_call_operand.vmem [shape: f32[256,16], index: 0, kind: input, shape index: {}]
  %s1 = inlined_call_operand.vmem [shape: f32[256,1], index: 1, kind: input, shape index: {}]
  %s2 = inlined_call_operand.vmem [shape: f32[16,32], index: 2, kind: input, shape index: {}]
  %s3 = inlined_call_operand.vmem [shape: f32[32,4], index: 3, kind: input, shape index: {}]
  %s4 = inlined_call_operand.vmem [shape: f32[4,32], index: 4, kind: input, shape index: {}]
  %s5 = inlined_call_operand.vmem [shape: f32[128,16], index: 5, kind: input, shape index: {}]
  %s6 = inlined_call_operand.vmem [shape: f32[16,128], index: 6, kind: input, shape index: {}]
  %s7 = inlined_call_operand.hbm [shape: f32[32,32], index: 7, kind: output, shape index: {}]
  %s8 = sld [smem:[#allocation0]]
  $region61: #{tpu_custom_call.1} parent=0
    _
  %s10 = ssub.s32 1, %s8
  %s11 = scalar_select 0, %s10, %s8
  $region1: #{tpu_custom_call.1} parent=0
    #allocation2 [shape = 'u8[16384]{0}', space=vmem, size = 0x4000, scoped, tag = 'output window, operand 0']
    #allocation3 [shape = 's32[2]{0}', space=sflag, size = 0x8, scoped, tag = 'scoped memory for tpu_custom_call.1']
    %12 = vsyncpa [#allocation3], 0
    %s13 = scalar_lea.sflag [#allocation3], 1
    %14 = vsyncpa %s13, 0
    loop: start=0, step=1, limit=4
    $region2: #{tpu_custom_call.1} parent=1 // loop_pre_header
      _
    $region3: #{tpu_custom_call.1} parent=1 // loop_header
      %s16 = sphi 0, %s20
      %p17 = scmp.ge.s32.totalorder %s16, 4
      %s26 = sphi 0, %s28
      %s29 = sphi 0, %s26
      %s30 = sphi 0, %s29
      %s46 = sphi 0, %s30
      %s52 = sphi 0, %s54
      %s55 = sphi 0, %s52
      %s56 = sphi 0, %s55
      %s72 = sphi 0, %s56
      %s76 = sphi 0, %s76
      %s78 = sphi 0, %s76
      %s79 = sphi 0, %s78
      %s93 = sphi 0, %s79
      %s97 = sphi 0, %s97
      %s99 = sphi 0, %s97
      %s100 = sphi 0, %s99
      %s114 = sphi 0, %s100
      %s118 = sphi 0, %s118
      %s120 = sphi 0, %s118
      %s121 = sphi 0, %s120
      %s135 = sphi 0, %s121
      %s139 = sphi 0, %s139
      %s141 = sphi 0, %s139
      %s142 = sphi 0, %s141
      %s156 = sphi 0, %s142
      %s160 = sphi 0, %s160
      %s162 = sphi 0, %s160
      %s163 = sphi 0, %s162
      %s177 = sphi 0, %s163
      %s183 = sphi 0, %s185
      %s186 = sphi 0, %s183
      %s187 = sphi 0, %s186
      %s203 = sphi 0, %s187
    $region4: #{tpu_custom_call.1} parent=1 // loop_header_branch
      %19 = sbr.rel (%p17) target = $region8
    $region5: #{tpu_custom_call.1} parent=1 // loop_body
      %s21 = ssub.s32 %s16, 1
      %s22 = ssub.s32 %s16, 2
      %s23 = sadd.s32 %s16, 1
      %s24 = ssub.s32 %s16, %s23
      %p25 = scmp.eq.s32.totalorder %s24, 0
      %s27 = sadd.s32 %s26, 1
      %s28 = scalar_select %p25, %s26, %s27
      %p31 = pneg %p25
      %p32 = scmp.eq.s32.totalorder %s16, 1
      %p33 = por %p31, %p32
      %p34 = scmp.ne.s32.totalorder %s26, %s29
      %p35 = scmp.eq.s32.totalorder %s16, 0
      %p36 = por %p34, %p35
      %p37 = scmp.ne.s32.totalorder %s26, %s29
      %p38 = scmp.eq.s32.totalorder %s21, 1
      %p39 = por %p37, %p38
      %p40 = scmp.ne.s32.totalorder %s29, %s30
      %p41 = scmp.eq.s32.totalorder %s21, 0
      %p42 = por %p40, %p41
      %p43 = scmp.ne.s32.totalorder %s29, %s30
      %p44 = scmp.eq.s32.totalorder %s22, 1
      %p45 = por %p43, %p44
      %p47 = scmp.ne.s32.totalorder %s30, %s46
      %p48 = scmp.eq.s32.totalorder %s22, 0
      %p49 = por %p47, %p48
      %s50 = ssub.s32 %s16, %s23
      %p51 = scmp.eq.s32.totalorder %s50, 0
      %s53 = sadd.s32 %s52, 1
      %s54 = scalar_select %p51, %s52, %s53
      %p57 = pneg %p51
      %p58 = scmp.eq.s32.totalorder %s16, 1
      %p59 = por %p57, %p58
      %p60 = scmp.ne.s32.totalorder %s52, %s55
      %p61 = scmp.eq.s32.totalorder %s16, 0
      %p62 = por %p60, %p61
      %p63 = scmp.ne.s32.totalorder %s52, %s55
      %p64 = scmp.eq.s32.totalorder %s21, 1
      %p65 = por %p63, %p64
      %p66 = scmp.ne.s32.totalorder %s55, %s56
      %p67 = scmp.eq.s32.totalorder %s21, 0
      %p68 = por %p66, %p67
      %p69 = scmp.ne.s32.totalorder %s55, %s56
      %p70 = scmp.eq.s32.totalorder %s22, 1
      %p71 = por %p69, %p70
      %p73 = scmp.ne.s32.totalorder %s56, %s72
      %p74 = scmp.eq.s32.totalorder %s22, 0
      %p75 = por %p73, %p74
      %s77 = sadd.s32 %s76, 1
      %p80 = scmp.eq.s32.totalorder %s16, 1
      %p81 = scmp.ne.s32.totalorder %s76, %s78
      %p82 = scmp.eq.s32.totalorder %s16, 0
      %p83 = por %p81, %p82
      %p84 = scmp.ne.s32.totalorder %s76, %s78
      %p85 = scmp.eq.s32.totalorder %s21, 1
      %p86 = por %p84, %p85
      %p87 = scmp.ne.s32.totalorder %s78, %s79
      %p88 = scmp.eq.s32.totalorder %s21, 0
      %p89 = por %p87, %p88
      %p90 = scmp.ne.s32.totalorder %s78, %s79
      %p91 = scmp.eq.s32.totalorder %s22, 1
      %p92 = por %p90, %p91
      %p94 = scmp.ne.s32.totalorder %s79, %s93
      %p95 = scmp.eq.s32.totalorder %s22, 0
      %p96 = por %p94, %p95
      %s98 = sadd.s32 %s97, 1
      %p101 = scmp.eq.s32.totalorder %s16, 1
      %p102 = scmp.ne.s32.totalorder %s97, %s99
      %p103 = scmp.eq.s32.totalorder %s16, 0
      %p104 = por %p102, %p103
      %p105 = scmp.ne.s32.totalorder %s97, %s99
      %p106 = scmp.eq.s32.totalorder %s21, 1
      %p107 = por %p105, %p106
      %p108 = scmp.ne.s32.totalorder %s99, %s100
      %p109 = scmp.eq.s32.totalorder %s21, 0
      %p110 = por %p108, %p109
      %p111 = scmp.ne.s32.totalorder %s99, %s100
      %p112 = scmp.eq.s32.totalorder %s22, 1
      %p113 = por %p111, %p112
      %p115 = scmp.ne.s32.totalorder %s100, %s114
      %p116 = scmp.eq.s32.totalorder %s22, 0
      %p117 = por %p115, %p116
      %s119 = sadd.s32 %s118, 1
      %p122 = scmp.eq.s32.totalorder %s16, 1
      %p123 = scmp.ne.s32.totalorder %s118, %s120
      %p124 = scmp.eq.s32.totalorder %s16, 0
      %p125 = por %p123, %p124
      %p126 = scmp.ne.s32.totalorder %s118, %s120
      %p127 = scmp.eq.s32.totalorder %s21, 1
      %p128 = por %p126, %p127
      %p129 = scmp.ne.s32.totalorder %s120, %s121
      %p130 = scmp.eq.s32.totalorder %s21, 0
      %p131 = por %p129, %p130
      %p132 = scmp.ne.s32.totalorder %s120, %s121
      %p133 = scmp.eq.s32.totalorder %s22, 1
      %p134 = por %p132, %p133
      %p136 = scmp.ne.s32.totalorder %s121, %s135
      %p137 = scmp.eq.s32.totalorder %s22, 0
      %p138 = por %p136, %p137
      %s140 = sadd.s32 %s139, 1
      %p143 = scmp.eq.s32.totalorder %s16, 1
      %p144 = scmp.ne.s32.totalorder %s139, %s141
      %p145 = scmp.eq.s32.totalorder %s16, 0
      %p146 = por %p144, %p145
      %p147 = scmp.ne.s32.totalorder %s139, %s141
      %p148 = scmp.eq.s32.totalorder %s21, 1
      %p149 = por %p147, %p148
      %p150 = scmp.ne.s32.totalorder %s141, %s142
      %p151 = scmp.eq.s32.totalorder %s21, 0
      %p152 = por %p150, %p151
      %p153 = scmp.ne.s32.totalorder %s141, %s142
      %p154 = scmp.eq.s32.totalorder %s22, 1
      %p155 = por %p153, %p154
      %p157 = scmp.ne.s32.totalorder %s142, %s156
      %p158 = scmp.eq.s32.totalorder %s22, 0
      %p159 = por %p157, %p158
      %s161 = sadd.s32 %s160, 1
      %p164 = scmp.eq.s32.totalorder %s16, 1
      %p165 = scmp.ne.s32.totalorder %s160, %s162
      %p166 = scmp.eq.s32.totalorder %s16, 0
      %p167 = por %p165, %p166
      %p168 = scmp.ne.s32.totalorder %s160, %s162
      %p169 = scmp.eq.s32.totalorder %s21, 1
      %p170 = por %p168, %p169
      %p171 = scmp.ne.s32.totalorder %s162, %s163
      %p172 = scmp.eq.s32.totalorder %s21, 0
      %p173 = por %p171, %p172
      %p174 = scmp.ne.s32.totalorder %s162, %s163
      %p175 = scmp.eq.s32.totalorder %s22, 1
      %p176 = por %p174, %p175
      %p178 = scmp.ne.s32.totalorder %s163, %s177
      %p179 = scmp.eq.s32.totalorder %s22, 0
      %p180 = por %p178, %p179
      %s181 = ssub.s32 %s16, %s23
      %p182 = scmp.eq.s32.totalorder %s181, 0
      %s184 = sadd.s32 %s183, 1
      %s185 = scalar_select %p182, %s183, %s184
      %p188 = pneg %p182
      %p189 = scmp.eq.s32.totalorder %s16, 1
      %p190 = por %p188, %p189
      %p191 = scmp.ne.s32.totalorder %s183, %s186
      %p192 = scmp.eq.s32.totalorder %s16, 0
      %p193 = por %p191, %p192
      %p194 = scmp.ne.s32.totalorder %s183, %s186
      %p195 = scmp.eq.s32.totalorder %s21, 1
      %p196 = por %p194, %p195
      %p197 = scmp.ne.s32.totalorder %s186, %s187
      %p198 = scmp.eq.s32.totalorder %s21, 0
      %p199 = por %p197, %p198
      %p200 = scmp.ne.s32.totalorder %s186, %s187
      %p201 = scmp.eq.s32.totalorder %s22, 1
      %p202 = por %p200, %p201
      %p204 = scmp.ne.s32.totalorder %s187, %s203
      %p205 = scmp.eq.s32.totalorder %s22, 0
      %p206 = por %p204, %p205
      %p207 = scmp.le.s32.totalorder 1, %s16
      %p208 = scmp.lt.s32.totalorder %s16, 3
      %p209 = pnand %p207, %p208
      %p210 = pneg %p209
      // Predicated region
      $region9: #{tpu_custom_call.1} parent=5 // pred_check
        _
      $region10: #{tpu_custom_call.1} parent=5 // pred_check_branch
        %212 = sbr.rel (%p209) target = $region12
      $region11: #{tpu_custom_call.1} parent=5 // pred_region
        %s213 = ssub.s32 %s16, 1
        // Predicated region
        $region13: #{tpu_custom_call.1} parent=11 // pred_check
          %p214 = pneg %p89
        $region14: #{tpu_custom_call.1} parent=11 // pred_check_branch
          %216 = sbr.rel (%p214) target = $region16
        $region15: #{tpu_custom_call.1} parent=11 // pred_region
          _
        $region16: #{tpu_custom_call.1} parent=11 // pred_fallthru
          _
        // Predicated region
        $region17: #{tpu_custom_call.1} parent=11 // pred_check
          %p217 = pneg %p110
        $region18: #{tpu_custom_call.1} parent=11 // pred_check_branch
          %219 = sbr.rel (%p217) target = $region20
        $region19: #{tpu_custom_call.1} parent=11 // pred_region
          _
        $region20: #{tpu_custom_call.1} parent=11 // pred_fallthru
          _
        // Predicated region
        $region21: #{tpu_custom_call.1} parent=11 // pred_check
          %p220 = pneg %p131
        $region22: #{tpu_custom_call.1} parent=11 // pred_check_branch
          %222 = sbr.rel (%p220) target = $region24
        $region23: #{tpu_custom_call.1} parent=11 // pred_region
          _
        $region24: #{tpu_custom_call.1} parent=11 // pred_fallthru
          _
        // Predicated region
        $region25: #{tpu_custom_call.1} parent=11 // pred_check
          %p223 = pneg %p152
        $region26: #{tpu_custom_call.1} parent=11 // pred_check_branch
          %225 = sbr.rel (%p223) target = $region28
        $region27: #{tpu_custom_call.1} parent=11 // pred_region
          _
        $region28: #{tpu_custom_call.1} parent=11 // pred_fallthru
          _
        // Predicated region
        $region29: #{tpu_custom_call.1} parent=11 // pred_check
          %p226 = pneg %p173
        $region30: #{tpu_custom_call.1} parent=11 // pred_check_branch
          %228 = sbr.rel (%p226) target = $region32
        $region31: #{tpu_custom_call.1} parent=11 // pred_region
          _
        $region32: #{tpu_custom_call.1} parent=11 // pred_fallthru
          _
      $region12: #{tpu_custom_call.1} parent=5 // pred_fallthru
        _
      %p229 = scmp.lt.s32.totalorder %s16, 2
      // Predicated region
      $region33: #{tpu_custom_call.1} parent=5 // pred_check
        %p230 = pneg %p229
      $region34: #{tpu_custom_call.1} parent=5 // pred_check_branch
        %232 = sbr.rel (%p230) target = $region36
      $region35: #{tpu_custom_call.1} parent=5 // pred_region
        // Predicated region
        $region37: #{tpu_custom_call.1} parent=35 // pred_check
          %p233 = pneg %p36
        $region38: #{tpu_custom_call.1} parent=35 // pred_check_branch
          %235 = sbr.rel (%p233) target = $region40
        $region39: #{tpu_custom_call.1} parent=35 // pred_region
          %s236 = smul.u32 16, %s16
          %p237 = scmp.lt.s32.totalorder %s236, 31
          %s238 = scalar_select %p237, %s236, 31
          %s239 = smul.addr %s238, 8
          %s240 = scalar_lea.vmem %s0, %s239
          %s241 = smul.u32 16, %s16
        $region40: #{tpu_custom_call.1} parent=35 // pred_fallthru
          _
        // Predicated region
        $region41: #{tpu_custom_call.1} parent=35 // pred_check
          %p242 = pneg %p62
        $region42: #{tpu_custom_call.1} parent=35 // pred_check_branch
          %244 = sbr.rel (%p242) target = $region44
        $region43: #{tpu_custom_call.1} parent=35 // pred_region
          %s245 = smul.u32 16, %s16
          %p246 = scmp.lt.s32.totalorder %s245, 31
          %s247 = scalar_select %p246, %s245, 31
          %s248 = smul.addr %s247, 8
          %s249 = scalar_lea.vmem %s1, %s248
          %s250 = smul.u32 16, %s16
        $region44: #{tpu_custom_call.1} parent=35 // pred_fallthru
          _
      $region36: #{tpu_custom_call.1} parent=5 // pred_fallthru
        _
      %p251 = scmp.le.s32.totalorder 1, %s16
      %p252 = scmp.lt.s32.totalorder %s16, 3
      %p253 = pnand %p251, %p252
      %p254 = pneg %p253
      // Predicated region
      $region45: #{tpu_custom_call.1} parent=5 // pred_check
        _
      $region46: #{tpu_custom_call.1} parent=5 // pred_check_branch
        %256 = sbr.rel (%p253) target = $region48
      $region47: #{tpu_custom_call.1} parent=5 // pred_region
        %s257 = ssub.s32 %s16, 1
        %s258 = smul.u32 16, %s21
        %p259 = scmp.lt.s32.totalorder %s258, 31
        %s260 = scalar_select %p259, %s258, 31
        %s261 = smul.addr %s260, 8
        %s262 = scalar_lea.vmem %s0, %s261
        %p263 = pneg %p42
        %p264 = pneg %p39
        %s265 = smul.u32 16, %s21
        %p266 = scmp.lt.s32.totalorder %s265, 31
        %s267 = scalar_select %p266, %s265, 31
        %s268 = smul.addr %s267, 8
        %s269 = scalar_lea.vmem %s1, %s268
        %p270 = pneg %p68
        %p271 = pneg %p65
        %p272 = pneg %p89
        %p273 = pneg %p86
        %p274 = pneg %p110
        %p275 = pneg %p107
        %p276 = pneg %p131
        %p277 = pneg %p128
        %p278 = pneg %p152
        %p279 = pneg %p149
        %p280 = pneg %p173
        %p281 = pneg %p170
        %p282 = pneg %p199
        %p283 = pneg %p196
        %s284 = sand.u32 %s186, 1
        %s285 = scalar_lea.sflag [#allocation3], %s284
        %s286 = sand.u32 %s186, 1
        %s287 = smul.addr %s286, 16
        %s288 = scalar_lea.vmem [#allocation2], %s287
        %s289 = smul.u32 16, %s21
        %p290 = scmp.lt.s32.totalorder %s289, 31
        %s291 = scalar_select %p290, %s289, 31
        %s292 = smul.addr %s291, 8
        %s293 = scalar_lea.vmem %s0, %s292
        %s294 = smul.u32 16, %s21
        %s295 = smul.u32 16, %s21
        %p296 = scmp.lt.s32.totalorder %s295, 31
        %s297 = scalar_select %p296, %s295, 31
        %s298 = smul.addr %s297, 8
        %s299 = scalar_lea.vmem %s1, %s298
        %s300 = smul.u32 16, %s21
        %s301 = smul.u32 2, %s21
        %v302 = vld [vmem:[%s293] sm:$0xff]
        %v303 = vld [vmem:[%s293 + $0x8] sm:$0xff]
        %v304 = vld [vmem:[%s293 + $0x10] sm:$0xff]
        %v305 = vld [vmem:[%s293 + $0x18] sm:$0xff]
        %v306 = vld [vmem:[%s293 + $0x20] sm:$0xff]
        %v307 = vld [vmem:[%s293 + $0x28] sm:$0xff]
        %v308 = vld [vmem:[%s293 + $0x30] sm:$0xff]
        %v309 = vld [vmem:[%s293 + $0x38] sm:$0xff]
        %v310 = vld [vmem:[%s293 + $0x40] sm:$0xff]
        %v311 = vld [vmem:[%s293 + $0x48] sm:$0xff]
        %v312 = vld [vmem:[%s293 + $0x50] sm:$0xff]
        %v313 = vld [vmem:[%s293 + $0x58] sm:$0xff]
        %v314 = vld [vmem:[%s293 + $0x60] sm:$0xff]
        %v315 = vld [vmem:[%s293 + $0x68] sm:$0xff]
        %v316 = vld [vmem:[%s293 + $0x70] sm:$0xff]
        %v317 = vld [vmem:[%s293 + $0x78] sm:$0xff]
        %v318 = vld [vmem:[%s299] sm:$0xff]
        %v319 = vld [vmem:[%s299 + $0x8] sm:$0xff]
        %v320 = vld [vmem:[%s299 + $0x10] sm:$0xff]
        %v321 = vld [vmem:[%s299 + $0x18] sm:$0xff]
        %v322 = vld [vmem:[%s299 + $0x20] sm:$0xff]
        %v323 = vld [vmem:[%s299 + $0x28] sm:$0xff]
        %v324 = vld [vmem:[%s299 + $0x30] sm:$0xff]
        %v325 = vld [vmem:[%s299 + $0x38] sm:$0xff]
        %v326 = vld [vmem:[%s299 + $0x40] sm:$0xff]
        %v327 = vld [vmem:[%s299 + $0x48] sm:$0xff]
        %v328 = vld [vmem:[%s299 + $0x50] sm:$0xff]
        %v329 = vld [vmem:[%s299 + $0x58] sm:$0xff]
        %v330 = vld [vmem:[%s299 + $0x60] sm:$0xff]
        %v331 = vld [vmem:[%s299 + $0x68] sm:$0xff]
        %v332 = vld [vmem:[%s299 + $0x70] sm:$0xff]
        %v333 = vld [vmem:[%s299 + $0x78] sm:$0xff]
        %335 = vset.pattern.permute.xlu0 0
        %336 = vperm.xlu0 %335, %v318
        %v337 = vpop.permute.xlu0 %336
        %340 = vset.pattern.permute.xlu0 0
        %341 = vperm.xlu0 %340, %v319
        %v342 = vpop.permute.xlu0 %341
        %345 = vset.pattern.permute.xlu0 0
        %346 = vperm.xlu0 %345, %v320
        %v347 = vpop.permute.xlu0 %346
        %350 = vset.pattern.permute.xlu0 0
        %351 = vperm.xlu0 %350, %v321
        %v352 = vpop.permute.xlu0 %351
        %355 = vset.pattern.permute.xlu0 0
        %356 = vperm.xlu0 %355, %v322
        %v357 = vpop.permute.xlu0 %356
        %360 = vset.pattern.permute.xlu0 0
        %361 = vperm.xlu0 %360, %v323
        %v362 = vpop.permute.xlu0 %361
        %365 = vset.pattern.permute.xlu0 0
        %366 = vperm.xlu0 %365, %v324
        %v367 = vpop.permute.xlu0 %366
        %370 = vset.pattern.permute.xlu0 0
        %371 = vperm.xlu0 %370, %v325
        %v372 = vpop.permute.xlu0 %371
        %375 = vset.pattern.permute.xlu0 0
        %376 = vperm.xlu0 %375, %v326
        %v377 = vpop.permute.xlu0 %376
        %380 = vset.pattern.permute.xlu0 0
        %381 = vperm.xlu0 %380, %v327
        %v382 = vpop.permute.xlu0 %381
        %385 = vset.pattern.permute.xlu0 0
        %386 = vperm.xlu0 %385, %v328
        %v387 = vpop.permute.xlu0 %386
        %390 = vset.pattern.permute.xlu0 0
        %391 = vperm.xlu0 %390, %v329
        %v392 = vpop.permute.xlu0 %391
        %395 = vset.pattern.permute.xlu0 0
        %396 = vperm.xlu0 %395, %v330
        %v397 = vpop.permute.xlu0 %396
        %400 = vset.pattern.permute.xlu0 0
        %401 = vperm.xlu0 %400, %v331
        %v402 = vpop.permute.xlu0 %401
        %405 = vset.pattern.permute.xlu0 0
        %406 = vperm.xlu0 %405, %v332
        %v407 = vpop.permute.xlu0 %406
        %410 = vset.pattern.permute.xlu0 0
        %411 = vperm.xlu0 %410, %v333
        %v412 = vpop.permute.xlu0 %411
        %v414 = vmul.f32 %v302, %v337
        %v415 = vmul.f32 %v303, %v342
        %v416 = vmul.f32 %v304, %v347
        %v417 = vmul.f32 %v305, %v352
        %v418 = vmul.f32 %v306, %v357
        %v419 = vmul.f32 %v307, %v362
        %v420 = vmul.f32 %v308, %v367
        %v421 = vmul.f32 %v309, %v372
        %v422 = vmul.f32 %v310, %v377
        %v423 = vmul.f32 %v311, %v382
        %v424 = vmul.f32 %v312, %v387
        %v425 = vmul.f32 %v313, %v392
        %v426 = vmul.f32 %v314, %v397
        %v427 = vmul.f32 %v315, %v402
        %v428 = vmul.f32 %v316, %v407
        %v429 = vmul.f32 %v317, %v412
        %v430 = vld [vmem:[%s2] sm:$0xff]
        %v431 = vld [vmem:[%s2 + $0x8] sm:$0xff]
        %vm432 = vcmask 130048
        %v434 = vsel %vm432, %v414, 0
        %v437 = vsel %vm432, %v415, 0
        %v440 = vsel %vm432, %v416, 0
        %v443 = vsel %vm432, %v417, 0
        %v446 = vsel %vm432, %v418, 0
        %v449 = vsel %vm432, %v419, 0
        %v452 = vsel %vm432, %v420, 0
        %v455 = vsel %vm432, %v421, 0
        %v458 = vsel %vm432, %v422, 0
        %v461 = vsel %vm432, %v423, 0
        %v464 = vsel %vm432, %v424, 0
        %v467 = vsel %vm432, %v425, 0
        %v470 = vsel %vm432, %v426, 0
        %v473 = vsel %vm432, %v427, 0
        %v476 = vsel %vm432, %v428, 0
        %v479 = vsel %vm432, %v429, 0
        %481 = vmatprep.subr.mxu0 0.0
        %482 = vmatpush1.msra.mxu0 %v430
        %483 = vmatprep.subr.mxu0 0.0
        %484 = vmatpush1.msra.mxu0 %v431
        %485 = vmatprep.subr.mxu0 0.0
        %486 = vmatpush1.msra.mxu0 0.0
        %487 = vmatprep.subr.mxu0 0.0
        %488 = vmatpush1.msra.mxu0 0.0
        %489 = vmatprep.subr.mxu0 0.0
        %490 = vmatpush1.msra.mxu0 0.0
        %491 = vmatprep.subr.mxu0 0.0
        %492 = vmatpush1.msra.mxu0 0.0
        %493 = vmatprep.subr.mxu0 0.0
        %494 = vmatpush1.msra.mxu0 0.0
        %495 = vmatprep.subr.mxu0 0.0
        %496 = vmatpush1.msra.mxu0 0.0
        %497 = vmatprep.subr.mxu0 0.0
        %498 = vmatpush1.msra.mxu0 0.0
        %499 = vmatprep.subr.mxu0 0.0
        %500 = vmatpush1.msra.mxu0 0.0
        %501 = vmatprep.subr.mxu0 0.0
        %502 = vmatpush1.msra.mxu0 0.0
        %503 = vmatprep.subr.mxu0 0.0
        %504 = vmatpush1.msra.mxu0 0.0
        %505 = vmatprep.subr.mxu0 0.0
        %506 = vmatpush1.msra.mxu0 0.0
        %507 = vmatprep.subr.mxu0 0.0
        %508 = vmatpush1.msra.mxu0 0.0
        %509 = vmatprep.subr.mxu0 0.0
        %510 = vmatpush1.msra.mxu0 0.0
        %511 = vmatprep.subr.mxu0 0.0
        %512 = vmatpush1.msra.mxu0 0.0
        %513 = vmatprep.subr.mxu0 0.0
        %514 = vmatpush1.msra.mxu0 0.0
        %515 = vmatprep.subr.mxu0 0.0
        %516 = vmatpush1.msra.mxu0 0.0
        %517 = vmatprep.subr.mxu0 0.0
        %518 = vmatpush1.msra.mxu0 0.0
        %519 = vmatprep.subr.mxu0 0.0
        %520 = vmatpush1.msra.mxu0 0.0
        %521 = vmatprep.subr.mxu0 0.0
        %522 = vmatpush1.msra.mxu0 0.0
        %523 = vmatprep.subr.mxu0 0.0
        %524 = vmatpush1.msra.mxu0 0.0
        %525 = vmatprep.subr.mxu0 0.0
        %526 = vmatpush1.msra.mxu0 0.0
        %527 = vmatprep.subr.mxu0 0.0
        %528 = vmatpush1.msra.mxu0 0.0
        %529 = vmatprep.subr.mxu0 0.0
        %530 = vmatpush1.msra.mxu0 0.0
        %531 = vmatprep.subr.mxu0 0.0
        %532 = vmatpush1.msra.mxu0 0.0
        %533 = vmatprep.subr.mxu0 0.0
        %534 = vmatpush1.msra.mxu0 0.0
        %535 = vmatprep.subr.mxu0 0.0
        %536 = vmatpush1.msra.mxu0 0.0
        %537 = vmatprep.subr.mxu0 0.0
        %538 = vmatpush1.msra.mxu0 0.0
        %539 = vmatprep.subr.mxu0 0.0
        %540 = vmatpush1.msra.mxu0 0.0
        %541 = vmatprep.subr.mxu0 0.0
        %542 = vmatpush1.msra.mxu0 0.0
        %543 = vmatprep.subr.mxu0 0.0
        %544 = vmatpush1.msra.mxu0 0.0
        %545 = vmatprep.mubr.f32.mxu0 0.0
        %546 = vmatmul.mubr.f32.gmra.mrb[0].mxu0 %v434
        %v547 = vpop.f32.mrb[0].mxu0
        %v548 = vadd.f32 0.0, %v547
        %v549 = vpop.f32.mrb[0].mxu0
        %550 = vmatprep.mubr.f32.mxu0 0.0
        %551 = vmatmul.mubr.f32.gmra.mrb[0].mxu0 %v437
        %v552 = vpop.f32.mrb[0].mxu0
        %v553 = vadd.f32 0.0, %v552
        %v554 = vpop.f32.mrb[0].mxu0
        %555 = vmatprep.mubr.f32.mxu0 0.0
        %556 = vmatmul.mubr.f32.gmra.mrb[0].mxu0 %v440
        %v557 = vpop.f32.mrb[0].mxu0
        %v558 = vadd.f32 0.0, %v557
        %v559 = vpop.f32.mrb[0].mxu0
        %560 = vmatprep.mubr.f32.mxu0 0.0
        %561 = vmatmul.mubr.f32.gmra.mrb[0].mxu0 %v443
        %v562 = vpop.f32.mrb[0].mxu0
        %v563 = vadd.f32 0.0, %v562
        %v564 = vpop.f32.mrb[0].mxu0
        %565 = vmatprep.mubr.f32.mxu0 0.0
        %566 = vmatmul.mubr.f32.gmra.mrb[0].mxu0 %v446
        %v567 = vpop.f32.mrb[0].mxu0
        %v568 = vadd.f32 0.0, %v567
        %v569 = vpop.f32.mrb[0].mxu0
        %570 = vmatprep.mubr.f32.mxu0 0.0
        %571 = vmatmul.mubr.f32.gmra.mrb[0].mxu0 %v449
        %v572 = vpop.f32.mrb[0].mxu0
        %v573 = vadd.f32 0.0, %v572
        %v574 = vpop.f32.mrb[0].mxu0
        %575 = vmatprep.mubr.f32.mxu0 0.0
        %576 = vmatmul.mubr.f32.gmra.mrb[0].mxu0 %v452
        %v577 = vpop.f32.mrb[0].mxu0
        %v578 = vadd.f32 0.0, %v577
        %v579 = vpop.f32.mrb[0].mxu0
        %580 = vmatprep.mubr.f32.mxu0 0.0
        %581 = vmatmul.mubr.f32.gmra.mrb[0].mxu0 %v455
        %v582 = vpop.f32.mrb[0].mxu0
        %v583 = vadd.f32 0.0, %v582
        %v584 = vpop.f32.mrb[0].mxu0
        %585 = vmatprep.mubr.f32.mxu0 0.0
        %586 = vmatmul.mubr.f32.gmra.mrb[0].mxu0 %v458
        %v587 = vpop.f32.mrb[0].mxu0
        %v588 = vadd.f32 0.0, %v587
        %v589 = vpop.f32.mrb[0].mxu0
        %590 = vmatprep.mubr.f32.mxu0 0.0
        %591 = vmatmul.mubr.f32.gmra.mrb[0].mxu0 %v461
        %v592 = vpop.f32.mrb[0].mxu0
        %v593 = vadd.f32 0.0, %v592
        %v594 = vpop.f32.mrb[0].mxu0
        %595 = vmatprep.mubr.f32.mxu0 0.0
        %596 = vmatmul.mubr.f32.gmra.mrb[0].mxu0 %v464
        %v597 = vpop.f32.mrb[0].mxu0
        %v598 = vadd.f32 0.0, %v597
        %v599 = vpop.f32.mrb[0].mxu0
        %600 = vmatprep.mubr.f32.mxu0 0.0
        %601 = vmatmul.mubr.f32.gmra.mrb[0].mxu0 %v467
        %v602 = vpop.f32.mrb[0].mxu0
        %v603 = vadd.f32 0.0, %v602
        %v604 = vpop.f32.mrb[0].mxu0
        %605 = vmatprep.mubr.f32.mxu0 0.0
        %606 = vmatmul.mubr.f32.gmra.mrb[0].mxu0 %v470
        %v607 = vpop.f32.mrb[0].mxu0
        %v608 = vadd.f32 0.0, %v607
        %v609 = vpop.f32.mrb[0].mxu0
        %610 = vmatprep.mubr.f32.mxu0 0.0
        %611 = vmatmul.mubr.f32.gmra.mrb[0].mxu0 %v473
        %v612 = vpop.f32.mrb[0].mxu0
        %v613 = vadd.f32 0.0, %v612
        %v614 = vpop.f32.mrb[0].mxu0
        %615 = vmatprep.mubr.f32.mxu0 0.0
        %616 = vmatmul.mubr.f32.gmra.mrb[0].mxu0 %v476
        %v617 = vpop.f32.mrb[0].mxu0
        %v618 = vadd.f32 0.0, %v617
        %v619 = vpop.f32.mrb[0].mxu0
        %620 = vmatprep.mubr.f32.mxu0 0.0
        %621 = vmatmul.mubr.f32.gmra.mrb[0].mxu0 %v479
        %v622 = vpop.f32.mrb[0].mxu0
        %v623 = vadd.f32 0.0, %v622
        %v624 = vpop.f32.mrb[0].mxu0
        %625 = vdwg.mxu0
        %v626 = vld [vmem:[%s3] sm:$0xff]
        %v627 = vld [vmem:[%s3 + $0x8] sm:$0xff]
        %v628 = vld [vmem:[%s3 + $0x10] sm:$0xff]
        %v629 = vld [vmem:[%s3 + $0x18] sm:$0xff]
        %v630 = vld [vmem:[%s4] sm:$0xf]
        %v631 = vld [vmem:[%s5] sm:$0xff]
        %v632 = vld [vmem:[%s5 + $0x8] sm:$0xff]
        %v633 = vld [vmem:[%s5 + $0x10] sm:$0xff]
        %v634 = vld [vmem:[%s5 + $0x18] sm:$0xff]
        %v635 = vld [vmem:[%s5 + $0x20] sm:$0xff]
        %v636 = vld [vmem:[%s5 + $0x28] sm:$0xff]
        %v637 = vld [vmem:[%s5 + $0x30] sm:$0xff]
        %v638 = vld [vmem:[%s5 + $0x38] sm:$0xff]
        %v639 = vld [vmem:[%s5 + $0x40] sm:$0xff]
        %v640 = vld [vmem:[%s5 + $0x48] sm:$0xff]
        %v641 = vld [vmem:[%s5 + $0x50] sm:$0xff]
        %v642 = vld [vmem:[%s5 + $0x58] sm:$0xff]
        %v643 = vld [vmem:[%s5 + $0x60] sm:$0xff]
        %v644 = vld [vmem:[%s5 + $0x68] sm:$0xff]
        %v645 = vld [vmem:[%s5 + $0x70] sm:$0xff]
        %v646 = vld [vmem:[%s5 + $0x78] sm:$0xff]
        %v647 = vld [vmem:[%s6] sm:$0xff]
        %v648 = vld [vmem:[%s6 + $0x8] sm:$0xff]
        %vm649 = vcmask 31744
        %v650 = vsel %vm649, 1.0, 0.0
        %651 = vadd.xlane.f32.xlu0 %v650
        %v652 = vpop.xlane.xlu0 %651
        %v653 = vrcp.pop %v652
        %v655 = vsel %vm649, %v653, 0
        %vm657 = vcmask 1043456
        %v659 = vsel %vm657, %v630, 0
        %661 = vmatprep.subr.mxu0 0.0
        %662 = vmatpush1.msra.mxu0 %v659
        %663 = vmatprep.subr.mxu0 0.0
        %664 = vmatpush1.msra.mxu0 0.0
        %665 = vmatprep.subr.mxu0 0.0
        %666 = vmatpush1.msra.mxu0 0.0
        %667 = vmatprep.subr.mxu0 0.0
        %668 = vmatpush1.msra.mxu0 0.0
        %669 = vmatprep.subr.mxu0 0.0
        %670 = vmatpush1.msra.mxu0 0.0
        %671 = vmatprep.subr.mxu0 0.0
        %672 = vmatpush1.msra.mxu0 0.0
        %673 = vmatprep.subr.mxu0 0.0
        %674 = vmatpush1.msra.mxu0 0.0
        %675 = vmatprep.subr.mxu0 0.0
        %676 = vmatpush1.msra.mxu0 0.0
        %677 = vmatprep.subr.mxu0 0.0
        %678 = vmatpush1.msra.mxu0 0.0
        %679 = vmatprep.subr.mxu0 0.0
        %680 = vmatpush1.msra.mxu0 0.0
        %681 = vmatprep.subr.mxu0 0.0
        %682 = vmatpush1.msra.mxu0 0.0
        %683 = vmatprep.subr.mxu0 0.0
        %684 = vmatpush1.msra.mxu0 0.0
        %685 = vmatprep.subr.mxu0 0.0
        %686 = vmatpush1.msra.mxu0 0.0
        %687 = vmatprep.subr.mxu0 0.0
        %688 = vmatpush1.msra.mxu0 0.0
        %689 = vmatprep.subr.mxu0 0.0
        %690 = vmatpush1.msra.mxu0 0.0
        %691 = vmatprep.subr.mxu0 0.0
        %692 = vmatpush1.msra.mxu0 0.0
        %693 = vmatprep.subr.mxu0 0.0
        %694 = vmatpush1.msra.mxu0 0.0
        %695 = vmatprep.subr.mxu0 0.0
        %696 = vmatpush1.msra.mxu0 0.0
        %697 = vmatprep.subr.mxu0 0.0
        %698 = vmatpush1.msra.mxu0 0.0
        %699 = vmatprep.subr.mxu0 0.0
        %700 = vmatpush1.msra.mxu0 0.0
        %701 = vmatprep.subr.mxu0 0.0
        %702 = vmatpush1.msra.mxu0 0.0
        %703 = vmatprep.subr.mxu0 0.0
        %704 = vmatpush1.msra.mxu0 0.0
        %705 = vmatprep.subr.mxu0 0.0
        %706 = vmatpush1.msra.mxu0 0.0
        %707 = vmatprep.subr.mxu0 0.0
        %708 = vmatpush1.msra.mxu0 0.0
        %709 = vmatprep.subr.mxu0 0.0
        %710 = vmatpush1.msra.mxu0 0.0
        %711 = vmatprep.subr.mxu0 0.0
        %712 = vmatpush1.msra.mxu0 0.0
        %713 = vmatprep.subr.mxu0 0.0
        %714 = vmatpush1.msra.mxu0 0.0
        %715 = vmatprep.subr.mxu0 0.0
        %716 = vmatpush1.msra.mxu0 0.0
        %717 = vmatprep.subr.mxu0 0.0
        %718 = vmatpush1.msra.mxu0 0.0
        %719 = vmatprep.subr.mxu0 0.0
        %720 = vmatpush1.msra.mxu0 0.0
        %721 = vmatprep.subr.mxu0 0.0
        %722 = vmatpush1.msra.mxu0 0.0
        %723 = vmatprep.subr.mxu0 0.0
        %724 = vmatpush1.msra.mxu0 0.0
        %725 = vmatprep.mubr.f32.mxu0 0.0
        %726 = vmatmul.mubr.f32.gmra.mrb[0].mxu0 %v655
        %v727 = vpop.f32.mrb[0].mxu0
        %v728 = vadd.f32 0.0, %v727
        %v729 = vpop.f32.mrb[0].mxu0
        %730 = vmatprep.mubr.f32.mxu0 0.0
        %731 = vmatmul.mubr.f32.gmra.mrb[0].mxu0 %v655
        %v732 = vpop.f32.mrb[0].mxu0
        %v733 = vadd.f32 0.0, %v732
        %v734 = vpop.f32.mrb[0].mxu0
        %735 = vmatprep.mubr.f32.mxu0 0.0
        %736 = vmatmul.mubr.f32.gmra.mrb[0].mxu0 %v655
        %v737 = vpop.f32.mrb[0].mxu0
        %v738 = vadd.f32 0.0, %v737
        %v739 = vpop.f32.mrb[0].mxu0
        %740 = vmatprep.mubr.f32.mxu0 0.0
        %741 = vmatmul.mubr.f32.gmra.mrb[0].mxu0 %v655
        %v742 = vpop.f32.mrb[0].mxu0
        %v743 = vadd.f32 0.0, %v742
        %v744 = vpop.f32.mrb[0].mxu0
        %745 = vmatprep.mubr.f32.mxu0 0.0
        %746 = vmatmul.mubr.f32.gmra.mrb[0].mxu0 %v655
        %v747 = vpop.f32.mrb[0].mxu0
        %v748 = vadd.f32 0.0, %v747
        %v749 = vpop.f32.mrb[0].mxu0
        %750 = vmatprep.mubr.f32.mxu0 0.0
        %751 = vmatmul.mubr.f32.gmra.mrb[0].mxu0 %v655
        %v752 = vpop.f32.mrb[0].mxu0
        %v753 = vadd.f32 0.0, %v752
        %v754 = vpop.f32.mrb[0].mxu0
        %755 = vmatprep.mubr.f32.mxu0 0.0
        %756 = vmatmul.mubr.f32.gmra.mrb[0].mxu0 %v655
        %v757 = vpop.f32.mrb[0].mxu0
        %v758 = vadd.f32 0.0, %v757
        %v759 = vpop.f32.mrb[0].mxu0
        %760 = vmatprep.mubr.f32.mxu0 0.0
        %761 = vmatmul.mubr.f32.gmra.mrb[0].mxu0 %v655
        %v762 = vpop.f32.mrb[0].mxu0
        %v763 = vadd.f32 0.0, %v762
        %v764 = vpop.f32.mrb[0].mxu0
        %765 = vmatprep.mubr.f32.mxu0 0.0
        %766 = vmatmul.mubr.f32.gmra.mrb[0].mxu0 %v655
        %v767 = vpop.f32.mrb[0].mxu0
        %v768 = vadd.f32 0.0, %v767
        %v769 = vpop.f32.mrb[0].mxu0
        %770 = vmatprep.mubr.f32.mxu0 0.0
        %771 = vmatmul.mubr.f32.gmra.mrb[0].mxu0 %v655
        %v772 = vpop.f32.mrb[0].mxu0
        %v773 = vadd.f32 0.0, %v772
        %v774 = vpop.f32.mrb[0].mxu0
        %775 = vmatprep.mubr.f32.mxu0 0.0
        %776 = vmatmul.mubr.f32.gmra.mrb[0].mxu0 %v655
        %v777 = vpop.f32.mrb[0].mxu0
        %v778 = vadd.f32 0.0, %v777
        %v779 = vpop.f32.mrb[0].mxu0
        %780 = vmatprep.mubr.f32.mxu0 0.0
        %781 = vmatmul.mubr.f32.gmra.mrb[0].mxu0 %v655
        %v782 = vpop.f32.mrb[0].mxu0
        %v783 = vadd.f32 0.0, %v782
        %v784 = vpop.f32.mrb[0].mxu0
        %785 = vmatprep.mubr.f32.mxu0 0.0
        %786 = vmatmul.mubr.f32.gmra.mrb[0].mxu0 %v655
        %v787 = vpop.f32.mrb[0].mxu0
        %v788 = vadd.f32 0.0, %v787
        %v789 = vpop.f32.mrb[0].mxu0
        %790 = vmatprep.mubr.f32.mxu0 0.0
        %791 = vmatmul.mubr.f32.gmra.mrb[0].mxu0 %v655
        %v792 = vpop.f32.mrb[0].mxu0
        %v793 = vadd.f32 0.0, %v792
        %v794 = vpop.f32.mrb[0].mxu0
        %795 = vmatprep.mubr.f32.mxu0 0.0
        %796 = vmatmul.mubr.f32.gmra.mrb[0].mxu0 %v655
        %v797 = vpop.f32.mrb[0].mxu0
        %v798 = vadd.f32 0.0, %v797
        %v799 = vpop.f32.mrb[0].mxu0
        %800 = vmatprep.mubr.f32.mxu0 0.0
        %801 = vmatmul.mubr.f32.gmra.mrb[0].mxu0 %v655
        %v802 = vpop.f32.mrb[0].mxu0
        %v803 = vadd.f32 0.0, %v802
        %v804 = vpop.f32.mrb[0].mxu0
        %805 = vdwg.mxu0
        %v806 = vmul.f32 %v728, %v548
        %v807 = vmul.f32 %v733, %v553
        %v808 = vmul.f32 %v738, %v558
        %v809 = vmul.f32 %v743, %v563
        %v810 = vmul.f32 %v748, %v568
        %v811 = vmul.f32 %v753, %v573
        %v812 = vmul.f32 %v758, %v578
        %v813 = vmul.f32 %v763, %v583
        %v814 = vmul.f32 %v768, %v588
        %v815 = vmul.f32 %v773, %v593
        %v816 = vmul.f32 %v778, %v598
        %v817 = vmul.f32 %v783, %v603
        %v818 = vmul.f32 %v788, %v608
        %v819 = vmul.f32 %v793, %v613
        %v820 = vmul.f32 %v798, %v618
        %v821 = vmul.f32 %v803, %v623
        %822 = vmatprep.subr.mxu0 0.0
        %823 = vmatpush1.msra.mxu0 %v806
        %824 = vmatprep.subr.mxu0 0.0
        %825 = vmatpush1.msra.mxu0 %v807
        %826 = vmatprep.subr.mxu0 0.0
        %827 = vmatpush1.msra.mxu0 %v808
        %828 = vmatprep.subr.mxu0 0.0
        %829 = vmatpush1.msra.mxu0 %v809
        %830 = vmatprep.subr.mxu0 0.0
        %831 = vmatpush1.msra.mxu0 %v810
        %832 = vmatprep.subr.mxu0 0.0
        %833 = vmatpush1.msra.mxu0 %v811
        %834 = vmatprep.subr.mxu0 0.0
        %835 = vmatpush1.msra.mxu0 %v812
        %836 = vmatprep.subr.mxu0 0.0
        %837 = vmatpush1.msra.mxu0 %v813
        %838 = vmatprep.subr.mxu0 0.0
        %839 = vmatpush1.msra.mxu0 %v814
        %840 = vmatprep.subr.mxu0 0.0
        %841 = vmatpush1.msra.mxu0 %v815
        %842 = vmatprep.subr.mxu0 0.0
        %843 = vmatpush1.msra.mxu0 %v816
        %844 = vmatprep.subr.mxu0 0.0
        %845 = vmatpush1.msra.mxu0 %v817
        %846 = vmatprep.subr.mxu0 0.0
        %847 = vmatpush1.msra.mxu0 %v818
        %848 = vmatprep.subr.mxu0 0.0
        %849 = vmatpush1.msra.mxu0 %v819
        %850 = vmatprep.subr.mxu0 0.0
        %851 = vmatpush1.msra.mxu0 %v820
        %852 = vmatprep.subr.mxu0 0.0
        %853 = vmatpush1.msra.mxu0 %v821
        %854 = vmatprep.subr.mxu0 0.0
        %855 = vmatpush1.msra.mxu0 0.0
        %856 = vmatprep.subr.mxu0 0.0
        %857 = vmatpush1.msra.mxu0 0.0
        %858 = vmatprep.subr.mxu0 0.0
        %859 = vmatpush1.msra.mxu0 0.0
        %860 = vmatprep.subr.mxu0 0.0
        %861 = vmatpush1.msra.mxu0 0.0
        %862 = vmatprep.subr.mxu0 0.0
        %863 = vmatpush1.msra.mxu0 0.0
        %864 = vmatprep.subr.mxu0 0.0
        %865 = vmatpush1.msra.mxu0 0.0
        %866 = vmatprep.subr.mxu0 0.0
        %867 = vmatpush1.msra.mxu0 0.0
        %868 = vmatprep.subr.mxu0 0.0
        %869 = vmatpush1.msra.mxu0 0.0
        %870 = vmatprep.subr.mxu0 0.0
        %871 = vmatpush1.msra.mxu0 0.0
        %872 = vmatprep.subr.mxu0 0.0
        %873 = vmatpush1.msra.mxu0 0.0
        %874 = vmatprep.subr.mxu0 0.0
        %875 = vmatpush1.msra.mxu0 0.0
        %876 = vmatprep.subr.mxu0 0.0
        %877 = vmatpush1.msra.mxu0 0.0
        %878 = vmatprep.subr.mxu0 0.0
        %879 = vmatpush1.msra.mxu0 0.0
        %880 = vmatprep.subr.mxu0 0.0
        %881 = vmatpush1.msra.mxu0 0.0
        %882 = vmatprep.subr.mxu0 0.0
        %883 = vmatpush1.msra.mxu0 0.0
        %884 = vmatprep.subr.mxu0 0.0
        %885 = vmatpush1.msra.mxu0 0.0
        %886 = vmatprep.mubr.f32.mxu0 0.0
        %887 = vmatmul.mubr.f32.gmra.mrb[0].mxu0 %v647
        %v888 = vpop.f32.mrb[0].mxu0
        %v889 = vadd.f32 0.0, %v888
        %v890 = vpop.f32.mrb[0].mxu0
        %891 = vmatprep.mubr.f32.mxu0 0.0
        %892 = vmatmul.mubr.f32.gmra.mrb[0].mxu0 %v648
        %v893 = vpop.f32.mrb[0].mxu0
        %v894 = vadd.f32 0.0, %v893
        %v895 = vpop.f32.mrb[0].mxu0
        %896 = vdwg.mxu0
        %v897 = vmul.f32 %v889, %v889
        %v898 = vmul.f32 %v894, %v894
        %vm899 = vcmask 261120
        %v901 = vsel %vm899, %v897, 0
        %v904 = vsel %vm899, %v898, 0
        %906 = vmatprep.subr.mxu0 0.0
        %907 = vmatpush1.msra.mxu0 %v626
        %908 = vmatprep.subr.mxu0 0.0
        %909 = vmatpush1.msra.mxu0 %v627
        %910 = vmatprep.subr.mxu0 0.0
        %911 = vmatpush1.msra.mxu0 %v628
        %912 = vmatprep.subr.mxu0 0.0
        %913 = vmatpush1.msra.mxu0 %v629
        %914 = vmatprep.subr.mxu0 0.0
        %915 = vmatpush1.msra.mxu0 0.0
        %916 = vmatprep.subr.mxu0 0.0
        %917 = vmatpush1.msra.mxu0 0.0
        %918 = vmatprep.subr.mxu0 0.0
        %919 = vmatpush1.msra.mxu0 0.0
        %920 = vmatprep.subr.mxu0 0.0
        %921 = vmatpush1.msra.mxu0 0.0
        %922 = vmatprep.subr.mxu0 0.0
        %923 = vmatpush1.msra.mxu0 0.0
        %924 = vmatprep.subr.mxu0 0.0
        %925 = vmatpush1.msra.mxu0 0.0
        %926 = vmatprep.subr.mxu0 0.0
        %927 = vmatpush1.msra.mxu0 0.0
        %928 = vmatprep.subr.mxu0 0.0
        %929 = vmatpush1.msra.mxu0 0.0
        %930 = vmatprep.subr.mxu0 0.0
        %931 = vmatpush1.msra.mxu0 0.0
        %932 = vmatprep.subr.mxu0 0.0
        %933 = vmatpush1.msra.mxu0 0.0
        %934 = vmatprep.subr.mxu0 0.0
        %935 = vmatpush1.msra.mxu0 0.0
        %936 = vmatprep.subr.mxu0 0.0
        %937 = vmatpush1.msra.mxu0 0.0
        %938 = vmatprep.subr.mxu0 0.0
        %939 = vmatpush1.msra.mxu0 0.0
        %940 = vmatprep.subr.mxu0 0.0
        %941 = vmatpush1.msra.mxu0 0.0
        %942 = vmatprep.subr.mxu0 0.0
        %943 = vmatpush1.msra.mxu0 0.0
        %944 = vmatprep.subr.mxu0 0.0
        %945 = vmatpush1.msra.mxu0 0.0
        %946 = vmatprep.subr.mxu0 0.0
        %947 = vmatpush1.msra.mxu0 0.0
        %948 = vmatprep.subr.mxu0 0.0
        %949 = vmatpush1.msra.mxu0 0.0
        %950 = vmatprep.subr.mxu0 0.0
        %951 = vmatpush1.msra.mxu0 0.0
        %952 = vmatprep.subr.mxu0 0.0
        %953 = vmatpush1.msra.mxu0 0.0
        %954 = vmatprep.subr.mxu0 0.0
        %955 = vmatpush1.msra.mxu0 0.0
        %956 = vmatprep.subr.mxu0 0.0
        %957 = vmatpush1.msra.mxu0 0.0
        %958 = vmatprep.subr.mxu0 0.0
        %959 = vmatpush1.msra.mxu0 0.0
        %960 = vmatprep.subr.mxu0 0.0
        %961 = vmatpush1.msra.mxu0 0.0
        %962 = vmatprep.subr.mxu0 0.0
        %963 = vmatpush1.msra.mxu0 0.0
        %964 = vmatprep.subr.mxu0 0.0
        %965 = vmatpush1.msra.mxu0 0.0
        %966 = vmatprep.subr.mxu0 0.0
        %967 = vmatpush1.msra.mxu0 0.0
        %968 = vmatprep.subr.mxu0 0.0
        %969 = vmatpush1.msra.mxu0 0.0
        %970 = vmatprep.mubr.f32.mxu0 0.0
        %971 = vmatmul.mubr.f32.gmra.mrb[0].mxu0 %v901
        %v972 = vpop.f32.mrb[0].mxu0
        %v973 = vadd.f32 0.0, %v972
        %v974 = vpop.f32.mrb[0].mxu0
        %975 = vmatprep.mubr.f32.mxu0 0.0
        %976 = vmatmul.mubr.f32.gmra.mrb[0].mxu0 %v904
        %v977 = vpop.f32.mrb[0].mxu0
        %v978 = vadd.f32 0.0, %v977
        %v979 = vpop.f32.mrb[0].mxu0
        %980 = vdwg.mxu0
        %v981 = vadd.f32 %v973, 1.0
        %v982 = vadd.f32 %v978, 1.0
        %v983 = vrcp.pop %v981
        %v984 = vrcp.pop %v982
        %v985 = vmul.f32 %v973, %v983
        %v986 = vmul.f32 %v978, %v984
        %v987 = vadd.f32 %v973, 1e-09
        %v988 = vadd.f32 %v978, 1e-09
        %v989 = vrsqrt.pop %v987
        %v990 = vrsqrt.pop %v988
        %v991 = vmul.f32 %v985, %v989
        %v992 = vmul.f32 %v986, %v990
        %v994 = vsel %vm649, %v991, 0
        %v997 = vsel %vm649, %v992, 0
        %999 = vmatprep.subr.mxu0 0.0
        %1000 = vmatpush1.msra.mxu0 %v659
        %1001 = vmatprep.subr.mxu0 0.0
        %1002 = vmatpush1.msra.mxu0 0.0
        %1003 = vmatprep.subr.mxu0 0.0
        %1004 = vmatpush1.msra.mxu0 0.0
        %1005 = vmatprep.subr.mxu0 0.0
        %1006 = vmatpush1.msra.mxu0 0.0
        %1007 = vmatprep.subr.mxu0 0.0
        %1008 = vmatpush1.msra.mxu0 0.0
        %1009 = vmatprep.subr.mxu0 0.0
        %1010 = vmatpush1.msra.mxu0 0.0
        %1011 = vmatprep.subr.mxu0 0.0
        %1012 = vmatpush1.msra.mxu0 0.0
        %1013 = vmatprep.subr.mxu0 0.0
        %1014 = vmatpush1.msra.mxu0 0.0
        %1015 = vmatprep.subr.mxu0 0.0
        %1016 = vmatpush1.msra.mxu0 0.0
        %1017 = vmatprep.subr.mxu0 0.0
        %1018 = vmatpush1.msra.mxu0 0.0
        %1019 = vmatprep.subr.mxu0 0.0
        %1020 = vmatpush1.msra.mxu0 0.0
        %1021 = vmatprep.subr.mxu0 0.0
        %1022 = vmatpush1.msra.mxu0 0.0
        %1023 = vmatprep.subr.mxu0 0.0
        %1024 = vmatpush1.msra.mxu0 0.0
        %1025 = vmatprep.subr.mxu0 0.0
        %1026 = vmatpush1.msra.mxu0 0.0
        %1027 = vmatprep.subr.mxu0 0.0
        %1028 = vmatpush1.msra.mxu0 0.0
        %1029 = vmatprep.subr.mxu0 0.0
        %1030 = vmatpush1.msra.mxu0 0.0
        %1031 = vmatprep.subr.mxu0 0.0
        %1032 = vmatpush1.msra.mxu0 0.0
        %1033 = vmatprep.subr.mxu0 0.0
        %1034 = vmatpush1.msra.mxu0 0.0
        %1035 = vmatprep.subr.mxu0 0.0
        %1036 = vmatpush1.msra.mxu0 0.0
        %1037 = vmatprep.subr.mxu0 0.0
        %1038 = vmatpush1.msra.mxu0 0.0
        %1039 = vmatprep.subr.mxu0 0.0
        %1040 = vmatpush1.msra.mxu0 0.0
        %1041 = vmatprep.subr.mxu0 0.0
        %1042 = vmatpush1.msra.mxu0 0.0
        %1043 = vmatprep.subr.mxu0 0.0
        %1044 = vmatpush1.msra.mxu0 0.0
        %1045 = vmatprep.subr.mxu0 0.0
        %1046 = vmatpush1.msra.mxu0 0.0
        %1047 = vmatprep.subr.mxu0 0.0
        %1048 = vmatpush1.msra.mxu0 0.0
        %1049 = vmatprep.subr.mxu0 0.0
        %1050 = vmatpush1.msra.mxu0 0.0
        %1051 = vmatprep.subr.mxu0 0.0
        %1052 = vmatpush1.msra.mxu0 0.0
        %1053 = vmatprep.subr.mxu0 0.0
        %1054 = vmatpush1.msra.mxu0 0.0
        %1055 = vmatprep.subr.mxu0 0.0
        %1056 = vmatpush1.msra.mxu0 0.0
        %1057 = vmatprep.subr.mxu0 0.0
        %1058 = vmatpush1.msra.mxu0 0.0
        %1059 = vmatprep.subr.mxu0 0.0
        %1060 = vmatpush1.msra.mxu0 0.0
        %1061 = vmatprep.subr.mxu0 0.0
        %1062 = vmatpush1.msra.mxu0 0.0
        %1063 = vmatprep.mubr.f32.mxu0 0.0
        %1064 = vmatmul.mubr.f32.gmra.mrb[0].mxu0 %v994
        %v1065 = vpop.f32.mrb[0].mxu0
        %v1066 = vadd.f32 0.0, %v1065
        %v1067 = vpop.f32.mrb[0].mxu0
        %1068 = vmatprep.mubr.f32.mxu0 0.0
        %1069 = vmatmul.mubr.f32.gmra.mrb[0].mxu0 %v997
        %v1070 = vpop.f32.mrb[0].mxu0
        %v1071 = vadd.f32 0.0, %v1070
        %v1072 = vpop.f32.mrb[0].mxu0
        %1073 = vdwg.mxu0
        %v1074 = vmul.f32 %v1066, %v889
        %v1075 = vmul.f32 %v1071, %v894
        %v1077 = vsel %vm432, %v631, 0
        %v1080 = vsel %vm432, %v632, 0
        %v1083 = vsel %vm432, %v633, 0
        %v1086 = vsel %vm432, %v634, 0
        %v1089 = vsel %vm432, %v635, 0
        %v1092 = vsel %vm432, %v636, 0
        %v1095 = vsel %vm432, %v637, 0
        %v1098 = vsel %vm432, %v638, 0
        %v1101 = vsel %vm432, %v639, 0
        %v1104 = vsel %vm432, %v640, 0
        %v1107 = vsel %vm432, %v641, 0
        %v1110 = vsel %vm432, %v642, 0
        %v1113 = vsel %vm432, %v643, 0
        %v1116 = vsel %vm432, %v644, 0
        %v1119 = vsel %vm432, %v645, 0
        %v1122 = vsel %vm432, %v646, 0
        %1124 = vmatprep.subr.mxu0 0.0
        %1125 = vmatpush1.msra.mxu0 %v1074
        %1126 = vmatprep.subr.mxu0 0.0
        %1127 = vmatpush1.msra.mxu0 %v1075
        %1128 = vmatprep.subr.mxu0 0.0
        %1129 = vmatpush1.msra.mxu0 0.0
        %1130 = vmatprep.subr.mxu0 0.0
        %1131 = vmatpush1.msra.mxu0 0.0
        %1132 = vmatprep.subr.mxu0 0.0
        %1133 = vmatpush1.msra.mxu0 0.0
        %1134 = vmatprep.subr.mxu0 0.0
        %1135 = vmatpush1.msra.mxu0 0.0
        %1136 = vmatprep.subr.mxu0 0.0
        %1137 = vmatpush1.msra.mxu0 0.0
        %1138 = vmatprep.subr.mxu0 0.0
        %1139 = vmatpush1.msra.mxu0 0.0
        %1140 = vmatprep.subr.mxu0 0.0
        %1141 = vmatpush1.msra.mxu0 0.0
        %1142 = vmatprep.subr.mxu0 0.0
        %1143 = vmatpush1.msra.mxu0 0.0
        %1144 = vmatprep.subr.mxu0 0.0
        %1145 = vmatpush1.msra.mxu0 0.0
        %1146 = vmatprep.subr.mxu0 0.0
        %1147 = vmatpush1.msra.mxu0 0.0
        %1148 = vmatprep.subr.mxu0 0.0
        %1149 = vmatpush1.msra.mxu0 0.0
        %1150 = vmatprep.subr.mxu0 0.0
        %1151 = vmatpush1.msra.mxu0 0.0
        %1152 = vmatprep.subr.mxu0 0.0
        %1153 = vmatpush1.msra.mxu0 0.0
        %1154 = vmatprep.subr.mxu0 0.0
        %1155 = vmatpush1.msra.mxu0 0.0
        %1156 = vmatprep.subr.mxu0 0.0
        %1157 = vmatpush1.msra.mxu0 0.0
        %1158 = vmatprep.subr.mxu0 0.0
        %1159 = vmatpush1.msra.mxu0 0.0
        %1160 = vmatprep.subr.mxu0 0.0
        %1161 = vmatpush1.msra.mxu0 0.0
        %1162 = vmatprep.subr.mxu0 0.0
        %1163 = vmatpush1.msra.mxu0 0.0
        %1164 = vmatprep.subr.mxu0 0.0
        %1165 = vmatpush1.msra.mxu0 0.0
        %1166 = vmatprep.subr.mxu0 0.0
        %1167 = vmatpush1.msra.mxu0 0.0
        %1168 = vmatprep.subr.mxu0 0.0
        %1169 = vmatpush1.msra.mxu0 0.0
        %1170 = vmatprep.subr.mxu0 0.0
        %1171 = vmatpush1.msra.mxu0 0.0
        %1172 = vmatprep.subr.mxu0 0.0
        %1173 = vmatpush1.msra.mxu0 0.0
        %1174 = vmatprep.subr.mxu0 0.0
        %1175 = vmatpush1.msra.mxu0 0.0
        %1176 = vmatprep.subr.mxu0 0.0
        %1177 = vmatpush1.msra.mxu0 0.0
        %1178 = vmatprep.subr.mxu0 0.0
        %1179 = vmatpush1.msra.mxu0 0.0
        %1180 = vmatprep.subr.mxu0 0.0
        %1181 = vmatpush1.msra.mxu0 0.0
        %1182 = vmatprep.subr.mxu0 0.0
        %1183 = vmatpush1.msra.mxu0 0.0
        %1184 = vmatprep.subr.mxu0 0.0
        %1185 = vmatpush1.msra.mxu0 0.0
        %1186 = vmatprep.subr.mxu0 0.0
        %1187 = vmatpush1.msra.mxu0 0.0
        %1188 = vmatprep.mubr.f32.mxu0 0.0
        %1189 = vmatmul.mubr.f32.gmra.mrb[0].mxu0 %v1077
        %v1190 = vpop.f32.mrb[0].mxu0
        %v1191 = vadd.f32 0.0, %v1190
        %v1192 = vpop.f32.mrb[0].mxu0
        %1193 = vmatprep.mubr.f32.mxu0 0.0
        %1194 = vmatmul.mubr.f32.gmra.mrb[0].mxu0 %v1080
        %v1195 = vpop.f32.mrb[0].mxu0
        %v1196 = vadd.f32 0.0, %v1195
        %v1197 = vpop.f32.mrb[0].mxu0
        %1198 = vmatprep.mubr.f32.mxu0 0.0
        %1199 = vmatmul.mubr.f32.gmra.mrb[0].mxu0 %v1083
        %v1200 = vpop.f32.mrb[0].mxu0
        %v1201 = vadd.f32 0.0, %v1200
        %v1202 = vpop.f32.mrb[0].mxu0
        %1203 = vmatprep.mubr.f32.mxu0 0.0
        %1204 = vmatmul.mubr.f32.gmra.mrb[0].mxu0 %v1086
        %v1205 = vpop.f32.mrb[0].mxu0
        %v1206 = vadd.f32 0.0, %v1205
        %v1207 = vpop.f32.mrb[0].mxu0
        %1208 = vmatprep.mubr.f32.mxu0 0.0
        %1209 = vmatmul.mubr.f32.gmra.mrb[0].mxu0 %v1089
        %v1210 = vpop.f32.mrb[0].mxu0
        %v1211 = vadd.f32 0.0, %v1210
        %v1212 = vpop.f32.mrb[0].mxu0
        %1213 = vmatprep.mubr.f32.mxu0 0.0
        %1214 = vmatmul.mubr.f32.gmra.mrb[0].mxu0 %v1092
        %v1215 = vpop.f32.mrb[0].mxu0
        %v1216 = vadd.f32 0.0, %v1215
        %v1217 = vpop.f32.mrb[0].mxu0
        %1218 = vmatprep.mubr.f32.mxu0 0.0
        %1219 = vmatmul.mubr.f32.gmra.mrb[0].mxu0 %v1095
        %v1220 = vpop.f32.mrb[0].mxu0
        %v1221 = vadd.f32 0.0, %v1220
        %v1222 = vpop.f32.mrb[0].mxu0
        %1223 = vmatprep.mubr.f32.mxu0 0.0
        %1224 = vmatmul.mubr.f32.gmra.mrb[0].mxu0 %v1098
        %v1225 = vpop.f32.mrb[0].mxu0
        %v1226 = vadd.f32 0.0, %v1225
        %v1227 = vpop.f32.mrb[0].mxu0
        %1228 = vmatprep.mubr.f32.mxu0 0.0
        %1229 = vmatmul.mubr.f32.gmra.mrb[0].mxu0 %v1101
        %v1230 = vpop.f32.mrb[0].mxu0
        %v1231 = vadd.f32 0.0, %v1230
        %v1232 = vpop.f32.mrb[0].mxu0
        %1233 = vmatprep.mubr.f32.mxu0 0.0
        %1234 = vmatmul.mubr.f32.gmra.mrb[0].mxu0 %v1104
        %v1235 = vpop.f32.mrb[0].mxu0
        %v1236 = vadd.f32 0.0, %v1235
        %v1237 = vpop.f32.mrb[0].mxu0
        %1238 = vmatprep.mubr.f32.mxu0 0.0
        %1239 = vmatmul.mubr.f32.gmra.mrb[0].mxu0 %v1107
        %v1240 = vpop.f32.mrb[0].mxu0
        %v1241 = vadd.f32 0.0, %v1240
        %v1242 = vpop.f32.mrb[0].mxu0
        %1243 = vmatprep.mubr.f32.mxu0 0.0
        %1244 = vmatmul.mubr.f32.gmra.mrb[0].mxu0 %v1110
        %v1245 = vpop.f32.mrb[0].mxu0
        %v1246 = vadd.f32 0.0, %v1245
        %v1247 = vpop.f32.mrb[0].mxu0
        %1248 = vmatprep.mubr.f32.mxu0 0.0
        %1249 = vmatmul.mubr.f32.gmra.mrb[0].mxu0 %v1113
        %v1250 = vpop.f32.mrb[0].mxu0
        %v1251 = vadd.f32 0.0, %v1250
        %v1252 = vpop.f32.mrb[0].mxu0
        %1253 = vmatprep.mubr.f32.mxu0 0.0
        %1254 = vmatmul.mubr.f32.gmra.mrb[0].mxu0 %v1116
        %v1255 = vpop.f32.mrb[0].mxu0
        %v1256 = vadd.f32 0.0, %v1255
        %v1257 = vpop.f32.mrb[0].mxu0
        %1258 = vmatprep.mubr.f32.mxu0 0.0
        %1259 = vmatmul.mubr.f32.gmra.mrb[0].mxu0 %v1119
        %v1260 = vpop.f32.mrb[0].mxu0
        %v1261 = vadd.f32 0.0, %v1260
        %v1262 = vpop.f32.mrb[0].mxu0
        %1263 = vmatprep.mubr.f32.mxu0 0.0
        %1264 = vmatmul.mubr.f32.gmra.mrb[0].mxu0 %v1122
        %v1265 = vpop.f32.mrb[0].mxu0
        %v1266 = vadd.f32 0.0, %v1265
        %v1267 = vpop.f32.mrb[0].mxu0
        %1268 = vdwg.mxu0
        %v1269 = vmul.f32 %v548, %v1191
        %v1270 = vmul.f32 %v553, %v1196
        %v1271 = vmul.f32 %v558, %v1201
        %v1272 = vmul.f32 %v563, %v1206
        %v1273 = vmul.f32 %v568, %v1211
        %v1274 = vmul.f32 %v573, %v1216
        %v1275 = vmul.f32 %v578, %v1221
        %v1276 = vmul.f32 %v583, %v1226
        %v1277 = vmul.f32 %v588, %v1231
        %v1278 = vmul.f32 %v593, %v1236
        %v1279 = vmul.f32 %v598, %v1241
        %v1280 = vmul.f32 %v603, %v1246
        %v1281 = vmul.f32 %v608, %v1251
        %v1282 = vmul.f32 %v613, %v1256
        %v1283 = vmul.f32 %v618, %v1261
        %v1284 = vmul.f32 %v623, %v1266
        %v1286 = vsel %vm899, %v1269, 0
        %v1289 = vsel %vm899, %v1270, 0
        %v1292 = vsel %vm899, %v1271, 0
        %v1295 = vsel %vm899, %v1272, 0
        %v1298 = vsel %vm899, %v1273, 0
        %v1301 = vsel %vm899, %v1274, 0
        %v1304 = vsel %vm899, %v1275, 0
        %v1307 = vsel %vm899, %v1276, 0
        %v1310 = vsel %vm899, %v1277, 0
        %v1313 = vsel %vm899, %v1278, 0
        %v1316 = vsel %vm899, %v1279, 0
        %v1319 = vsel %vm899, %v1280, 0
        %v1322 = vsel %vm899, %v1281, 0
        %v1325 = vsel %vm899, %v1282, 0
        %v1328 = vsel %vm899, %v1283, 0
        %v1331 = vsel %vm899, %v1284, 0
        %1333 = vmatprep.subr.mxu0 0.0
        %1334 = vmatpush1.msra.mxu0 %v626
        %1335 = vmatprep.subr.mxu0 0.0
        %1336 = vmatpush1.msra.mxu0 %v627
        %1337 = vmatprep.subr.mxu0 0.0
        %1338 = vmatpush1.msra.mxu0 %v628
        %1339 = vmatprep.subr.mxu0 0.0
        %1340 = vmatpush1.msra.mxu0 %v629
        %1341 = vmatprep.subr.mxu0 0.0
        %1342 = vmatpush1.msra.mxu0 0.0
        %1343 = vmatprep.subr.mxu0 0.0
        %1344 = vmatpush1.msra.mxu0 0.0
        %1345 = vmatprep.subr.mxu0 0.0
        %1346 = vmatpush1.msra.mxu0 0.0
        %1347 = vmatprep.subr.mxu0 0.0
        %1348 = vmatpush1.msra.mxu0 0.0
        %1349 = vmatprep.subr.mxu0 0.0
        %1350 = vmatpush1.msra.mxu0 0.0
        %1351 = vmatprep.subr.mxu0 0.0
        %1352 = vmatpush1.msra.mxu0 0.0
        %1353 = vmatprep.subr.mxu0 0.0
        %1354 = vmatpush1.msra.mxu0 0.0
        %1355 = vmatprep.subr.mxu0 0.0
        %1356 = vmatpush1.msra.mxu0 0.0
        %1357 = vmatprep.subr.mxu0 0.0
        %1358 = vmatpush1.msra.mxu0 0.0
        %1359 = vmatprep.subr.mxu0 0.0
        %1360 = vmatpush1.msra.mxu0 0.0
        %1361 = vmatprep.subr.mxu0 0.0
        %1362 = vmatpush1.msra.mxu0 0.0
        %1363 = vmatprep.subr.mxu0 0.0
        %1364 = vmatpush1.msra.mxu0 0.0
        %1365 = vmatprep.subr.mxu0 0.0
        %1366 = vmatpush1.msra.mxu0 0.0
        %1367 = vmatprep.subr.mxu0 0.0
        %1368 = vmatpush1.msra.mxu0 0.0
        %1369 = vmatprep.subr.mxu0 0.0
        %1370 = vmatpush1.msra.mxu0 0.0
        %1371 = vmatprep.subr.mxu0 0.0
        %1372 = vmatpush1.msra.mxu0 0.0
        %1373 = vmatprep.subr.mxu0 0.0
        %1374 = vmatpush1.msra.mxu0 0.0
        %1375 = vmatprep.subr.mxu0 0.0
        %1376 = vmatpush1.msra.mxu0 0.0
        %1377 = vmatprep.subr.mxu0 0.0
        %1378 = vmatpush1.msra.mxu0 0.0
        %1379 = vmatprep.subr.mxu0 0.0
        %1380 = vmatpush1.msra.mxu0 0.0
        %1381 = vmatprep.subr.mxu0 0.0
        %1382 = vmatpush1.msra.mxu0 0.0
        %1383 = vmatprep.subr.mxu0 0.0
        %1384 = vmatpush1.msra.mxu0 0.0
        %1385 = vmatprep.subr.mxu0 0.0
        %1386 = vmatpush1.msra.mxu0 0.0
        %1387 = vmatprep.subr.mxu0 0.0
        %1388 = vmatpush1.msra.mxu0 0.0
        %1389 = vmatprep.subr.mxu0 0.0
        %1390 = vmatpush1.msra.mxu0 0.0
        %1391 = vmatprep.subr.mxu0 0.0
        %1392 = vmatpush1.msra.mxu0 0.0
        %1393 = vmatprep.subr.mxu0 0.0
        %1394 = vmatpush1.msra.mxu0 0.0
        %1395 = vmatprep.subr.mxu0 0.0
        %1396 = vmatpush1.msra.mxu0 0.0
        %1397 = vmatprep.mubr.f32.mxu0 0.0
        %1398 = vmatmul.mubr.f32.gmra.mrb[0].mxu0 %v1286
        %v1399 = vpop.f32.mrb[0].mxu0
        %v1400 = vadd.f32 0.0, %v1399
        %v1401 = vpop.f32.mrb[0].mxu0
        %1402 = vmatprep.mubr.f32.mxu0 0.0
        %1403 = vmatmul.mubr.f32.gmra.mrb[0].mxu0 %v1289
        %v1404 = vpop.f32.mrb[0].mxu0
        %v1405 = vadd.f32 0.0, %v1404
        %v1406 = vpop.f32.mrb[0].mxu0
        %1407 = vmatprep.mubr.f32.mxu0 0.0
        %1408 = vmatmul.mubr.f32.gmra.mrb[0].mxu0 %v1292
        %v1409 = vpop.f32.mrb[0].mxu0
        %v1410 = vadd.f32 0.0, %v1409
        %v1411 = vpop.f32.mrb[0].mxu0
        %1412 = vmatprep.mubr.f32.mxu0 0.0
        %1413 = vmatmul.mubr.f32.gmra.mrb[0].mxu0 %v1295
        %v1414 = vpop.f32.mrb[0].mxu0
        %v1415 = vadd.f32 0.0, %v1414
        %v1416 = vpop.f32.mrb[0].mxu0
        %1417 = vmatprep.mubr.f32.mxu0 0.0
        %1418 = vmatmul.mubr.f32.gmra.mrb[0].mxu0 %v1298
        %v1419 = vpop.f32.mrb[0].mxu0
        %v1420 = vadd.f32 0.0, %v1419
        %v1421 = vpop.f32.mrb[0].mxu0
        %1422 = vmatprep.mubr.f32.mxu0 0.0
        %1423 = vmatmul.mubr.f32.gmra.mrb[0].mxu0 %v1301
        %v1424 = vpop.f32.mrb[0].mxu0
        %v1425 = vadd.f32 0.0, %v1424
        %v1426 = vpop.f32.mrb[0].mxu0
        %1427 = vmatprep.mubr.f32.mxu0 0.0
        %1428 = vmatmul.mubr.f32.gmra.mrb[0].mxu0 %v1304
        %v1429 = vpop.f32.mrb[0].mxu0
        %v1430 = vadd.f32 0.0, %v1429
        %v1431 = vpop.f32.mrb[0].mxu0
        %1432 = vmatprep.mubr.f32.mxu0 0.0
        %1433 = vmatmul.mubr.f32.gmra.mrb[0].mxu0 %v1307
        %v1434 = vpop.f32.mrb[0].mxu0
        %v1435 = vadd.f32 0.0, %v1434
        %v1436 = vpop.f32.mrb[0].mxu0
        %1437 = vmatprep.mubr.f32.mxu0 0.0
        %1438 = vmatmul.mubr.f32.gmra.mrb[0].mxu0 %v1310
        %v1439 = vpop.f32.mrb[0].mxu0
        %v1440 = vadd.f32 0.0, %v1439
        %v1441 = vpop.f32.mrb[0].mxu0
        %1442 = vmatprep.mubr.f32.mxu0 0.0
        %1443 = vmatmul.mubr.f32.gmra.mrb[0].mxu0 %v1313
        %v1444 = vpop.f32.mrb[0].mxu0
        %v1445 = vadd.f32 0.0, %v1444
        %v1446 = vpop.f32.mrb[0].mxu0
        %1447 = vmatprep.mubr.f32.mxu0 0.0
        %1448 = vmatmul.mubr.f32.gmra.mrb[0].mxu0 %v1316
        %v1449 = vpop.f32.mrb[0].mxu0
        %v1450 = vadd.f32 0.0, %v1449
        %v1451 = vpop.f32.mrb[0].mxu0
        %1452 = vmatprep.mubr.f32.mxu0 0.0
        %1453 = vmatmul.mubr.f32.gmra.mrb[0].mxu0 %v1319
        %v1454 = vpop.f32.mrb[0].mxu0
        %v1455 = vadd.f32 0.0, %v1454
        %v1456 = vpop.f32.mrb[0].mxu0
        %1457 = vmatprep.mubr.f32.mxu0 0.0
        %1458 = vmatmul.mubr.f32.gmra.mrb[0].mxu0 %v1322
        %v1459 = vpop.f32.mrb[0].mxu0
        %v1460 = vadd.f32 0.0, %v1459
        %v1461 = vpop.f32.mrb[0].mxu0
        %1462 = vmatprep.mubr.f32.mxu0 0.0
        %1463 = vmatmul.mubr.f32.gmra.mrb[0].mxu0 %v1325
        %v1464 = vpop.f32.mrb[0].mxu0
        %v1465 = vadd.f32 0.0, %v1464
        %v1466 = vpop.f32.mrb[0].mxu0
        %1467 = vmatprep.mubr.f32.mxu0 0.0
        %1468 = vmatmul.mubr.f32.gmra.mrb[0].mxu0 %v1328
        %v1469 = vpop.f32.mrb[0].mxu0
        %v1470 = vadd.f32 0.0, %v1469
        %v1471 = vpop.f32.mrb[0].mxu0
        %1472 = vmatprep.mubr.f32.mxu0 0.0
        %1473 = vmatmul.mubr.f32.gmra.mrb[0].mxu0 %v1331
        %v1474 = vpop.f32.mrb[0].mxu0
        %v1475 = vadd.f32 0.0, %v1474
        %v1476 = vpop.f32.mrb[0].mxu0
        %1477 = vdwg.mxu0
        %v1478 = vsel %vm649, %v1400, -inf
        %1479 = vmax.xlane.f32.xlu0 %v1478
        %v1480 = vpop.xlane.xlu0 %1479
        %v1481 = vsel %vm649, %v1405, -inf
        %1482 = vmax.xlane.f32.xlu0 %v1481
        %v1483 = vpop.xlane.xlu0 %1482
        %v1484 = vsel %vm649, %v1410, -inf
        %1485 = vmax.xlane.f32.xlu0 %v1484
        %v1486 = vpop.xlane.xlu0 %1485
        %v1487 = vsel %vm649, %v1415, -inf
        %1488 = vmax.xlane.f32.xlu0 %v1487
        %v1489 = vpop.xlane.xlu0 %1488
        %v1490 = vsel %vm649, %v1420, -inf
        %1491 = vmax.xlane.f32.xlu0 %v1490
        %v1492 = vpop.xlane.xlu0 %1491
        %v1493 = vsel %vm649, %v1425, -inf
        %1494 = vmax.xlane.f32.xlu0 %v1493
        %v1495 = vpop.xlane.xlu0 %1494
        %v1496 = vsel %vm649, %v1430, -inf
        %1497 = vmax.xlane.f32.xlu0 %v1496
        %v1498 = vpop.xlane.xlu0 %1497
        %v1499 = vsel %vm649, %v1435, -inf
        %1500 = vmax.xlane.f32.xlu0 %v1499
        %v1501 = vpop.xlane.xlu0 %1500
        %v1502 = vsel %vm649, %v1440, -inf
        %1503 = vmax.xlane.f32.xlu0 %v1502
        %v1504 = vpop.xlane.xlu0 %1503
        %v1505 = vsel %vm649, %v1445, -inf
        %1506 = vmax.xlane.f32.xlu0 %v1505
        %v1507 = vpop.xlane.xlu0 %1506
        %v1508 = vsel %vm649, %v1450, -inf
        %1509 = vmax.xlane.f32.xlu0 %v1508
        %v1510 = vpop.xlane.xlu0 %1509
        %v1511 = vsel %vm649, %v1455, -inf
        %1512 = vmax.xlane.f32.xlu0 %v1511
        %v1513 = vpop.xlane.xlu0 %1512
        %v1514 = vsel %vm649, %v1460, -inf
        %1515 = vmax.xlane.f32.xlu0 %v1514
        %v1516 = vpop.xlane.xlu0 %1515
        %v1517 = vsel %vm649, %v1465, -inf
        %1518 = vmax.xlane.f32.xlu0 %v1517
        %v1519 = vpop.xlane.xlu0 %1518
        %v1520 = vsel %vm649, %v1470, -inf
        %1521 = vmax.xlane.f32.xlu0 %v1520
        %v1522 = vpop.xlane.xlu0 %1521
        %v1523 = vsel %vm649, %v1475, -inf
        %1524 = vmax.xlane.f32.xlu0 %v1523
        %v1525 = vpop.xlane.xlu0 %1524
        %v1526 = vsub.f32 %v1400, %v1480
        %v1527 = vsub.f32 %v1405, %v1483
        %v1528 = vsub.f32 %v1410, %v1486
        %v1529 = vsub.f32 %v1415, %v1489
        %v1530 = vsub.f32 %v1420, %v1492
        %v1531 = vsub.f32 %v1425, %v1495
        %v1532 = vsub.f32 %v1430, %v1498
        %v1533 = vsub.f32 %v1435, %v1501
        %v1534 = vsub.f32 %v1440, %v1504
        %v1535 = vsub.f32 %v1445, %v1507
        %v1536 = vsub.f32 %v1450, %v1510
        %v1537 = vsub.f32 %v1455, %v1513
        %v1538 = vsub.f32 %v1460, %v1516
        %v1539 = vsub.f32 %v1465, %v1519
        %v1540 = vsub.f32 %v1470, %v1522
        %v1541 = vsub.f32 %v1475, %v1525
        %v1542 = vmul.f32 %v1526, 1.442695
        %v1543 = vpow.pop %v1542
        %v1544 = vmul.f32 %v1527, 1.442695
        %v1545 = vpow.pop %v1544
        %v1546 = vmul.f32 %v1528, 1.442695
        %v1547 = vpow.pop %v1546
        %v1548 = vmul.f32 %v1529, 1.442695
        %v1549 = vpow.pop %v1548
        %v1550 = vmul.f32 %v1530, 1.442695
        %v1551 = vpow.pop %v1550
        %v1552 = vmul.f32 %v1531, 1.442695
        %v1553 = vpow.pop %v1552
        %v1554 = vmul.f32 %v1532, 1.442695
        %v1555 = vpow.pop %v1554
        %v1556 = vmul.f32 %v1533, 1.442695
        %v1557 = vpow.pop %v1556
        %v1558 = vmul.f32 %v1534, 1.442695
        %v1559 = vpow.pop %v1558
        %v1560 = vmul.f32 %v1535, 1.442695
        %v1561 = vpow.pop %v1560
        %v1562 = vmul.f32 %v1536, 1.442695
        %v1563 = vpow.pop %v1562
        %v1564 = vmul.f32 %v1537, 1.442695
        %v1565 = vpow.pop %v1564
        %v1566 = vmul.f32 %v1538, 1.442695
        %v1567 = vpow.pop %v1566
        %v1568 = vmul.f32 %v1539, 1.442695
        %v1569 = vpow.pop %v1568
        %v1570 = vmul.f32 %v1540, 1.442695
        %v1571 = vpow.pop %v1570
        %v1572 = vmul.f32 %v1541, 1.442695
        %v1573 = vpow.pop %v1572
        %v1574 = vsel %vm649, %v1543, 0.0
        %1575 = vadd.xlane.f32.xlu0 %v1574
        %v1576 = vpop.xlane.xlu0 %1575
        %v1577 = vsel %vm649, %v1545, 0.0
        %1578 = vadd.xlane.f32.xlu0 %v1577
        %v1579 = vpop.xlane.xlu0 %1578
        %v1580 = vsel %vm649, %v1547, 0.0
        %1581 = vadd.xlane.f32.xlu0 %v1580
        %v1582 = vpop.xlane.xlu0 %1581
        %v1583 = vsel %vm649, %v1549, 0.0
        %1584 = vadd.xlane.f32.xlu0 %v1583
        %v1585 = vpop.xlane.xlu0 %1584
        %v1586 = vsel %vm649, %v1551, 0.0
        %1587 = vadd.xlane.f32.xlu0 %v1586
        %v1588 = vpop.xlane.xlu0 %1587
        %v1589 = vsel %vm649, %v1553, 0.0
        %1590 = vadd.xlane.f32.xlu0 %v1589
        %v1591 = vpop.xlane.xlu0 %1590
        %v1592 = vsel %vm649, %v1555, 0.0
        %1593 = vadd.xlane.f32.xlu0 %v1592
        %v1594 = vpop.xlane.xlu0 %1593
        %v1595 = vsel %vm649, %v1557, 0.0
        %1596 = vadd.xlane.f32.xlu0 %v1595
        %v1597 = vpop.xlane.xlu0 %1596
        %v1598 = vsel %vm649, %v1559, 0.0
        %1599 = vadd.xlane.f32.xlu0 %v1598
        %v1600 = vpop.xlane.xlu0 %1599
        %v1601 = vsel %vm649, %v1561, 0.0
        %1602 = vadd.xlane.f32.xlu0 %v1601
        %v1603 = vpop.xlane.xlu0 %1602
        %v1604 = vsel %vm649, %v1563, 0.0
        %1605 = vadd.xlane.f32.xlu0 %v1604
        %v1606 = vpop.xlane.xlu0 %1605
        %v1607 = vsel %vm649, %v1565, 0.0
        %1608 = vadd.xlane.f32.xlu0 %v1607
        %v1609 = vpop.xlane.xlu0 %1608
        %v1610 = vsel %vm649, %v1567, 0.0
        %1611 = vadd.xlane.f32.xlu0 %v1610
        %v1612 = vpop.xlane.xlu0 %1611
        %v1613 = vsel %vm649, %v1569, 0.0
        %1614 = vadd.xlane.f32.xlu0 %v1613
        %v1615 = vpop.xlane.xlu0 %1614
        %v1616 = vsel %vm649, %v1571, 0.0
        %1617 = vadd.xlane.f32.xlu0 %v1616
        %v1618 = vpop.xlane.xlu0 %1617
        %v1619 = vsel %vm649, %v1573, 0.0
        %1620 = vadd.xlane.f32.xlu0 %v1619
        %v1621 = vpop.xlane.xlu0 %1620
        %v1622 = vrcp.pop %v1576
        %v1623 = vrcp.pop %v1579
        %v1624 = vrcp.pop %v1582
        %v1625 = vrcp.pop %v1585
        %v1626 = vrcp.pop %v1588
        %v1627 = vrcp.pop %v1591
        %v1628 = vrcp.pop %v1594
        %v1629 = vrcp.pop %v1597
        %v1630 = vrcp.pop %v1600
        %v1631 = vrcp.pop %v1603
        %v1632 = vrcp.pop %v1606
        %v1633 = vrcp.pop %v1609
        %v1634 = vrcp.pop %v1612
        %v1635 = vrcp.pop %v1615
        %v1636 = vrcp.pop %v1618
        %v1637 = vrcp.pop %v1621
        %v1638 = vmul.f32 %v1543, %v1622
        %v1639 = vmul.f32 %v1545, %v1623
        %v1640 = vmul.f32 %v1547, %v1624
        %v1641 = vmul.f32 %v1549, %v1625
        %v1642 = vmul.f32 %v1551, %v1626
        %v1643 = vmul.f32 %v1553, %v1627
        %v1644 = vmul.f32 %v1555, %v1628
        %v1645 = vmul.f32 %v1557, %v1629
        %v1646 = vmul.f32 %v1559, %v1630
        %v1647 = vmul.f32 %v1561, %v1631
        %v1648 = vmul.f32 %v1563, %v1632
        %v1649 = vmul.f32 %v1565, %v1633
        %v1650 = vmul.f32 %v1567, %v1634
        %v1651 = vmul.f32 %v1569, %v1635
        %v1652 = vmul.f32 %v1571, %v1636
        %v1653 = vmul.f32 %v1573, %v1637
        %v1655 = vsel %vm649, %v1638, 0
        %v1658 = vsel %vm649, %v1639, 0
        %v1661 = vsel %vm649, %v1640, 0
        %v1664 = vsel %vm649, %v1641, 0
        %v1667 = vsel %vm649, %v1642, 0
        %v1670 = vsel %vm649, %v1643, 0
        %v1673 = vsel %vm649, %v1644, 0
        %v1676 = vsel %vm649, %v1645, 0
        %v1679 = vsel %vm649, %v1646, 0
        %v1682 = vsel %vm649, %v1647, 0
        %v1685 = vsel %vm649, %v1648, 0
        %v1688 = vsel %vm649, %v1649, 0
        %v1691 = vsel %vm649, %v1650, 0
        %v1694 = vsel %vm649, %v1651, 0
        %v1697 = vsel %vm649, %v1652, 0
        %v1700 = vsel %vm649, %v1653, 0
        %1702 = vmatprep.subr.mxu0 0.0
        %1703 = vmatpush1.msra.mxu0 %v659
        %1704 = vmatprep.subr.mxu0 0.0
        %1705 = vmatpush1.msra.mxu0 0.0
        %1706 = vmatprep.subr.mxu0 0.0
        %1707 = vmatpush1.msra.mxu0 0.0
        %1708 = vmatprep.subr.mxu0 0.0
        %1709 = vmatpush1.msra.mxu0 0.0
        %1710 = vmatprep.subr.mxu0 0.0
        %1711 = vmatpush1.msra.mxu0 0.0
        %1712 = vmatprep.subr.mxu0 0.0
        %1713 = vmatpush1.msra.mxu0 0.0
        %1714 = vmatprep.subr.mxu0 0.0
        %1715 = vmatpush1.msra.mxu0 0.0
        %1716 = vmatprep.subr.mxu0 0.0
        %1717 = vmatpush1.msra.mxu0 0.0
        %1718 = vmatprep.subr.mxu0 0.0
        %1719 = vmatpush1.msra.mxu0 0.0
        %1720 = vmatprep.subr.mxu0 0.0
        %1721 = vmatpush1.msra.mxu0 0.0
        %1722 = vmatprep.subr.mxu0 0.0
        %1723 = vmatpush1.msra.mxu0 0.0
        %1724 = vmatprep.subr.mxu0 0.0
        %1725 = vmatpush1.msra.mxu0 0.0
        %1726 = vmatprep.subr.mxu0 0.0
        %1727 = vmatpush1.msra.mxu0 0.0
        %1728 = vmatprep.subr.mxu0 0.0
        %1729 = vmatpush1.msra.mxu0 0.0
        %1730 = vmatprep.subr.mxu0 0.0
        %1731 = vmatpush1.msra.mxu0 0.0
        %1732 = vmatprep.subr.mxu0 0.0
        %1733 = vmatpush1.msra.mxu0 0.0
        %1734 = vmatprep.subr.mxu0 0.0
        %1735 = vmatpush1.msra.mxu0 0.0
        %1736 = vmatprep.subr.mxu0 0.0
        %1737 = vmatpush1.msra.mxu0 0.0
        %1738 = vmatprep.subr.mxu0 0.0
        %1739 = vmatpush1.msra.mxu0 0.0
        %1740 = vmatprep.subr.mxu0 0.0
        %1741 = vmatpush1.msra.mxu0 0.0
        %1742 = vmatprep.subr.mxu0 0.0
        %1743 = vmatpush1.msra.mxu0 0.0
        %1744 = vmatprep.subr.mxu0 0.0
        %1745 = vmatpush1.msra.mxu0 0.0
        %1746 = vmatprep.subr.mxu0 0.0
        %1747 = vmatpush1.msra.mxu0 0.0
        %1748 = vmatprep.subr.mxu0 0.0
        %1749 = vmatpush1.msra.mxu0 0.0
        %1750 = vmatprep.subr.mxu0 0.0
        %1751 = vmatpush1.msra.mxu0 0.0
        %1752 = vmatprep.subr.mxu0 0.0
        %1753 = vmatpush1.msra.mxu0 0.0
        %1754 = vmatprep.subr.mxu0 0.0
        %1755 = vmatpush1.msra.mxu0 0.0
        %1756 = vmatprep.subr.mxu0 0.0
        %1757 = vmatpush1.msra.mxu0 0.0
        %1758 = vmatprep.subr.mxu0 0.0
        %1759 = vmatpush1.msra.mxu0 0.0
        %1760 = vmatprep.subr.mxu0 0.0
        %1761 = vmatpush1.msra.mxu0 0.0
        %1762 = vmatprep.subr.mxu0 0.0
        %1763 = vmatpush1.msra.mxu0 0.0
        %1764 = vmatprep.subr.mxu0 0.0
        %1765 = vmatpush1.msra.mxu0 0.0
        %1766 = vmatprep.mubr.f32.mxu0 0.0
        %1767 = vmatmul.mubr.f32.gmra.mrb[0].mxu0 %v1655
        %v1768 = vpop.f32.mrb[0].mxu0
        %v1769 = vadd.f32 0.0, %v1768
        %v1770 = vpop.f32.mrb[0].mxu0
        %1771 = vmatprep.mubr.f32.mxu0 0.0
        %1772 = vmatmul.mubr.f32.gmra.mrb[0].mxu0 %v1658
        %v1773 = vpop.f32.mrb[0].mxu0
        %v1774 = vadd.f32 0.0, %v1773
        %v1775 = vpop.f32.mrb[0].mxu0
        %1776 = vmatprep.mubr.f32.mxu0 0.0
        %1777 = vmatmul.mubr.f32.gmra.mrb[0].mxu0 %v1661
        %v1778 = vpop.f32.mrb[0].mxu0
        %v1779 = vadd.f32 0.0, %v1778
        %v1780 = vpop.f32.mrb[0].mxu0
        %1781 = vmatprep.mubr.f32.mxu0 0.0
        %1782 = vmatmul.mubr.f32.gmra.mrb[0].mxu0 %v1664
        %v1783 = vpop.f32.mrb[0].mxu0
        %v1784 = vadd.f32 0.0, %v1783
        %v1785 = vpop.f32.mrb[0].mxu0
        %1786 = vmatprep.mubr.f32.mxu0 0.0
        %1787 = vmatmul.mubr.f32.gmra.mrb[0].mxu0 %v1667
        %v1788 = vpop.f32.mrb[0].mxu0
        %v1789 = vadd.f32 0.0, %v1788
        %v1790 = vpop.f32.mrb[0].mxu0
        %1791 = vmatprep.mubr.f32.mxu0 0.0
        %1792 = vmatmul.mubr.f32.gmra.mrb[0].mxu0 %v1670
        %v1793 = vpop.f32.mrb[0].mxu0
        %v1794 = vadd.f32 0.0, %v1793
        %v1795 = vpop.f32.mrb[0].mxu0
        %1796 = vmatprep.mubr.f32.mxu0 0.0
        %1797 = vmatmul.mubr.f32.gmra.mrb[0].mxu0 %v1673
        %v1798 = vpop.f32.mrb[0].mxu0
        %v1799 = vadd.f32 0.0, %v1798
        %v1800 = vpop.f32.mrb[0].mxu0
        %1801 = vmatprep.mubr.f32.mxu0 0.0
        %1802 = vmatmul.mubr.f32.gmra.mrb[0].mxu0 %v1676
        %v1803 = vpop.f32.mrb[0].mxu0
        %v1804 = vadd.f32 0.0, %v1803
        %v1805 = vpop.f32.mrb[0].mxu0
        %1806 = vmatprep.mubr.f32.mxu0 0.0
        %1807 = vmatmul.mubr.f32.gmra.mrb[0].mxu0 %v1679
        %v1808 = vpop.f32.mrb[0].mxu0
        %v1809 = vadd.f32 0.0, %v1808
        %v1810 = vpop.f32.mrb[0].mxu0
        %1811 = vmatprep.mubr.f32.mxu0 0.0
        %1812 = vmatmul.mubr.f32.gmra.mrb[0].mxu0 %v1682
        %v1813 = vpop.f32.mrb[0].mxu0
        %v1814 = vadd.f32 0.0, %v1813
        %v1815 = vpop.f32.mrb[0].mxu0
        %1816 = vmatprep.mubr.f32.mxu0 0.0
        %1817 = vmatmul.mubr.f32.gmra.mrb[0].mxu0 %v1685
        %v1818 = vpop.f32.mrb[0].mxu0
        %v1819 = vadd.f32 0.0, %v1818
        %v1820 = vpop.f32.mrb[0].mxu0
        %1821 = vmatprep.mubr.f32.mxu0 0.0
        %1822 = vmatmul.mubr.f32.gmra.mrb[0].mxu0 %v1688
        %v1823 = vpop.f32.mrb[0].mxu0
        %v1824 = vadd.f32 0.0, %v1823
        %v1825 = vpop.f32.mrb[0].mxu0
        %1826 = vmatprep.mubr.f32.mxu0 0.0
        %1827 = vmatmul.mubr.f32.gmra.mrb[0].mxu0 %v1691
        %v1828 = vpop.f32.mrb[0].mxu0
        %v1829 = vadd.f32 0.0, %v1828
        %v1830 = vpop.f32.mrb[0].mxu0
        %1831 = vmatprep.mubr.f32.mxu0 0.0
        %1832 = vmatmul.mubr.f32.gmra.mrb[0].mxu0 %v1694
        %v1833 = vpop.f32.mrb[0].mxu0
        %v1834 = vadd.f32 0.0, %v1833
        %v1835 = vpop.f32.mrb[0].mxu0
        %1836 = vmatprep.mubr.f32.mxu0 0.0
        %1837 = vmatmul.mubr.f32.gmra.mrb[0].mxu0 %v1697
        %v1838 = vpop.f32.mrb[0].mxu0
        %v1839 = vadd.f32 0.0, %v1838
        %v1840 = vpop.f32.mrb[0].mxu0
        %1841 = vmatprep.mubr.f32.mxu0 0.0
        %1842 = vmatmul.mubr.f32.gmra.mrb[0].mxu0 %v1700
        %v1843 = vpop.f32.mrb[0].mxu0
        %v1844 = vadd.f32 0.0, %v1843
        %v1845 = vpop.f32.mrb[0].mxu0
        %1846 = vdwg.mxu0
        %v1847 = vmul.f32 %v1769, %v548
        %v1848 = vmul.f32 %v1774, %v553
        %v1849 = vmul.f32 %v1779, %v558
        %v1850 = vmul.f32 %v1784, %v563
        %v1851 = vmul.f32 %v1789, %v568
        %v1852 = vmul.f32 %v1794, %v573
        %v1853 = vmul.f32 %v1799, %v578
        %v1854 = vmul.f32 %v1804, %v583
        %v1855 = vmul.f32 %v1809, %v588
        %v1856 = vmul.f32 %v1814, %v593
        %v1857 = vmul.f32 %v1819, %v598
        %v1858 = vmul.f32 %v1824, %v603
        %v1859 = vmul.f32 %v1829, %v608
        %v1860 = vmul.f32 %v1834, %v613
        %v1861 = vmul.f32 %v1839, %v618
        %v1862 = vmul.f32 %v1844, %v623
        %1863 = vmatprep.subr.mxu0 0.0
        %1864 = vmatpush1.msra.mxu0 %v1847
        %1865 = vmatprep.subr.mxu0 0.0
        %1866 = vmatpush1.msra.mxu0 %v1848
        %1867 = vmatprep.subr.mxu0 0.0
        %1868 = vmatpush1.msra.mxu0 %v1849
        %1869 = vmatprep.subr.mxu0 0.0
        %1870 = vmatpush1.msra.mxu0 %v1850
        %1871 = vmatprep.subr.mxu0 0.0
        %1872 = vmatpush1.msra.mxu0 %v1851
        %1873 = vmatprep.subr.mxu0 0.0
        %1874 = vmatpush1.msra.mxu0 %v1852
        %1875 = vmatprep.subr.mxu0 0.0
        %1876 = vmatpush1.msra.mxu0 %v1853
        %1877 = vmatprep.subr.mxu0 0.0
        %1878 = vmatpush1.msra.mxu0 %v1854
        %1879 = vmatprep.subr.mxu0 0.0
        %1880 = vmatpush1.msra.mxu0 %v1855
        %1881 = vmatprep.subr.mxu0 0.0
        %1882 = vmatpush1.msra.mxu0 %v1856
        %1883 = vmatprep.subr.mxu0 0.0
        %1884 = vmatpush1.msra.mxu0 %v1857
        %1885 = vmatprep.subr.mxu0 0.0
        %1886 = vmatpush1.msra.mxu0 %v1858
        %1887 = vmatprep.subr.mxu0 0.0
        %1888 = vmatpush1.msra.mxu0 %v1859
        %1889 = vmatprep.subr.mxu0 0.0
        %1890 = vmatpush1.msra.mxu0 %v1860
        %1891 = vmatprep.subr.mxu0 0.0
        %1892 = vmatpush1.msra.mxu0 %v1861
        %1893 = vmatprep.subr.mxu0 0.0
        %1894 = vmatpush1.msra.mxu0 %v1862
        %1895 = vmatprep.subr.mxu0 0.0
        %1896 = vmatpush1.msra.mxu0 0.0
        %1897 = vmatprep.subr.mxu0 0.0
        %1898 = vmatpush1.msra.mxu0 0.0
        %1899 = vmatprep.subr.mxu0 0.0
        %1900 = vmatpush1.msra.mxu0 0.0
        %1901 = vmatprep.subr.mxu0 0.0
        %1902 = vmatpush1.msra.mxu0 0.0
        %1903 = vmatprep.subr.mxu0 0.0
        %1904 = vmatpush1.msra.mxu0 0.0
        %1905 = vmatprep.subr.mxu0 0.0
        %1906 = vmatpush1.msra.mxu0 0.0
        %1907 = vmatprep.subr.mxu0 0.0
        %1908 = vmatpush1.msra.mxu0 0.0
        %1909 = vmatprep.subr.mxu0 0.0
        %1910 = vmatpush1.msra.mxu0 0.0
        %1911 = vmatprep.subr.mxu0 0.0
        %1912 = vmatpush1.msra.mxu0 0.0
        %1913 = vmatprep.subr.mxu0 0.0
        %1914 = vmatpush1.msra.mxu0 0.0
        %1915 = vmatprep.subr.mxu0 0.0
        %1916 = vmatpush1.msra.mxu0 0.0
        %1917 = vmatprep.subr.mxu0 0.0
        %1918 = vmatpush1.msra.mxu0 0.0
        %1919 = vmatprep.subr.mxu0 0.0
        %1920 = vmatpush1.msra.mxu0 0.0
        %1921 = vmatprep.subr.mxu0 0.0
        %1922 = vmatpush1.msra.mxu0 0.0
        %1923 = vmatprep.subr.mxu0 0.0
        %1924 = vmatpush1.msra.mxu0 0.0
        %1925 = vmatprep.subr.mxu0 0.0
        %1926 = vmatpush1.msra.mxu0 0.0
        %1927 = vmatprep.mubr.f32.mxu0 0.0
        %1928 = vmatmul.mubr.f32.gmra.mrb[0].mxu0 %v647
        %v1929 = vpop.f32.mrb[0].mxu0
        %v1930 = vadd.f32 0.0, %v1929
        %v1931 = vpop.f32.mrb[0].mxu0
        %1932 = vmatprep.mubr.f32.mxu0 0.0
        %1933 = vmatmul.mubr.f32.gmra.mrb[0].mxu0 %v648
        %v1934 = vpop.f32.mrb[0].mxu0
        %v1935 = vadd.f32 0.0, %v1934
        %v1936 = vpop.f32.mrb[0].mxu0
        %1937 = vdwg.mxu0
        %v1938 = vmul.f32 %v1930, %v1930
        %v1939 = vmul.f32 %v1935, %v1935
        %v1941 = vsel %vm899, %v1938, 0
        %v1944 = vsel %vm899, %v1939, 0
        %1946 = vmatprep.subr.mxu0 0.0
        %1947 = vmatpush1.msra.mxu0 %v626
        %1948 = vmatprep.subr.mxu0 0.0
        %1949 = vmatpush1.msra.mxu0 %v627
        %1950 = vmatprep.subr.mxu0 0.0
        %1951 = vmatpush1.msra.mxu0 %v628
        %1952 = vmatprep.subr.mxu0 0.0
        %1953 = vmatpush1.msra.mxu0 %v629
        %1954 = vmatprep.subr.mxu0 0.0
        %1955 = vmatpush1.msra.mxu0 0.0
        %1956 = vmatprep.subr.mxu0 0.0
        %1957 = vmatpush1.msra.mxu0 0.0
        %1958 = vmatprep.subr.mxu0 0.0
        %1959 = vmatpush1.msra.mxu0 0.0
        %1960 = vmatprep.subr.mxu0 0.0
        %1961 = vmatpush1.msra.mxu0 0.0
        %1962 = vmatprep.subr.mxu0 0.0
        %1963 = vmatpush1.msra.mxu0 0.0
        %1964 = vmatprep.subr.mxu0 0.0
        %1965 = vmatpush1.msra.mxu0 0.0
        %1966 = vmatprep.subr.mxu0 0.0
        %1967 = vmatpush1.msra.mxu0 0.0
        %1968 = vmatprep.subr.mxu0 0.0
        %1969 = vmatpush1.msra.mxu0 0.0
        %1970 = vmatprep.subr.mxu0 0.0
        %1971 = vmatpush1.msra.mxu0 0.0
        %1972 = vmatprep.subr.mxu0 0.0
        %1973 = vmatpush1.msra.mxu0 0.0
        %1974 = vmatprep.subr.mxu0 0.0
        %1975 = vmatpush1.msra.mxu0 0.0
        %1976 = vmatprep.subr.mxu0 0.0
        %1977 = vmatpush1.msra.mxu0 0.0
        %1978 = vmatprep.subr.mxu0 0.0
        %1979 = vmatpush1.msra.mxu0 0.0
        %1980 = vmatprep.subr.mxu0 0.0
        %1981 = vmatpush1.msra.mxu0 0.0
        %1982 = vmatprep.subr.mxu0 0.0
        %1983 = vmatpush1.msra.mxu0 0.0
        %1984 = vmatprep.subr.mxu0 0.0
        %1985 = vmatpush1.msra.mxu0 0.0
        %1986 = vmatprep.subr.mxu0 0.0
        %1987 = vmatpush1.msra.mxu0 0.0
        %1988 = vmatprep.subr.mxu0 0.0
        %1989 = vmatpush1.msra.mxu0 0.0
        %1990 = vmatprep.subr.mxu0 0.0
        %1991 = vmatpush1.msra.mxu0 0.0
        %1992 = vmatprep.subr.mxu0 0.0
        %1993 = vmatpush1.msra.mxu0 0.0
        %1994 = vmatprep.subr.mxu0 0.0
        %1995 = vmatpush1.msra.mxu0 0.0
        %1996 = vmatprep.subr.mxu0 0.0
        %1997 = vmatpush1.msra.mxu0 0.0
        %1998 = vmatprep.subr.mxu0 0.0
        %1999 = vmatpush1.msra.mxu0 0.0
        %2000 = vmatprep.subr.mxu0 0.0
        %2001 = vmatpush1.msra.mxu0 0.0
        %2002 = vmatprep.subr.mxu0 0.0
        %2003 = vmatpush1.msra.mxu0 0.0
        %2004 = vmatprep.subr.mxu0 0.0
        %2005 = vmatpush1.msra.mxu0 0.0
        %2006 = vmatprep.subr.mxu0 0.0
        %2007 = vmatpush1.msra.mxu0 0.0
        %2008 = vmatprep.subr.mxu0 0.0
        %2009 = vmatpush1.msra.mxu0 0.0
        %2010 = vmatprep.mubr.f32.mxu0 0.0
        %2011 = vmatmul.mubr.f32.gmra.mrb[0].mxu0 %v1941
        %v2012 = vpop.f32.mrb[0].mxu0
        %v2013 = vadd.f32 0.0, %v2012
        %v2014 = vpop.f32.mrb[0].mxu0
        %2015 = vmatprep.mubr.f32.mxu0 0.0
        %2016 = vmatmul.mubr.f32.gmra.mrb[0].mxu0 %v1944
        %v2017 = vpop.f32.mrb[0].mxu0
        %v2018 = vadd.f32 0.0, %v2017
        %v2019 = vpop.f32.mrb[0].mxu0
        %2020 = vdwg.mxu0
        %v2021 = vadd.f32 %v2013, 1.0
        %v2022 = vadd.f32 %v2018, 1.0
        %v2023 = vrcp.pop %v2021
        %v2024 = vrcp.pop %v2022
        %v2025 = vmul.f32 %v2013, %v2023
        %v2026 = vmul.f32 %v2018, %v2024
        %v2027 = vadd.f32 %v2013, 1e-09
        %v2028 = vadd.f32 %v2018, 1e-09
        %v2029 = vrsqrt.pop %v2027
        %v2030 = vrsqrt.pop %v2028
        %v2031 = vmul.f32 %v2025, %v2029
        %v2032 = vmul.f32 %v2026, %v2030
        %v2034 = vsel %vm649, %v2031, 0
        %v2037 = vsel %vm649, %v2032, 0
        %2039 = vmatprep.subr.mxu0 0.0
        %2040 = vmatpush1.msra.mxu0 %v659
        %2041 = vmatprep.subr.mxu0 0.0
        %2042 = vmatpush1.msra.mxu0 0.0
        %2043 = vmatprep.subr.mxu0 0.0
        %2044 = vmatpush1.msra.mxu0 0.0
        %2045 = vmatprep.subr.mxu0 0.0
        %2046 = vmatpush1.msra.mxu0 0.0
        %2047 = vmatprep.subr.mxu0 0.0
        %2048 = vmatpush1.msra.mxu0 0.0
        %2049 = vmatprep.subr.mxu0 0.0
        %2050 = vmatpush1.msra.mxu0 0.0
        %2051 = vmatprep.subr.mxu0 0.0
        %2052 = vmatpush1.msra.mxu0 0.0
        %2053 = vmatprep.subr.mxu0 0.0
        %2054 = vmatpush1.msra.mxu0 0.0
        %2055 = vmatprep.subr.mxu0 0.0
        %2056 = vmatpush1.msra.mxu0 0.0
        %2057 = vmatprep.subr.mxu0 0.0
        %2058 = vmatpush1.msra.mxu0 0.0
        %2059 = vmatprep.subr.mxu0 0.0
        %2060 = vmatpush1.msra.mxu0 0.0
        %2061 = vmatprep.subr.mxu0 0.0
        %2062 = vmatpush1.msra.mxu0 0.0
        %2063 = vmatprep.subr.mxu0 0.0
        %2064 = vmatpush1.msra.mxu0 0.0
        %2065 = vmatprep.subr.mxu0 0.0
        %2066 = vmatpush1.msra.mxu0 0.0
        %2067 = vmatprep.subr.mxu0 0.0
        %2068 = vmatpush1.msra.mxu0 0.0
        %2069 = vmatprep.subr.mxu0 0.0
        %2070 = vmatpush1.msra.mxu0 0.0
        %2071 = vmatprep.subr.mxu0 0.0
        %2072 = vmatpush1.msra.mxu0 0.0
        %2073 = vmatprep.subr.mxu0 0.0
        %2074 = vmatpush1.msra.mxu0 0.0
        %2075 = vmatprep.subr.mxu0 0.0
        %2076 = vmatpush1.msra.mxu0 0.0
        %2077 = vmatprep.subr.mxu0 0.0
        %2078 = vmatpush1.msra.mxu0 0.0
        %2079 = vmatprep.subr.mxu0 0.0
        %2080 = vmatpush1.msra.mxu0 0.0
        %2081 = vmatprep.subr.mxu0 0.0
        %2082 = vmatpush1.msra.mxu0 0.0
        %2083 = vmatprep.subr.mxu0 0.0
        %2084 = vmatpush1.msra.mxu0 0.0
        %2085 = vmatprep.subr.mxu0 0.0
        %2086 = vmatpush1.msra.mxu0 0.0
        %2087 = vmatprep.subr.mxu0 0.0
        %2088 = vmatpush1.msra.mxu0 0.0
        %2089 = vmatprep.subr.mxu0 0.0
        %2090 = vmatpush1.msra.mxu0 0.0
        %2091 = vmatprep.subr.mxu0 0.0
        %2092 = vmatpush1.msra.mxu0 0.0
        %2093 = vmatprep.subr.mxu0 0.0
        %2094 = vmatpush1.msra.mxu0 0.0
        %2095 = vmatprep.subr.mxu0 0.0
        %2096 = vmatpush1.msra.mxu0 0.0
        %2097 = vmatprep.subr.mxu0 0.0
        %2098 = vmatpush1.msra.mxu0 0.0
        %2099 = vmatprep.subr.mxu0 0.0
        %2100 = vmatpush1.msra.mxu0 0.0
        %2101 = vmatprep.subr.mxu0 0.0
        %2102 = vmatpush1.msra.mxu0 0.0
        %2103 = vmatprep.mubr.f32.mxu0 0.0
        %2104 = vmatmul.mubr.f32.gmra.mrb[0].mxu0 %v2034
        %v2105 = vpop.f32.mrb[0].mxu0
        %v2106 = vadd.f32 0.0, %v2105
        %v2107 = vpop.f32.mrb[0].mxu0
        %2108 = vmatprep.mubr.f32.mxu0 0.0
        %2109 = vmatmul.mubr.f32.gmra.mrb[0].mxu0 %v2037
        %v2110 = vpop.f32.mrb[0].mxu0
        %v2111 = vadd.f32 0.0, %v2110
        %v2112 = vpop.f32.mrb[0].mxu0
        %2113 = vdwg.mxu0
        %v2114 = vmul.f32 %v2106, %v1930
        %v2115 = vmul.f32 %v2111, %v1935
        %2116 = vmatprep.subr.mxu0 0.0
        %2117 = vmatpush1.msra.mxu0 %v2114
        %2118 = vmatprep.subr.mxu0 0.0
        %2119 = vmatpush1.msra.mxu0 %v2115
        %2120 = vmatprep.subr.mxu0 0.0
        %2121 = vmatpush1.msra.mxu0 0.0
        %2122 = vmatprep.subr.mxu0 0.0
        %2123 = vmatpush1.msra.mxu0 0.0
        %2124 = vmatprep.subr.mxu0 0.0
        %2125 = vmatpush1.msra.mxu0 0.0
        %2126 = vmatprep.subr.mxu0 0.0
        %2127 = vmatpush1.msra.mxu0 0.0
        %2128 = vmatprep.subr.mxu0 0.0
        %2129 = vmatpush1.msra.mxu0 0.0
        %2130 = vmatprep.subr.mxu0 0.0
        %2131 = vmatpush1.msra.mxu0 0.0
        %2132 = vmatprep.subr.mxu0 0.0
        %2133 = vmatpush1.msra.mxu0 0.0
        %2134 = vmatprep.subr.mxu0 0.0
        %2135 = vmatpush1.msra.mxu0 0.0
        %2136 = vmatprep.subr.mxu0 0.0
        %2137 = vmatpush1.msra.mxu0 0.0
        %2138 = vmatprep.subr.mxu0 0.0
        %2139 = vmatpush1.msra.mxu0 0.0
        %2140 = vmatprep.subr.mxu0 0.0
        %2141 = vmatpush1.msra.mxu0 0.0
        %2142 = vmatprep.subr.mxu0 0.0
        %2143 = vmatpush1.msra.mxu0 0.0
        %2144 = vmatprep.subr.mxu0 0.0
        %2145 = vmatpush1.msra.mxu0 0.0
        %2146 = vmatprep.subr.mxu0 0.0
        %2147 = vmatpush1.msra.mxu0 0.0
        %2148 = vmatprep.subr.mxu0 0.0
        %2149 = vmatpush1.msra.mxu0 0.0
        %2150 = vmatprep.subr.mxu0 0.0
        %2151 = vmatpush1.msra.mxu0 0.0
        %2152 = vmatprep.subr.mxu0 0.0
        %2153 = vmatpush1.msra.mxu0 0.0
        %2154 = vmatprep.subr.mxu0 0.0
        %2155 = vmatpush1.msra.mxu0 0.0
        %2156 = vmatprep.subr.mxu0 0.0
        %2157 = vmatpush1.msra.mxu0 0.0
        %2158 = vmatprep.subr.mxu0 0.0
        %2159 = vmatpush1.msra.mxu0 0.0
        %2160 = vmatprep.subr.mxu0 0.0
        %2161 = vmatpush1.msra.mxu0 0.0
        %2162 = vmatprep.subr.mxu0 0.0
        %2163 = vmatpush1.msra.mxu0 0.0
        %2164 = vmatprep.subr.mxu0 0.0
        %2165 = vmatpush1.msra.mxu0 0.0
        %2166 = vmatprep.subr.mxu0 0.0
        %2167 = vmatpush1.msra.mxu0 0.0
        %2168 = vmatprep.subr.mxu0 0.0
        %2169 = vmatpush1.msra.mxu0 0.0
        %2170 = vmatprep.subr.mxu0 0.0
        %2171 = vmatpush1.msra.mxu0 0.0
        %2172 = vmatprep.subr.mxu0 0.0
        %2173 = vmatpush1.msra.mxu0 0.0
        %2174 = vmatprep.subr.mxu0 0.0
        %2175 = vmatpush1.msra.mxu0 0.0
        %2176 = vmatprep.subr.mxu0 0.0
        %2177 = vmatpush1.msra.mxu0 0.0
        %2178 = vmatprep.subr.mxu0 0.0
        %2179 = vmatpush1.msra.mxu0 0.0
        %2180 = vmatprep.mubr.f32.mxu0 0.0
        %2181 = vmatmul.mubr.f32.gmra.mrb[0].mxu0 %v1077
        %v2182 = vpop.f32.mrb[0].mxu0
        %v2183 = vadd.f32 0.0, %v2182
        %v2184 = vpop.f32.mrb[0].mxu0
        %2185 = vmatprep.mubr.f32.mxu0 0.0
        %2186 = vmatmul.mubr.f32.gmra.mrb[0].mxu0 %v1080
        %v2187 = vpop.f32.mrb[0].mxu0
        %v2188 = vadd.f32 0.0, %v2187
        %v2189 = vpop.f32.mrb[0].mxu0
        %2190 = vmatprep.mubr.f32.mxu0 0.0
        %2191 = vmatmul.mubr.f32.gmra.mrb[0].mxu0 %v1083
        %v2192 = vpop.f32.mrb[0].mxu0
        %v2193 = vadd.f32 0.0, %v2192
        %v2194 = vpop.f32.mrb[0].mxu0
        %2195 = vmatprep.mubr.f32.mxu0 0.0
        %2196 = vmatmul.mubr.f32.gmra.mrb[0].mxu0 %v1086
        %v2197 = vpop.f32.mrb[0].mxu0
        %v2198 = vadd.f32 0.0, %v2197
        %v2199 = vpop.f32.mrb[0].mxu0
        %2200 = vmatprep.mubr.f32.mxu0 0.0
        %2201 = vmatmul.mubr.f32.gmra.mrb[0].mxu0 %v1089
        %v2202 = vpop.f32.mrb[0].mxu0
        %v2203 = vadd.f32 0.0, %v2202
        %v2204 = vpop.f32.mrb[0].mxu0
        %2205 = vmatprep.mubr.f32.mxu0 0.0
        %2206 = vmatmul.mubr.f32.gmra.mrb[0].mxu0 %v1092
        %v2207 = vpop.f32.mrb[0].mxu0
        %v2208 = vadd.f32 0.0, %v2207
        %v2209 = vpop.f32.mrb[0].mxu0
        %2210 = vmatprep.mubr.f32.mxu0 0.0
        %2211 = vmatmul.mubr.f32.gmra.mrb[0].mxu0 %v1095
        %v2212 = vpop.f32.mrb[0].mxu0
        %v2213 = vadd.f32 0.0, %v2212
        %v2214 = vpop.f32.mrb[0].mxu0
        %2215 = vmatprep.mubr.f32.mxu0 0.0
        %2216 = vmatmul.mubr.f32.gmra.mrb[0].mxu0 %v1098
        %v2217 = vpop.f32.mrb[0].mxu0
        %v2218 = vadd.f32 0.0, %v2217
        %v2219 = vpop.f32.mrb[0].mxu0
        %2220 = vmatprep.mubr.f32.mxu0 0.0
        %2221 = vmatmul.mubr.f32.gmra.mrb[0].mxu0 %v1101
        %v2222 = vpop.f32.mrb[0].mxu0
        %v2223 = vadd.f32 0.0, %v2222
        %v2224 = vpop.f32.mrb[0].mxu0
        %2225 = vmatprep.mubr.f32.mxu0 0.0
        %2226 = vmatmul.mubr.f32.gmra.mrb[0].mxu0 %v1104
        %v2227 = vpop.f32.mrb[0].mxu0
        %v2228 = vadd.f32 0.0, %v2227
        %v2229 = vpop.f32.mrb[0].mxu0
        %2230 = vmatprep.mubr.f32.mxu0 0.0
        %2231 = vmatmul.mubr.f32.gmra.mrb[0].mxu0 %v1107
        %v2232 = vpop.f32.mrb[0].mxu0
        %v2233 = vadd.f32 0.0, %v2232
        %v2234 = vpop.f32.mrb[0].mxu0
        %2235 = vmatprep.mubr.f32.mxu0 0.0
        %2236 = vmatmul.mubr.f32.gmra.mrb[0].mxu0 %v1110
        %v2237 = vpop.f32.mrb[0].mxu0
        %v2238 = vadd.f32 0.0, %v2237
        %v2239 = vpop.f32.mrb[0].mxu0
        %2240 = vmatprep.mubr.f32.mxu0 0.0
        %2241 = vmatmul.mubr.f32.gmra.mrb[0].mxu0 %v1113
        %v2242 = vpop.f32.mrb[0].mxu0
        %v2243 = vadd.f32 0.0, %v2242
        %v2244 = vpop.f32.mrb[0].mxu0
        %2245 = vmatprep.mubr.f32.mxu0 0.0
        %2246 = vmatmul.mubr.f32.gmra.mrb[0].mxu0 %v1116
        %v2247 = vpop.f32.mrb[0].mxu0
        %v2248 = vadd.f32 0.0, %v2247
        %v2249 = vpop.f32.mrb[0].mxu0
        %2250 = vmatprep.mubr.f32.mxu0 0.0
        %2251 = vmatmul.mubr.f32.gmra.mrb[0].mxu0 %v1119
        %v2252 = vpop.f32.mrb[0].mxu0
        %v2253 = vadd.f32 0.0, %v2252
        %v2254 = vpop.f32.mrb[0].mxu0
        %2255 = vmatprep.mubr.f32.mxu0 0.0
        %2256 = vmatmul.mubr.f32.gmra.mrb[0].mxu0 %v1122
        %v2257 = vpop.f32.mrb[0].mxu0
        %v2258 = vadd.f32 0.0, %v2257
        %v2259 = vpop.f32.mrb[0].mxu0
        %2260 = vdwg.mxu0
        %v2261 = vmul.f32 %v548, %v2183
        %v2262 = vmul.f32 %v553, %v2188
        %v2263 = vmul.f32 %v558, %v2193
        %v2264 = vmul.f32 %v563, %v2198
        %v2265 = vmul.f32 %v568, %v2203
        %v2266 = vmul.f32 %v573, %v2208
        %v2267 = vmul.f32 %v578, %v2213
        %v2268 = vmul.f32 %v583, %v2218
        %v2269 = vmul.f32 %v588, %v2223
        %v2270 = vmul.f32 %v593, %v2228
        %v2271 = vmul.f32 %v598, %v2233
        %v2272 = vmul.f32 %v603, %v2238
        %v2273 = vmul.f32 %v608, %v2243
        %v2274 = vmul.f32 %v613, %v2248
        %v2275 = vmul.f32 %v618, %v2253
        %v2276 = vmul.f32 %v623, %v2258
        %v2278 = vsel %vm899, %v2261, 0
        %v2281 = vsel %vm899, %v2262, 0
        %v2284 = vsel %vm899, %v2263, 0
        %v2287 = vsel %vm899, %v2264, 0
        %v2290 = vsel %vm899, %v2265, 0
        %v2293 = vsel %vm899, %v2266, 0
        %v2296 = vsel %vm899, %v2267, 0
        %v2299 = vsel %vm899, %v2268, 0
        %v2302 = vsel %vm899, %v2269, 0
        %v2305 = vsel %vm899, %v2270, 0
        %v2308 = vsel %vm899, %v2271, 0
        %v2311 = vsel %vm899, %v2272, 0
        %v2314 = vsel %vm899, %v2273, 0
        %v2317 = vsel %vm899, %v2274, 0
        %v2320 = vsel %vm899, %v2275, 0
        %v2323 = vsel %vm899, %v2276, 0
        %2325 = vmatprep.subr.mxu0 0.0
        %2326 = vmatpush1.msra.mxu0 %v626
        %2327 = vmatprep.subr.mxu0 0.0
        %2328 = vmatpush1.msra.mxu0 %v627
        %2329 = vmatprep.subr.mxu0 0.0
        %2330 = vmatpush1.msra.mxu0 %v628
        %2331 = vmatprep.subr.mxu0 0.0
        %2332 = vmatpush1.msra.mxu0 %v629
        %2333 = vmatprep.subr.mxu0 0.0
        %2334 = vmatpush1.msra.mxu0 0.0
        %2335 = vmatprep.subr.mxu0 0.0
        %2336 = vmatpush1.msra.mxu0 0.0
        %2337 = vmatprep.subr.mxu0 0.0
        %2338 = vmatpush1.msra.mxu0 0.0
        %2339 = vmatprep.subr.mxu0 0.0
        %2340 = vmatpush1.msra.mxu0 0.0
        %2341 = vmatprep.subr.mxu0 0.0
        %2342 = vmatpush1.msra.mxu0 0.0
        %2343 = vmatprep.subr.mxu0 0.0
        %2344 = vmatpush1.msra.mxu0 0.0
        %2345 = vmatprep.subr.mxu0 0.0
        %2346 = vmatpush1.msra.mxu0 0.0
        %2347 = vmatprep.subr.mxu0 0.0
        %2348 = vmatpush1.msra.mxu0 0.0
        %2349 = vmatprep.subr.mxu0 0.0
        %2350 = vmatpush1.msra.mxu0 0.0
        %2351 = vmatprep.subr.mxu0 0.0
        %2352 = vmatpush1.msra.mxu0 0.0
        %2353 = vmatprep.subr.mxu0 0.0
        %2354 = vmatpush1.msra.mxu0 0.0
        %2355 = vmatprep.subr.mxu0 0.0
        %2356 = vmatpush1.msra.mxu0 0.0
        %2357 = vmatprep.subr.mxu0 0.0
        %2358 = vmatpush1.msra.mxu0 0.0
        %2359 = vmatprep.subr.mxu0 0.0
        %2360 = vmatpush1.msra.mxu0 0.0
        %2361 = vmatprep.subr.mxu0 0.0
        %2362 = vmatpush1.msra.mxu0 0.0
        %2363 = vmatprep.subr.mxu0 0.0
        %2364 = vmatpush1.msra.mxu0 0.0
        %2365 = vmatprep.subr.mxu0 0.0
        %2366 = vmatpush1.msra.mxu0 0.0
        %2367 = vmatprep.subr.mxu0 0.0
        %2368 = vmatpush1.msra.mxu0 0.0
        %2369 = vmatprep.subr.mxu0 0.0
        %2370 = vmatpush1.msra.mxu0 0.0
        %2371 = vmatprep.subr.mxu0 0.0
        %2372 = vmatpush1.msra.mxu0 0.0
        %2373 = vmatprep.subr.mxu0 0.0
        %2374 = vmatpush1.msra.mxu0 0.0
        %2375 = vmatprep.subr.mxu0 0.0
        %2376 = vmatpush1.msra.mxu0 0.0
        %2377 = vmatprep.subr.mxu0 0.0
        %2378 = vmatpush1.msra.mxu0 0.0
        %2379 = vmatprep.subr.mxu0 0.0
        %2380 = vmatpush1.msra.mxu0 0.0
        %2381 = vmatprep.subr.mxu0 0.0
        %2382 = vmatpush1.msra.mxu0 0.0
        %2383 = vmatprep.subr.mxu0 0.0
        %2384 = vmatpush1.msra.mxu0 0.0
        %2385 = vmatprep.subr.mxu0 0.0
        %2386 = vmatpush1.msra.mxu0 0.0
        %2387 = vmatprep.subr.mxu0 0.0
        %2388 = vmatpush1.msra.mxu0 0.0
        %2389 = vmatprep.mubr.f32.mxu0 0.0
        %2390 = vmatmul.mubr.f32.gmra.mrb[0].mxu0 %v2278
        %v2391 = vpop.f32.mrb[0].mxu0
        %v2392 = vadd.f32 0.0, %v2391
        %v2393 = vpop.f32.mrb[0].mxu0
        %2394 = vmatprep.mubr.f32.mxu0 0.0
        %2395 = vmatmul.mubr.f32.gmra.mrb[0].mxu0 %v2281
        %v2396 = vpop.f32.mrb[0].mxu0
        %v2397 = vadd.f32 0.0, %v2396
        %v2398 = vpop.f32.mrb[0].mxu0
        %2399 = vmatprep.mubr.f32.mxu0 0.0
        %2400 = vmatmul.mubr.f32.gmra.mrb[0].mxu0 %v2284
        %v2401 = vpop.f32.mrb[0].mxu0
        %v2402 = vadd.f32 0.0, %v2401
        %v2403 = vpop.f32.mrb[0].mxu0
        %2404 = vmatprep.mubr.f32.mxu0 0.0
        %2405 = vmatmul.mubr.f32.gmra.mrb[0].mxu0 %v2287
        %v2406 = vpop.f32.mrb[0].mxu0
        %v2407 = vadd.f32 0.0, %v2406
        %v2408 = vpop.f32.mrb[0].mxu0
        %2409 = vmatprep.mubr.f32.mxu0 0.0
        %2410 = vmatmul.mubr.f32.gmra.mrb[0].mxu0 %v2290
        %v2411 = vpop.f32.mrb[0].mxu0
        %v2412 = vadd.f32 0.0, %v2411
        %v2413 = vpop.f32.mrb[0].mxu0
        %2414 = vmatprep.mubr.f32.mxu0 0.0
        %2415 = vmatmul.mubr.f32.gmra.mrb[0].mxu0 %v2293
        %v2416 = vpop.f32.mrb[0].mxu0
        %v2417 = vadd.f32 0.0, %v2416
        %v2418 = vpop.f32.mrb[0].mxu0
        %2419 = vmatprep.mubr.f32.mxu0 0.0
        %2420 = vmatmul.mubr.f32.gmra.mrb[0].mxu0 %v2296
        %v2421 = vpop.f32.mrb[0].mxu0
        %v2422 = vadd.f32 0.0, %v2421
        %v2423 = vpop.f32.mrb[0].mxu0
        %2424 = vmatprep.mubr.f32.mxu0 0.0
        %2425 = vmatmul.mubr.f32.gmra.mrb[0].mxu0 %v2299
        %v2426 = vpop.f32.mrb[0].mxu0
        %v2427 = vadd.f32 0.0, %v2426
        %v2428 = vpop.f32.mrb[0].mxu0
        %2429 = vmatprep.mubr.f32.mxu0 0.0
        %2430 = vmatmul.mubr.f32.gmra.mrb[0].mxu0 %v2302
        %v2431 = vpop.f32.mrb[0].mxu0
        %v2432 = vadd.f32 0.0, %v2431
        %v2433 = vpop.f32.mrb[0].mxu0
        %2434 = vmatprep.mubr.f32.mxu0 0.0
        %2435 = vmatmul.mubr.f32.gmra.mrb[0].mxu0 %v2305
        %v2436 = vpop.f32.mrb[0].mxu0
        %v2437 = vadd.f32 0.0, %v2436
        %v2438 = vpop.f32.mrb[0].mxu0
        %2439 = vmatprep.mubr.f32.mxu0 0.0
        %2440 = vmatmul.mubr.f32.gmra.mrb[0].mxu0 %v2308
        %v2441 = vpop.f32.mrb[0].mxu0
        %v2442 = vadd.f32 0.0, %v2441
        %v2443 = vpop.f32.mrb[0].mxu0
        %2444 = vmatprep.mubr.f32.mxu0 0.0
        %2445 = vmatmul.mubr.f32.gmra.mrb[0].mxu0 %v2311
        %v2446 = vpop.f32.mrb[0].mxu0
        %v2447 = vadd.f32 0.0, %v2446
        %v2448 = vpop.f32.mrb[0].mxu0
        %2449 = vmatprep.mubr.f32.mxu0 0.0
        %2450 = vmatmul.mubr.f32.gmra.mrb[0].mxu0 %v2314
        %v2451 = vpop.f32.mrb[0].mxu0
        %v2452 = vadd.f32 0.0, %v2451
        %v2453 = vpop.f32.mrb[0].mxu0
        %2454 = vmatprep.mubr.f32.mxu0 0.0
        %2455 = vmatmul.mubr.f32.gmra.mrb[0].mxu0 %v2317
        %v2456 = vpop.f32.mrb[0].mxu0
        %v2457 = vadd.f32 0.0, %v2456
        %v2458 = vpop.f32.mrb[0].mxu0
        %2459 = vmatprep.mubr.f32.mxu0 0.0
        %2460 = vmatmul.mubr.f32.gmra.mrb[0].mxu0 %v2320
        %v2461 = vpop.f32.mrb[0].mxu0
        %v2462 = vadd.f32 0.0, %v2461
        %v2463 = vpop.f32.mrb[0].mxu0
        %2464 = vmatprep.mubr.f32.mxu0 0.0
        %2465 = vmatmul.mubr.f32.gmra.mrb[0].mxu0 %v2323
        %v2466 = vpop.f32.mrb[0].mxu0
        %v2467 = vadd.f32 0.0, %v2466
        %v2468 = vpop.f32.mrb[0].mxu0
        %2469 = vdwg.mxu0
        %v2470 = vadd.f32 %v1400, %v2392
        %v2471 = vadd.f32 %v1405, %v2397
        %v2472 = vadd.f32 %v1410, %v2402
        %v2473 = vadd.f32 %v1415, %v2407
        %v2474 = vadd.f32 %v1420, %v2412
        %v2475 = vadd.f32 %v1425, %v2417
        %v2476 = vadd.f32 %v1430, %v2422
        %v2477 = vadd.f32 %v1435, %v2427
        %v2478 = vadd.f32 %v1440, %v2432
        %v2479 = vadd.f32 %v1445, %v2437
        %v2480 = vadd.f32 %v1450, %v2442
        %v2481 = vadd.f32 %v1455, %v2447
        %v2482 = vadd.f32 %v1460, %v2452
        %v2483 = vadd.f32 %v1465, %v2457
        %v2484 = vadd.f32 %v1470, %v2462
        %v2485 = vadd.f32 %v1475, %v2467
        %v2486 = vsel %vm649, %v2470, -inf
        %2487 = vmax.xlane.f32.xlu0 %v2486
        %v2488 = vpop.xlane.xlu0 %2487
        %v2489 = vsel %vm649, %v2471, -inf
        %2490 = vmax.xlane.f32.xlu0 %v2489
        %v2491 = vpop.xlane.xlu0 %2490
        %v2492 = vsel %vm649, %v2472, -inf
        %2493 = vmax.xlane.f32.xlu0 %v2492
        %v2494 = vpop.xlane.xlu0 %2493
        %v2495 = vsel %vm649, %v2473, -inf
        %2496 = vmax.xlane.f32.xlu0 %v2495
        %v2497 = vpop.xlane.xlu0 %2496
        %v2498 = vsel %vm649, %v2474, -inf
        %2499 = vmax.xlane.f32.xlu0 %v2498
        %v2500 = vpop.xlane.xlu0 %2499
        %v2501 = vsel %vm649, %v2475, -inf
        %2502 = vmax.xlane.f32.xlu0 %v2501
        %v2503 = vpop.xlane.xlu0 %2502
        %v2504 = vsel %vm649, %v2476, -inf
        %2505 = vmax.xlane.f32.xlu0 %v2504
        %v2506 = vpop.xlane.xlu0 %2505
        %v2507 = vsel %vm649, %v2477, -inf
        %2508 = vmax.xlane.f32.xlu0 %v2507
        %v2509 = vpop.xlane.xlu0 %2508
        %v2510 = vsel %vm649, %v2478, -inf
        %2511 = vmax.xlane.f32.xlu0 %v2510
        %v2512 = vpop.xlane.xlu0 %2511
        %v2513 = vsel %vm649, %v2479, -inf
        %2514 = vmax.xlane.f32.xlu0 %v2513
        %v2515 = vpop.xlane.xlu0 %2514
        %v2516 = vsel %vm649, %v2480, -inf
        %2517 = vmax.xlane.f32.xlu0 %v2516
        %v2518 = vpop.xlane.xlu0 %2517
        %v2519 = vsel %vm649, %v2481, -inf
        %2520 = vmax.xlane.f32.xlu0 %v2519
        %v2521 = vpop.xlane.xlu0 %2520
        %v2522 = vsel %vm649, %v2482, -inf
        %2523 = vmax.xlane.f32.xlu0 %v2522
        %v2524 = vpop.xlane.xlu0 %2523
        %v2525 = vsel %vm649, %v2483, -inf
        %2526 = vmax.xlane.f32.xlu0 %v2525
        %v2527 = vpop.xlane.xlu0 %2526
        %v2528 = vsel %vm649, %v2484, -inf
        %2529 = vmax.xlane.f32.xlu0 %v2528
        %v2530 = vpop.xlane.xlu0 %2529
        %v2531 = vsel %vm649, %v2485, -inf
        %2532 = vmax.xlane.f32.xlu0 %v2531
        %v2533 = vpop.xlane.xlu0 %2532
        %v2534 = vsub.f32 %v2470, %v2488
        %v2535 = vsub.f32 %v2471, %v2491
        %v2536 = vsub.f32 %v2472, %v2494
        %v2537 = vsub.f32 %v2473, %v2497
        %v2538 = vsub.f32 %v2474, %v2500
        %v2539 = vsub.f32 %v2475, %v2503
        %v2540 = vsub.f32 %v2476, %v2506
        %v2541 = vsub.f32 %v2477, %v2509
        %v2542 = vsub.f32 %v2478, %v2512
        %v2543 = vsub.f32 %v2479, %v2515
        %v2544 = vsub.f32 %v2480, %v2518
        %v2545 = vsub.f32 %v2481, %v2521
        %v2546 = vsub.f32 %v2482, %v2524
        %v2547 = vsub.f32 %v2483, %v2527
        %v2548 = vsub.f32 %v2484, %v2530
        %v2549 = vsub.f32 %v2485, %v2533
        %v2550 = vmul.f32 %v2534, 1.442695
        %v2551 = vpow.pop %v2550
        %v2552 = vmul.f32 %v2535, 1.442695
        %v2553 = vpow.pop %v2552
        %v2554 = vmul.f32 %v2536, 1.442695
        %v2555 = vpow.pop %v2554
        %v2556 = vmul.f32 %v2537, 1.442695
        %v2557 = vpow.pop %v2556
        %v2558 = vmul.f32 %v2538, 1.442695
        %v2559 = vpow.pop %v2558
        %v2560 = vmul.f32 %v2539, 1.442695
        %v2561 = vpow.pop %v2560
        %v2562 = vmul.f32 %v2540, 1.442695
        %v2563 = vpow.pop %v2562
        %v2564 = vmul.f32 %v2541, 1.442695
        %v2565 = vpow.pop %v2564
        %v2566 = vmul.f32 %v2542, 1.442695
        %v2567 = vpow.pop %v2566
        %v2568 = vmul.f32 %v2543, 1.442695
        %v2569 = vpow.pop %v2568
        %v2570 = vmul.f32 %v2544, 1.442695
        %v2571 = vpow.pop %v2570
        %v2572 = vmul.f32 %v2545, 1.442695
        %v2573 = vpow.pop %v2572
        %v2574 = vmul.f32 %v2546, 1.442695
        %v2575 = vpow.pop %v2574
        %v2576 = vmul.f32 %v2547, 1.442695
        %v2577 = vpow.pop %v2576
        %v2578 = vmul.f32 %v2548, 1.442695
        %v2579 = vpow.pop %v2578
        %v2580 = vmul.f32 %v2549, 1.442695
        %v2581 = vpow.pop %v2580
        %v2582 = vsel %vm649, %v2551, 0.0
        %2583 = vadd.xlane.f32.xlu0 %v2582
        %v2584 = vpop.xlane.xlu0 %2583
        %v2585 = vsel %vm649, %v2553, 0.0
        %2586 = vadd.xlane.f32.xlu0 %v2585
        %v2587 = vpop.xlane.xlu0 %2586
        %v2588 = vsel %vm649, %v2555, 0.0
        %2589 = vadd.xlane.f32.xlu0 %v2588
        %v2590 = vpop.xlane.xlu0 %2589
        %v2591 = vsel %vm649, %v2557, 0.0
        %2592 = vadd.xlane.f32.xlu0 %v2591
        %v2593 = vpop.xlane.xlu0 %2592
        %v2594 = vsel %vm649, %v2559, 0.0
        %2595 = vadd.xlane.f32.xlu0 %v2594
        %v2596 = vpop.xlane.xlu0 %2595
        %v2597 = vsel %vm649, %v2561, 0.0
        %2598 = vadd.xlane.f32.xlu0 %v2597
        %v2599 = vpop.xlane.xlu0 %2598
        %v2600 = vsel %vm649, %v2563, 0.0
        %2601 = vadd.xlane.f32.xlu0 %v2600
        %v2602 = vpop.xlane.xlu0 %2601
        %v2603 = vsel %vm649, %v2565, 0.0
        %2604 = vadd.xlane.f32.xlu0 %v2603
        %v2605 = vpop.xlane.xlu0 %2604
        %v2606 = vsel %vm649, %v2567, 0.0
        %2607 = vadd.xlane.f32.xlu0 %v2606
        %v2608 = vpop.xlane.xlu0 %2607
        %v2609 = vsel %vm649, %v2569, 0.0
        %2610 = vadd.xlane.f32.xlu0 %v2609
        %v2611 = vpop.xlane.xlu0 %2610
        %v2612 = vsel %vm649, %v2571, 0.0
        %2613 = vadd.xlane.f32.xlu0 %v2612
        %v2614 = vpop.xlane.xlu0 %2613
        %v2615 = vsel %vm649, %v2573, 0.0
        %2616 = vadd.xlane.f32.xlu0 %v2615
        %v2617 = vpop.xlane.xlu0 %2616
        %v2618 = vsel %vm649, %v2575, 0.0
        %2619 = vadd.xlane.f32.xlu0 %v2618
        %v2620 = vpop.xlane.xlu0 %2619
        %v2621 = vsel %vm649, %v2577, 0.0
        %2622 = vadd.xlane.f32.xlu0 %v2621
        %v2623 = vpop.xlane.xlu0 %2622
        %v2624 = vsel %vm649, %v2579, 0.0
        %2625 = vadd.xlane.f32.xlu0 %v2624
        %v2626 = vpop.xlane.xlu0 %2625
        %v2627 = vsel %vm649, %v2581, 0.0
        %2628 = vadd.xlane.f32.xlu0 %v2627
        %v2629 = vpop.xlane.xlu0 %2628
        %v2630 = vrcp.pop %v2584
        %v2631 = vrcp.pop %v2587
        %v2632 = vrcp.pop %v2590
        %v2633 = vrcp.pop %v2593
        %v2634 = vrcp.pop %v2596
        %v2635 = vrcp.pop %v2599
        %v2636 = vrcp.pop %v2602
        %v2637 = vrcp.pop %v2605
        %v2638 = vrcp.pop %v2608
        %v2639 = vrcp.pop %v2611
        %v2640 = vrcp.pop %v2614
        %v2641 = vrcp.pop %v2617
        %v2642 = vrcp.pop %v2620
        %v2643 = vrcp.pop %v2623
        %v2644 = vrcp.pop %v2626
        %v2645 = vrcp.pop %v2629
        %v2646 = vmul.f32 %v2551, %v2630
        %v2647 = vmul.f32 %v2553, %v2631
        %v2648 = vmul.f32 %v2555, %v2632
        %v2649 = vmul.f32 %v2557, %v2633
        %v2650 = vmul.f32 %v2559, %v2634
        %v2651 = vmul.f32 %v2561, %v2635
        %v2652 = vmul.f32 %v2563, %v2636
        %v2653 = vmul.f32 %v2565, %v2637
        %v2654 = vmul.f32 %v2567, %v2638
        %v2655 = vmul.f32 %v2569, %v2639
        %v2656 = vmul.f32 %v2571, %v2640
        %v2657 = vmul.f32 %v2573, %v2641
        %v2658 = vmul.f32 %v2575, %v2642
        %v2659 = vmul.f32 %v2577, %v2643
        %v2660 = vmul.f32 %v2579, %v2644
        %v2661 = vmul.f32 %v2581, %v2645
        %v2663 = vsel %vm649, %v2646, 0
        %v2666 = vsel %vm649, %v2647, 0
        %v2669 = vsel %vm649, %v2648, 0
        %v2672 = vsel %vm649, %v2649, 0
        %v2675 = vsel %vm649, %v2650, 0
        %v2678 = vsel %vm649, %v2651, 0
        %v2681 = vsel %vm649, %v2652, 0
        %v2684 = vsel %vm649, %v2653, 0
        %v2687 = vsel %vm649, %v2654, 0
        %v2690 = vsel %vm649, %v2655, 0
        %v2693 = vsel %vm649, %v2656, 0
        %v2696 = vsel %vm649, %v2657, 0
        %v2699 = vsel %vm649, %v2658, 0
        %v2702 = vsel %vm649, %v2659, 0
        %v2705 = vsel %vm649, %v2660, 0
        %v2708 = vsel %vm649, %v2661, 0
        %2710 = vmatprep.subr.mxu0 0.0
        %2711 = vmatpush1.msra.mxu0 %v659
        %2712 = vmatprep.subr.mxu0 0.0
        %2713 = vmatpush1.msra.mxu0 0.0
        %2714 = vmatprep.subr.mxu0 0.0
        %2715 = vmatpush1.msra.mxu0 0.0
        %2716 = vmatprep.subr.mxu0 0.0
        %2717 = vmatpush1.msra.mxu0 0.0
        %2718 = vmatprep.subr.mxu0 0.0
        %2719 = vmatpush1.msra.mxu0 0.0
        %2720 = vmatprep.subr.mxu0 0.0
        %2721 = vmatpush1.msra.mxu0 0.0
        %2722 = vmatprep.subr.mxu0 0.0
        %2723 = vmatpush1.msra.mxu0 0.0
        %2724 = vmatprep.subr.mxu0 0.0
        %2725 = vmatpush1.msra.mxu0 0.0
        %2726 = vmatprep.subr.mxu0 0.0
        %2727 = vmatpush1.msra.mxu0 0.0
        %2728 = vmatprep.subr.mxu0 0.0
        %2729 = vmatpush1.msra.mxu0 0.0
        %2730 = vmatprep.subr.mxu0 0.0
        %2731 = vmatpush1.msra.mxu0 0.0
        %2732 = vmatprep.subr.mxu0 0.0
        %2733 = vmatpush1.msra.mxu0 0.0
        %2734 = vmatprep.subr.mxu0 0.0
        %2735 = vmatpush1.msra.mxu0 0.0
        %2736 = vmatprep.subr.mxu0 0.0
        %2737 = vmatpush1.msra.mxu0 0.0
        %2738 = vmatprep.subr.mxu0 0.0
        %2739 = vmatpush1.msra.mxu0 0.0
        %2740 = vmatprep.subr.mxu0 0.0
        %2741 = vmatpush1.msra.mxu0 0.0
        %2742 = vmatprep.subr.mxu0 0.0
        %2743 = vmatpush1.msra.mxu0 0.0
        %2744 = vmatprep.subr.mxu0 0.0
        %2745 = vmatpush1.msra.mxu0 0.0
        %2746 = vmatprep.subr.mxu0 0.0
        %2747 = vmatpush1.msra.mxu0 0.0
        %2748 = vmatprep.subr.mxu0 0.0
        %2749 = vmatpush1.msra.mxu0 0.0
        %2750 = vmatprep.subr.mxu0 0.0
        %2751 = vmatpush1.msra.mxu0 0.0
        %2752 = vmatprep.subr.mxu0 0.0
        %2753 = vmatpush1.msra.mxu0 0.0
        %2754 = vmatprep.subr.mxu0 0.0
        %2755 = vmatpush1.msra.mxu0 0.0
        %2756 = vmatprep.subr.mxu0 0.0
        %2757 = vmatpush1.msra.mxu0 0.0
        %2758 = vmatprep.subr.mxu0 0.0
        %2759 = vmatpush1.msra.mxu0 0.0
        %2760 = vmatprep.subr.mxu0 0.0
        %2761 = vmatpush1.msra.mxu0 0.0
        %2762 = vmatprep.subr.mxu0 0.0
        %2763 = vmatpush1.msra.mxu0 0.0
        %2764 = vmatprep.subr.mxu0 0.0
        %2765 = vmatpush1.msra.mxu0 0.0
        %2766 = vmatprep.subr.mxu0 0.0
        %2767 = vmatpush1.msra.mxu0 0.0
        %2768 = vmatprep.subr.mxu0 0.0
        %2769 = vmatpush1.msra.mxu0 0.0
        %2770 = vmatprep.subr.mxu0 0.0
        %2771 = vmatpush1.msra.mxu0 0.0
        %2772 = vmatprep.subr.mxu0 0.0
        %2773 = vmatpush1.msra.mxu0 0.0
        %2774 = vmatprep.mubr.f32.mxu0 0.0
        %2775 = vmatmul.mubr.f32.gmra.mrb[0].mxu0 %v2663
        %v2776 = vpop.f32.mrb[0].mxu0
        %v2777 = vadd.f32 0.0, %v2776
        %v2778 = vpop.f32.mrb[0].mxu0
        %2779 = vmatprep.mubr.f32.mxu0 0.0
        %2780 = vmatmul.mubr.f32.gmra.mrb[0].mxu0 %v2666
        %v2781 = vpop.f32.mrb[0].mxu0
        %v2782 = vadd.f32 0.0, %v2781
        %v2783 = vpop.f32.mrb[0].mxu0
        %2784 = vmatprep.mubr.f32.mxu0 0.0
        %2785 = vmatmul.mubr.f32.gmra.mrb[0].mxu0 %v2669
        %v2786 = vpop.f32.mrb[0].mxu0
        %v2787 = vadd.f32 0.0, %v2786
        %v2788 = vpop.f32.mrb[0].mxu0
        %2789 = vmatprep.mubr.f32.mxu0 0.0
        %2790 = vmatmul.mubr.f32.gmra.mrb[0].mxu0 %v2672
        %v2791 = vpop.f32.mrb[0].mxu0
        %v2792 = vadd.f32 0.0, %v2791
        %v2793 = vpop.f32.mrb[0].mxu0
        %2794 = vmatprep.mubr.f32.mxu0 0.0
        %2795 = vmatmul.mubr.f32.gmra.mrb[0].mxu0 %v2675
        %v2796 = vpop.f32.mrb[0].mxu0
        %v2797 = vadd.f32 0.0, %v2796
        %v2798 = vpop.f32.mrb[0].mxu0
        %2799 = vmatprep.mubr.f32.mxu0 0.0
        %2800 = vmatmul.mubr.f32.gmra.mrb[0].mxu0 %v2678
        %v2801 = vpop.f32.mrb[0].mxu0
        %v2802 = vadd.f32 0.0, %v2801
        %v2803 = vpop.f32.mrb[0].mxu0
        %2804 = vmatprep.mubr.f32.mxu0 0.0
        %2805 = vmatmul.mubr.f32.gmra.mrb[0].mxu0 %v2681
        %v2806 = vpop.f32.mrb[0].mxu0
        %v2807 = vadd.f32 0.0, %v2806
        %v2808 = vpop.f32.mrb[0].mxu0
        %2809 = vmatprep.mubr.f32.mxu0 0.0
        %2810 = vmatmul.mubr.f32.gmra.mrb[0].mxu0 %v2684
        %v2811 = vpop.f32.mrb[0].mxu0
        %v2812 = vadd.f32 0.0, %v2811
        %v2813 = vpop.f32.mrb[0].mxu0
        %2814 = vmatprep.mubr.f32.mxu0 0.0
        %2815 = vmatmul.mubr.f32.gmra.mrb[0].mxu0 %v2687
        %v2816 = vpop.f32.mrb[0].mxu0
        %v2817 = vadd.f32 0.0, %v2816
        %v2818 = vpop.f32.mrb[0].mxu0
        %2819 = vmatprep.mubr.f32.mxu0 0.0
        %2820 = vmatmul.mubr.f32.gmra.mrb[0].mxu0 %v2690
        %v2821 = vpop.f32.mrb[0].mxu0
        %v2822 = vadd.f32 0.0, %v2821
        %v2823 = vpop.f32.mrb[0].mxu0
        %2824 = vmatprep.mubr.f32.mxu0 0.0
        %2825 = vmatmul.mubr.f32.gmra.mrb[0].mxu0 %v2693
        %v2826 = vpop.f32.mrb[0].mxu0
        %v2827 = vadd.f32 0.0, %v2826
        %v2828 = vpop.f32.mrb[0].mxu0
        %2829 = vmatprep.mubr.f32.mxu0 0.0
        %2830 = vmatmul.mubr.f32.gmra.mrb[0].mxu0 %v2696
        %v2831 = vpop.f32.mrb[0].mxu0
        %v2832 = vadd.f32 0.0, %v2831
        %v2833 = vpop.f32.mrb[0].mxu0
        %2834 = vmatprep.mubr.f32.mxu0 0.0
        %2835 = vmatmul.mubr.f32.gmra.mrb[0].mxu0 %v2699
        %v2836 = vpop.f32.mrb[0].mxu0
        %v2837 = vadd.f32 0.0, %v2836
        %v2838 = vpop.f32.mrb[0].mxu0
        %2839 = vmatprep.mubr.f32.mxu0 0.0
        %2840 = vmatmul.mubr.f32.gmra.mrb[0].mxu0 %v2702
        %v2841 = vpop.f32.mrb[0].mxu0
        %v2842 = vadd.f32 0.0, %v2841
        %v2843 = vpop.f32.mrb[0].mxu0
        %2844 = vmatprep.mubr.f32.mxu0 0.0
        %2845 = vmatmul.mubr.f32.gmra.mrb[0].mxu0 %v2705
        %v2846 = vpop.f32.mrb[0].mxu0
        %v2847 = vadd.f32 0.0, %v2846
        %v2848 = vpop.f32.mrb[0].mxu0
        %2849 = vmatprep.mubr.f32.mxu0 0.0
        %2850 = vmatmul.mubr.f32.gmra.mrb[0].mxu0 %v2708
        %v2851 = vpop.f32.mrb[0].mxu0
        %v2852 = vadd.f32 0.0, %v2851
        %v2853 = vpop.f32.mrb[0].mxu0
        %2854 = vdwg.mxu0
        %v2855 = vmul.f32 %v2777, %v548
        %v2856 = vmul.f32 %v2782, %v553
        %v2857 = vmul.f32 %v2787, %v558
        %v2858 = vmul.f32 %v2792, %v563
        %v2859 = vmul.f32 %v2797, %v568
        %v2860 = vmul.f32 %v2802, %v573
        %v2861 = vmul.f32 %v2807, %v578
        %v2862 = vmul.f32 %v2812, %v583
        %v2863 = vmul.f32 %v2817, %v588
        %v2864 = vmul.f32 %v2822, %v593
        %v2865 = vmul.f32 %v2827, %v598
        %v2866 = vmul.f32 %v2832, %v603
        %v2867 = vmul.f32 %v2837, %v608
        %v2868 = vmul.f32 %v2842, %v613
        %v2869 = vmul.f32 %v2847, %v618
        %v2870 = vmul.f32 %v2852, %v623
        %2871 = vmatprep.subr.mxu0 0.0
        %2872 = vmatpush1.msra.mxu0 %v2855
        %2873 = vmatprep.subr.mxu0 0.0
        %2874 = vmatpush1.msra.mxu0 %v2856
        %2875 = vmatprep.subr.mxu0 0.0
        %2876 = vmatpush1.msra.mxu0 %v2857
        %2877 = vmatprep.subr.mxu0 0.0
        %2878 = vmatpush1.msra.mxu0 %v2858
        %2879 = vmatprep.subr.mxu0 0.0
        %2880 = vmatpush1.msra.mxu0 %v2859
        %2881 = vmatprep.subr.mxu0 0.0
        %2882 = vmatpush1.msra.mxu0 %v2860
        %2883 = vmatprep.subr.mxu0 0.0
        %2884 = vmatpush1.msra.mxu0 %v2861
        %2885 = vmatprep.subr.mxu0 0.0
        %2886 = vmatpush1.msra.mxu0 %v2862
        %2887 = vmatprep.subr.mxu0 0.0
        %2888 = vmatpush1.msra.mxu0 %v2863
        %2889 = vmatprep.subr.mxu0 0.0
        %2890 = vmatpush1.msra.mxu0 %v2864
        %2891 = vmatprep.subr.mxu0 0.0
        %2892 = vmatpush1.msra.mxu0 %v2865
        %2893 = vmatprep.subr.mxu0 0.0
        %2894 = vmatpush1.msra.mxu0 %v2866
        %2895 = vmatprep.subr.mxu0 0.0
        %2896 = vmatpush1.msra.mxu0 %v2867
        %2897 = vmatprep.subr.mxu0 0.0
        %2898 = vmatpush1.msra.mxu0 %v2868
        %2899 = vmatprep.subr.mxu0 0.0
        %2900 = vmatpush1.msra.mxu0 %v2869
        %2901 = vmatprep.subr.mxu0 0.0
        %2902 = vmatpush1.msra.mxu0 %v2870
        %2903 = vmatprep.subr.mxu0 0.0
        %2904 = vmatpush1.msra.mxu0 0.0
        %2905 = vmatprep.subr.mxu0 0.0
        %2906 = vmatpush1.msra.mxu0 0.0
        %2907 = vmatprep.subr.mxu0 0.0
        %2908 = vmatpush1.msra.mxu0 0.0
        %2909 = vmatprep.subr.mxu0 0.0
        %2910 = vmatpush1.msra.mxu0 0.0
        %2911 = vmatprep.subr.mxu0 0.0
        %2912 = vmatpush1.msra.mxu0 0.0
        %2913 = vmatprep.subr.mxu0 0.0
        %2914 = vmatpush1.msra.mxu0 0.0
        %2915 = vmatprep.subr.mxu0 0.0
        %2916 = vmatpush1.msra.mxu0 0.0
        %2917 = vmatprep.subr.mxu0 0.0
        %2918 = vmatpush1.msra.mxu0 0.0
        %2919 = vmatprep.subr.mxu0 0.0
        %2920 = vmatpush1.msra.mxu0 0.0
        %2921 = vmatprep.subr.mxu0 0.0
        %2922 = vmatpush1.msra.mxu0 0.0
        %2923 = vmatprep.subr.mxu0 0.0
        %2924 = vmatpush1.msra.mxu0 0.0
        %2925 = vmatprep.subr.mxu0 0.0
        %2926 = vmatpush1.msra.mxu0 0.0
        %2927 = vmatprep.subr.mxu0 0.0
        %2928 = vmatpush1.msra.mxu0 0.0
        %2929 = vmatprep.subr.mxu0 0.0
        %2930 = vmatpush1.msra.mxu0 0.0
        %2931 = vmatprep.subr.mxu0 0.0
        %2932 = vmatpush1.msra.mxu0 0.0
        %2933 = vmatprep.subr.mxu0 0.0
        %2934 = vmatpush1.msra.mxu0 0.0
        %2935 = vmatprep.mubr.f32.mxu0 0.0
        %2936 = vmatmul.mubr.f32.gmra.mrb[0].mxu0 %v647
        %v2937 = vpop.f32.mrb[0].mxu0
        %v2938 = vadd.f32 0.0, %v2937
        %v2939 = vpop.f32.mrb[0].mxu0
        %2940 = vmatprep.mubr.f32.mxu0 0.0
        %2941 = vmatmul.mubr.f32.gmra.mrb[0].mxu0 %v648
        %v2942 = vpop.f32.mrb[0].mxu0
        %v2943 = vadd.f32 0.0, %v2942
        %v2944 = vpop.f32.mrb[0].mxu0
        %2945 = vdwg.mxu0
        %v2946 = vmul.f32 %v2938, %v2938
        %v2947 = vmul.f32 %v2943, %v2943
        %v2949 = vsel %vm899, %v2946, 0
        %v2952 = vsel %vm899, %v2947, 0
        %2954 = vmatprep.subr.mxu0 0.0
        %2955 = vmatpush1.msra.mxu0 %v626
        %2956 = vmatprep.subr.mxu0 0.0
        %2957 = vmatpush1.msra.mxu0 %v627
        %2958 = vmatprep.subr.mxu0 0.0
        %2959 = vmatpush1.msra.mxu0 %v628
        %2960 = vmatprep.subr.mxu0 0.0
        %2961 = vmatpush1.msra.mxu0 %v629
        %2962 = vmatprep.subr.mxu0 0.0
        %2963 = vmatpush1.msra.mxu0 0.0
        %2964 = vmatprep.subr.mxu0 0.0
        %2965 = vmatpush1.msra.mxu0 0.0
        %2966 = vmatprep.subr.mxu0 0.0
        %2967 = vmatpush1.msra.mxu0 0.0
        %2968 = vmatprep.subr.mxu0 0.0
        %2969 = vmatpush1.msra.mxu0 0.0
        %2970 = vmatprep.subr.mxu0 0.0
        %2971 = vmatpush1.msra.mxu0 0.0
        %2972 = vmatprep.subr.mxu0 0.0
        %2973 = vmatpush1.msra.mxu0 0.0
        %2974 = vmatprep.subr.mxu0 0.0
        %2975 = vmatpush1.msra.mxu0 0.0
        %2976 = vmatprep.subr.mxu0 0.0
        %2977 = vmatpush1.msra.mxu0 0.0
        %2978 = vmatprep.subr.mxu0 0.0
        %2979 = vmatpush1.msra.mxu0 0.0
        %2980 = vmatprep.subr.mxu0 0.0
        %2981 = vmatpush1.msra.mxu0 0.0
        %2982 = vmatprep.subr.mxu0 0.0
        %2983 = vmatpush1.msra.mxu0 0.0
        %2984 = vmatprep.subr.mxu0 0.0
        %2985 = vmatpush1.msra.mxu0 0.0
        %2986 = vmatprep.subr.mxu0 0.0
        %2987 = vmatpush1.msra.mxu0 0.0
        %2988 = vmatprep.subr.mxu0 0.0
        %2989 = vmatpush1.msra.mxu0 0.0
        %2990 = vmatprep.subr.mxu0 0.0
        %2991 = vmatpush1.msra.mxu0 0.0
        %2992 = vmatprep.subr.mxu0 0.0
        %2993 = vmatpush1.msra.mxu0 0.0
        %2994 = vmatprep.subr.mxu0 0.0
        %2995 = vmatpush1.msra.mxu0 0.0
        %2996 = vmatprep.subr.mxu0 0.0
        %2997 = vmatpush1.msra.mxu0 0.0
        %2998 = vmatprep.subr.mxu0 0.0
        %2999 = vmatpush1.msra.mxu0 0.0
        %3000 = vmatprep.subr.mxu0 0.0
        %3001 = vmatpush1.msra.mxu0 0.0
        %3002 = vmatprep.subr.mxu0 0.0
        %3003 = vmatpush1.msra.mxu0 0.0
        %3004 = vmatprep.subr.mxu0 0.0
        %3005 = vmatpush1.msra.mxu0 0.0
        %3006 = vmatprep.subr.mxu0 0.0
        %3007 = vmatpush1.msra.mxu0 0.0
        %3008 = vmatprep.subr.mxu0 0.0
        %3009 = vmatpush1.msra.mxu0 0.0
        %3010 = vmatprep.subr.mxu0 0.0
        %3011 = vmatpush1.msra.mxu0 0.0
        %3012 = vmatprep.subr.mxu0 0.0
        %3013 = vmatpush1.msra.mxu0 0.0
        %3014 = vmatprep.subr.mxu0 0.0
        %3015 = vmatpush1.msra.mxu0 0.0
        %3016 = vmatprep.subr.mxu0 0.0
        %3017 = vmatpush1.msra.mxu0 0.0
        %3018 = vmatprep.mubr.f32.mxu0 0.0
        %3019 = vmatmul.mubr.f32.gmra.mrb[0].mxu0 %v2949
        %v3020 = vpop.f32.mrb[0].mxu0
        %v3021 = vadd.f32 0.0, %v3020
        %v3022 = vpop.f32.mrb[0].mxu0
        %3023 = vmatprep.mubr.f32.mxu0 0.0
        %3024 = vmatmul.mubr.f32.gmra.mrb[0].mxu0 %v2952
        %v3025 = vpop.f32.mrb[0].mxu0
        %v3026 = vadd.f32 0.0, %v3025
        %v3027 = vpop.f32.mrb[0].mxu0
        %3028 = vdwg.mxu0
        %v3029 = vadd.f32 %v3021, 1.0
        %v3030 = vadd.f32 %v3026, 1.0
        %v3031 = vrcp.pop %v3029
        %v3032 = vrcp.pop %v3030
        %v3033 = vmul.f32 %v3021, %v3031
        %v3034 = vmul.f32 %v3026, %v3032
        %v3035 = vadd.f32 %v3021, 1e-09
        %v3036 = vadd.f32 %v3026, 1e-09
        %v3037 = vrsqrt.pop %v3035
        %v3038 = vrsqrt.pop %v3036
        %v3039 = vmul.f32 %v3033, %v3037
        %v3040 = vmul.f32 %v3034, %v3038
        %v3042 = vsel %vm649, %v3039, 0
        %v3045 = vsel %vm649, %v3040, 0
        %3047 = vmatprep.subr.mxu0 0.0
        %3048 = vmatpush1.msra.mxu0 %v659
        %3049 = vmatprep.subr.mxu0 0.0
        %3050 = vmatpush1.msra.mxu0 0.0
        %3051 = vmatprep.subr.mxu0 0.0
        %3052 = vmatpush1.msra.mxu0 0.0
        %3053 = vmatprep.subr.mxu0 0.0
        %3054 = vmatpush1.msra.mxu0 0.0
        %3055 = vmatprep.subr.mxu0 0.0
        %3056 = vmatpush1.msra.mxu0 0.0
        %3057 = vmatprep.subr.mxu0 0.0
        %3058 = vmatpush1.msra.mxu0 0.0
        %3059 = vmatprep.subr.mxu0 0.0
        %3060 = vmatpush1.msra.mxu0 0.0
        %3061 = vmatprep.subr.mxu0 0.0
        %3062 = vmatpush1.msra.mxu0 0.0
        %3063 = vmatprep.subr.mxu0 0.0
        %3064 = vmatpush1.msra.mxu0 0.0
        %3065 = vmatprep.subr.mxu0 0.0
        %3066 = vmatpush1.msra.mxu0 0.0
        %3067 = vmatprep.subr.mxu0 0.0
        %3068 = vmatpush1.msra.mxu0 0.0
        %3069 = vmatprep.subr.mxu0 0.0
        %3070 = vmatpush1.msra.mxu0 0.0
        %3071 = vmatprep.subr.mxu0 0.0
        %3072 = vmatpush1.msra.mxu0 0.0
        %3073 = vmatprep.subr.mxu0 0.0
        %3074 = vmatpush1.msra.mxu0 0.0
        %3075 = vmatprep.subr.mxu0 0.0
        %3076 = vmatpush1.msra.mxu0 0.0
        %3077 = vmatprep.subr.mxu0 0.0
        %3078 = vmatpush1.msra.mxu0 0.0
        %3079 = vmatprep.subr.mxu0 0.0
        %3080 = vmatpush1.msra.mxu0 0.0
        %3081 = vmatprep.subr.mxu0 0.0
        %3082 = vmatpush1.msra.mxu0 0.0
        %3083 = vmatprep.subr.mxu0 0.0
        %3084 = vmatpush1.msra.mxu0 0.0
        %3085 = vmatprep.subr.mxu0 0.0
        %3086 = vmatpush1.msra.mxu0 0.0
        %3087 = vmatprep.subr.mxu0 0.0
        %3088 = vmatpush1.msra.mxu0 0.0
        %3089 = vmatprep.subr.mxu0 0.0
        %3090 = vmatpush1.msra.mxu0 0.0
        %3091 = vmatprep.subr.mxu0 0.0
        %3092 = vmatpush1.msra.mxu0 0.0
        %3093 = vmatprep.subr.mxu0 0.0
        %3094 = vmatpush1.msra.mxu0 0.0
        %3095 = vmatprep.subr.mxu0 0.0
        %3096 = vmatpush1.msra.mxu0 0.0
        %3097 = vmatprep.subr.mxu0 0.0
        %3098 = vmatpush1.msra.mxu0 0.0
        %3099 = vmatprep.subr.mxu0 0.0
        %3100 = vmatpush1.msra.mxu0 0.0
        %3101 = vmatprep.subr.mxu0 0.0
        %3102 = vmatpush1.msra.mxu0 0.0
        %3103 = vmatprep.subr.mxu0 0.0
        %3104 = vmatpush1.msra.mxu0 0.0
        %3105 = vmatprep.subr.mxu0 0.0
        %3106 = vmatpush1.msra.mxu0 0.0
        %3107 = vmatprep.subr.mxu0 0.0
        %3108 = vmatpush1.msra.mxu0 0.0
        %3109 = vmatprep.subr.mxu0 0.0
        %3110 = vmatpush1.msra.mxu0 0.0
        %3111 = vmatprep.mubr.f32.mxu0 0.0
        %3112 = vmatmul.mubr.f32.gmra.mrb[0].mxu0 %v3042
        %v3113 = vpop.f32.mrb[0].mxu0
        %v3114 = vadd.f32 0.0, %v3113
        %v3115 = vpop.f32.mrb[0].mxu0
        %3116 = vmatprep.mubr.f32.mxu0 0.0
        %3117 = vmatmul.mubr.f32.gmra.mrb[0].mxu0 %v3045
        %v3118 = vpop.f32.mrb[0].mxu0
        %v3119 = vadd.f32 0.0, %v3118
        %v3120 = vpop.f32.mrb[0].mxu0
        %3121 = vdwg.mxu0
        %v3122 = vmul.f32 %v3114, %v2938
        %v3123 = vmul.f32 %v3119, %v2943
        %3124 = vmatprep.subr.mxu0 0.0
        %3125 = vmatpush1.msra.mxu0 %v3122
        %3126 = vmatprep.subr.mxu0 0.0
        %3127 = vmatpush1.msra.mxu0 %v3123
        %3128 = vmatprep.subr.mxu0 0.0
        %3129 = vmatpush1.msra.mxu0 0.0
        %3130 = vmatprep.subr.mxu0 0.0
        %3131 = vmatpush1.msra.mxu0 0.0
        %3132 = vmatprep.subr.mxu0 0.0
        %3133 = vmatpush1.msra.mxu0 0.0
        %3134 = vmatprep.subr.mxu0 0.0
        %3135 = vmatpush1.msra.mxu0 0.0
        %3136 = vmatprep.subr.mxu0 0.0
        %3137 = vmatpush1.msra.mxu0 0.0
        %3138 = vmatprep.subr.mxu0 0.0
        %3139 = vmatpush1.msra.mxu0 0.0
        %3140 = vmatprep.subr.mxu0 0.0
        %3141 = vmatpush1.msra.mxu0 0.0
        %3142 = vmatprep.subr.mxu0 0.0
        %3143 = vmatpush1.msra.mxu0 0.0
        %3144 = vmatprep.subr.mxu0 0.0
        %3145 = vmatpush1.msra.mxu0 0.0
        %3146 = vmatprep.subr.mxu0 0.0
        %3147 = vmatpush1.msra.mxu0 0.0
        %3148 = vmatprep.subr.mxu0 0.0
        %3149 = vmatpush1.msra.mxu0 0.0
        %3150 = vmatprep.subr.mxu0 0.0
        %3151 = vmatpush1.msra.mxu0 0.0
        %3152 = vmatprep.subr.mxu0 0.0
        %3153 = vmatpush1.msra.mxu0 0.0
        %3154 = vmatprep.subr.mxu0 0.0
        %3155 = vmatpush1.msra.mxu0 0.0
        %3156 = vmatprep.subr.mxu0 0.0
        %3157 = vmatpush1.msra.mxu0 0.0
        %3158 = vmatprep.subr.mxu0 0.0
        %3159 = vmatpush1.msra.mxu0 0.0
        %3160 = vmatprep.subr.mxu0 0.0
        %3161 = vmatpush1.msra.mxu0 0.0
        %3162 = vmatprep.subr.mxu0 0.0
        %3163 = vmatpush1.msra.mxu0 0.0
        %3164 = vmatprep.subr.mxu0 0.0
        %3165 = vmatpush1.msra.mxu0 0.0
        %3166 = vmatprep.subr.mxu0 0.0
        %3167 = vmatpush1.msra.mxu0 0.0
        %3168 = vmatprep.subr.mxu0 0.0
        %3169 = vmatpush1.msra.mxu0 0.0
        %3170 = vmatprep.subr.mxu0 0.0
        %3171 = vmatpush1.msra.mxu0 0.0
        %3172 = vmatprep.subr.mxu0 0.0
        %3173 = vmatpush1.msra.mxu0 0.0
        %3174 = vmatprep.subr.mxu0 0.0
        %3175 = vmatpush1.msra.mxu0 0.0
        %3176 = vmatprep.subr.mxu0 0.0
        %3177 = vmatpush1.msra.mxu0 0.0
        %3178 = vmatprep.subr.mxu0 0.0
        %3179 = vmatpush1.msra.mxu0 0.0
        %3180 = vmatprep.subr.mxu0 0.0
        %3181 = vmatpush1.msra.mxu0 0.0
        %3182 = vmatprep.subr.mxu0 0.0
        %3183 = vmatpush1.msra.mxu0 0.0
        %3184 = vmatprep.subr.mxu0 0.0
        %3185 = vmatpush1.msra.mxu0 0.0
        %3186 = vmatprep.subr.mxu0 0.0
        %3187 = vmatpush1.msra.mxu0 0.0
        %3188 = vmatprep.mubr.f32.mxu0 0.0
        %3189 = vmatmul.mubr.f32.gmra.mrb[0].mxu0 %v1077
        %v3190 = vpop.f32.mrb[0].mxu0
        %v3191 = vadd.f32 0.0, %v3190
        %v3192 = vpop.f32.mrb[0].mxu0
        %3193 = vmatprep.mubr.f32.mxu0 0.0
        %3194 = vmatmul.mubr.f32.gmra.mrb[0].mxu0 %v1080
        %v3195 = vpop.f32.mrb[0].mxu0
        %v3196 = vadd.f32 0.0, %v3195
        %v3197 = vpop.f32.mrb[0].mxu0
        %3198 = vmatprep.mubr.f32.mxu0 0.0
        %3199 = vmatmul.mubr.f32.gmra.mrb[0].mxu0 %v1083
        %v3200 = vpop.f32.mrb[0].mxu0
        %v3201 = vadd.f32 0.0, %v3200
        %v3202 = vpop.f32.mrb[0].mxu0
        %3203 = vmatprep.mubr.f32.mxu0 0.0
        %3204 = vmatmul.mubr.f32.gmra.mrb[0].mxu0 %v1086
        %v3205 = vpop.f32.mrb[0].mxu0
        %v3206 = vadd.f32 0.0, %v3205
        %v3207 = vpop.f32.mrb[0].mxu0
        %3208 = vmatprep.mubr.f32.mxu0 0.0
        %3209 = vmatmul.mubr.f32.gmra.mrb[0].mxu0 %v1089
        %v3210 = vpop.f32.mrb[0].mxu0
        %v3211 = vadd.f32 0.0, %v3210
        %v3212 = vpop.f32.mrb[0].mxu0
        %3213 = vmatprep.mubr.f32.mxu0 0.0
        %3214 = vmatmul.mubr.f32.gmra.mrb[0].mxu0 %v1092
        %v3215 = vpop.f32.mrb[0].mxu0
        %v3216 = vadd.f32 0.0, %v3215
        %v3217 = vpop.f32.mrb[0].mxu0
        %3218 = vmatprep.mubr.f32.mxu0 0.0
        %3219 = vmatmul.mubr.f32.gmra.mrb[0].mxu0 %v1095
        %v3220 = vpop.f32.mrb[0].mxu0
        %v3221 = vadd.f32 0.0, %v3220
        %v3222 = vpop.f32.mrb[0].mxu0
        %3223 = vmatprep.mubr.f32.mxu0 0.0
        %3224 = vmatmul.mubr.f32.gmra.mrb[0].mxu0 %v1098
        %v3225 = vpop.f32.mrb[0].mxu0
        %v3226 = vadd.f32 0.0, %v3225
        %v3227 = vpop.f32.mrb[0].mxu0
        %3228 = vmatprep.mubr.f32.mxu0 0.0
        %3229 = vmatmul.mubr.f32.gmra.mrb[0].mxu0 %v1101
        %v3230 = vpop.f32.mrb[0].mxu0
        %v3231 = vadd.f32 0.0, %v3230
        %v3232 = vpop.f32.mrb[0].mxu0
        %3233 = vmatprep.mubr.f32.mxu0 0.0
        %3234 = vmatmul.mubr.f32.gmra.mrb[0].mxu0 %v1104
        %v3235 = vpop.f32.mrb[0].mxu0
        %v3236 = vadd.f32 0.0, %v3235
        %v3237 = vpop.f32.mrb[0].mxu0
        %3238 = vmatprep.mubr.f32.mxu0 0.0
        %3239 = vmatmul.mubr.f32.gmra.mrb[0].mxu0 %v1107
        %v3240 = vpop.f32.mrb[0].mxu0
        %v3241 = vadd.f32 0.0, %v3240
        %v3242 = vpop.f32.mrb[0].mxu0
        %3243 = vmatprep.mubr.f32.mxu0 0.0
        %3244 = vmatmul.mubr.f32.gmra.mrb[0].mxu0 %v1110
        %v3245 = vpop.f32.mrb[0].mxu0
        %v3246 = vadd.f32 0.0, %v3245
        %v3247 = vpop.f32.mrb[0].mxu0
        %3248 = vmatprep.mubr.f32.mxu0 0.0
        %3249 = vmatmul.mubr.f32.gmra.mrb[0].mxu0 %v1113
        %v3250 = vpop.f32.mrb[0].mxu0
        %v3251 = vadd.f32 0.0, %v3250
        %v3252 = vpop.f32.mrb[0].mxu0
        %3253 = vmatprep.mubr.f32.mxu0 0.0
        %3254 = vmatmul.mubr.f32.gmra.mrb[0].mxu0 %v1116
        %v3255 = vpop.f32.mrb[0].mxu0
        %v3256 = vadd.f32 0.0, %v3255
        %v3257 = vpop.f32.mrb[0].mxu0
        %3258 = vmatprep.mubr.f32.mxu0 0.0
        %3259 = vmatmul.mubr.f32.gmra.mrb[0].mxu0 %v1119
        %v3260 = vpop.f32.mrb[0].mxu0
        %v3261 = vadd.f32 0.0, %v3260
        %v3262 = vpop.f32.mrb[0].mxu0
        %3263 = vmatprep.mubr.f32.mxu0 0.0
        %3264 = vmatmul.mubr.f32.gmra.mrb[0].mxu0 %v1122
        %v3265 = vpop.f32.mrb[0].mxu0
        %v3266 = vadd.f32 0.0, %v3265
        %v3267 = vpop.f32.mrb[0].mxu0
        %3268 = vdwg.mxu0
        %v3269 = vmul.f32 %v548, %v3191
        %v3270 = vmul.f32 %v553, %v3196
        %v3271 = vmul.f32 %v558, %v3201
        %v3272 = vmul.f32 %v563, %v3206
        %v3273 = vmul.f32 %v568, %v3211
        %v3274 = vmul.f32 %v573, %v3216
        %v3275 = vmul.f32 %v578, %v3221
        %v3276 = vmul.f32 %v583, %v3226
        %v3277 = vmul.f32 %v588, %v3231
        %v3278 = vmul.f32 %v593, %v3236
        %v3279 = vmul.f32 %v598, %v3241
        %v3280 = vmul.f32 %v603, %v3246
        %v3281 = vmul.f32 %v608, %v3251
        %v3282 = vmul.f32 %v613, %v3256
        %v3283 = vmul.f32 %v618, %v3261
        %v3284 = vmul.f32 %v623, %v3266
        %v3286 = vsel %vm899, %v3269, 0
        %v3289 = vsel %vm899, %v3270, 0
        %v3292 = vsel %vm899, %v3271, 0
        %v3295 = vsel %vm899, %v3272, 0
        %v3298 = vsel %vm899, %v3273, 0
        %v3301 = vsel %vm899, %v3274, 0
        %v3304 = vsel %vm899, %v3275, 0
        %v3307 = vsel %vm899, %v3276, 0
        %v3310 = vsel %vm899, %v3277, 0
        %v3313 = vsel %vm899, %v3278, 0
        %v3316 = vsel %vm899, %v3279, 0
        %v3319 = vsel %vm899, %v3280, 0
        %v3322 = vsel %vm899, %v3281, 0
        %v3325 = vsel %vm899, %v3282, 0
        %v3328 = vsel %vm899, %v3283, 0
        %v3331 = vsel %vm899, %v3284, 0
        %3333 = vmatprep.subr.mxu0 0.0
        %3334 = vmatpush1.msra.mxu0 %v626
        %3335 = vmatprep.subr.mxu0 0.0
        %3336 = vmatpush1.msra.mxu0 %v627
        %3337 = vmatprep.subr.mxu0 0.0
        %3338 = vmatpush1.msra.mxu0 %v628
        %3339 = vmatprep.subr.mxu0 0.0
        %3340 = vmatpush1.msra.mxu0 %v629
        %3341 = vmatprep.subr.mxu0 0.0
        %3342 = vmatpush1.msra.mxu0 0.0
        %3343 = vmatprep.subr.mxu0 0.0
        %3344 = vmatpush1.msra.mxu0 0.0
        %3345 = vmatprep.subr.mxu0 0.0
        %3346 = vmatpush1.msra.mxu0 0.0
        %3347 = vmatprep.subr.mxu0 0.0
        %3348 = vmatpush1.msra.mxu0 0.0
        %3349 = vmatprep.subr.mxu0 0.0
        %3350 = vmatpush1.msra.mxu0 0.0
        %3351 = vmatprep.subr.mxu0 0.0
        %3352 = vmatpush1.msra.mxu0 0.0
        %3353 = vmatprep.subr.mxu0 0.0
        %3354 = vmatpush1.msra.mxu0 0.0
        %3355 = vmatprep.subr.mxu0 0.0
        %3356 = vmatpush1.msra.mxu0 0.0
        %3357 = vmatprep.subr.mxu0 0.0
        %3358 = vmatpush1.msra.mxu0 0.0
        %3359 = vmatprep.subr.mxu0 0.0
        %3360 = vmatpush1.msra.mxu0 0.0
        %3361 = vmatprep.subr.mxu0 0.0
        %3362 = vmatpush1.msra.mxu0 0.0
        %3363 = vmatprep.subr.mxu0 0.0
        %3364 = vmatpush1.msra.mxu0 0.0
        %3365 = vmatprep.subr.mxu0 0.0
        %3366 = vmatpush1.msra.mxu0 0.0
        %3367 = vmatprep.subr.mxu0 0.0
        %3368 = vmatpush1.msra.mxu0 0.0
        %3369 = vmatprep.subr.mxu0 0.0
        %3370 = vmatpush1.msra.mxu0 0.0
        %3371 = vmatprep.subr.mxu0 0.0
        %3372 = vmatpush1.msra.mxu0 0.0
        %3373 = vmatprep.subr.mxu0 0.0
        %3374 = vmatpush1.msra.mxu0 0.0
        %3375 = vmatprep.subr.mxu0 0.0
        %3376 = vmatpush1.msra.mxu0 0.0
        %3377 = vmatprep.subr.mxu0 0.0
        %3378 = vmatpush1.msra.mxu0 0.0
        %3379 = vmatprep.subr.mxu0 0.0
        %3380 = vmatpush1.msra.mxu0 0.0
        %3381 = vmatprep.subr.mxu0 0.0
        %3382 = vmatpush1.msra.mxu0 0.0
        %3383 = vmatprep.subr.mxu0 0.0
        %3384 = vmatpush1.msra.mxu0 0.0
        %3385 = vmatprep.subr.mxu0 0.0
        %3386 = vmatpush1.msra.mxu0 0.0
        %3387 = vmatprep.subr.mxu0 0.0
        %3388 = vmatpush1.msra.mxu0 0.0
        %3389 = vmatprep.subr.mxu0 0.0
        %3390 = vmatpush1.msra.mxu0 0.0
        %3391 = vmatprep.subr.mxu0 0.0
        %3392 = vmatpush1.msra.mxu0 0.0
        %3393 = vmatprep.subr.mxu0 0.0
        %3394 = vmatpush1.msra.mxu0 0.0
        %3395 = vmatprep.subr.mxu0 0.0
        %3396 = vmatpush1.msra.mxu0 0.0
        %3397 = vmatprep.mubr.f32.mxu0 0.0
        %3398 = vmatmul.mubr.f32.gmra.mrb[0].mxu0 %v3286
        %v3399 = vpop.f32.mrb[0].mxu0
        %v3400 = vadd.f32 0.0, %v3399
        %v3401 = vpop.f32.mrb[0].mxu0
        %3402 = vmatprep.mubr.f32.mxu0 0.0
        %3403 = vmatmul.mubr.f32.gmra.mrb[0].mxu0 %v3289
        %v3404 = vpop.f32.mrb[0].mxu0
        %v3405 = vadd.f32 0.0, %v3404
        %v3406 = vpop.f32.mrb[0].mxu0
        %3407 = vmatprep.mubr.f32.mxu0 0.0
        %3408 = vmatmul.mubr.f32.gmra.mrb[0].mxu0 %v3292
        %v3409 = vpop.f32.mrb[0].mxu0
        %v3410 = vadd.f32 0.0, %v3409
        %v3411 = vpop.f32.mrb[0].mxu0
        %3412 = vmatprep.mubr.f32.mxu0 0.0
        %3413 = vmatmul.mubr.f32.gmra.mrb[0].mxu0 %v3295
        %v3414 = vpop.f32.mrb[0].mxu0
        %v3415 = vadd.f32 0.0, %v3414
        %v3416 = vpop.f32.mrb[0].mxu0
        %3417 = vmatprep.mubr.f32.mxu0 0.0
        %3418 = vmatmul.mubr.f32.gmra.mrb[0].mxu0 %v3298
        %v3419 = vpop.f32.mrb[0].mxu0
        %v3420 = vadd.f32 0.0, %v3419
        %v3421 = vpop.f32.mrb[0].mxu0
        %3422 = vmatprep.mubr.f32.mxu0 0.0
        %3423 = vmatmul.mubr.f32.gmra.mrb[0].mxu0 %v3301
        %v3424 = vpop.f32.mrb[0].mxu0
        %v3425 = vadd.f32 0.0, %v3424
        %v3426 = vpop.f32.mrb[0].mxu0
        %3427 = vmatprep.mubr.f32.mxu0 0.0
        %3428 = vmatmul.mubr.f32.gmra.mrb[0].mxu0 %v3304
        %v3429 = vpop.f32.mrb[0].mxu0
        %v3430 = vadd.f32 0.0, %v3429
        %v3431 = vpop.f32.mrb[0].mxu0
        %3432 = vmatprep.mubr.f32.mxu0 0.0
        %3433 = vmatmul.mubr.f32.gmra.mrb[0].mxu0 %v3307
        %v3434 = vpop.f32.mrb[0].mxu0
        %v3435 = vadd.f32 0.0, %v3434
        %v3436 = vpop.f32.mrb[0].mxu0
        %3437 = vmatprep.mubr.f32.mxu0 0.0
        %3438 = vmatmul.mubr.f32.gmra.mrb[0].mxu0 %v3310
        %v3439 = vpop.f32.mrb[0].mxu0
        %v3440 = vadd.f32 0.0, %v3439
        %v3441 = vpop.f32.mrb[0].mxu0
        %3442 = vmatprep.mubr.f32.mxu0 0.0
        %3443 = vmatmul.mubr.f32.gmra.mrb[0].mxu0 %v3313
        %v3444 = vpop.f32.mrb[0].mxu0
        %v3445 = vadd.f32 0.0, %v3444
        %v3446 = vpop.f32.mrb[0].mxu0
        %3447 = vmatprep.mubr.f32.mxu0 0.0
        %3448 = vmatmul.mubr.f32.gmra.mrb[0].mxu0 %v3316
        %v3449 = vpop.f32.mrb[0].mxu0
        %v3450 = vadd.f32 0.0, %v3449
        %v3451 = vpop.f32.mrb[0].mxu0
        %3452 = vmatprep.mubr.f32.mxu0 0.0
        %3453 = vmatmul.mubr.f32.gmra.mrb[0].mxu0 %v3319
        %v3454 = vpop.f32.mrb[0].mxu0
        %v3455 = vadd.f32 0.0, %v3454
        %v3456 = vpop.f32.mrb[0].mxu0
        %3457 = vmatprep.mubr.f32.mxu0 0.0
        %3458 = vmatmul.mubr.f32.gmra.mrb[0].mxu0 %v3322
        %v3459 = vpop.f32.mrb[0].mxu0
        %v3460 = vadd.f32 0.0, %v3459
        %v3461 = vpop.f32.mrb[0].mxu0
        %3462 = vmatprep.mubr.f32.mxu0 0.0
        %3463 = vmatmul.mubr.f32.gmra.mrb[0].mxu0 %v3325
        %v3464 = vpop.f32.mrb[0].mxu0
        %v3465 = vadd.f32 0.0, %v3464
        %v3466 = vpop.f32.mrb[0].mxu0
        %3467 = vmatprep.mubr.f32.mxu0 0.0
        %3468 = vmatmul.mubr.f32.gmra.mrb[0].mxu0 %v3328
        %v3469 = vpop.f32.mrb[0].mxu0
        %v3470 = vadd.f32 0.0, %v3469
        %v3471 = vpop.f32.mrb[0].mxu0
        %3472 = vmatprep.mubr.f32.mxu0 0.0
        %3473 = vmatmul.mubr.f32.gmra.mrb[0].mxu0 %v3331
        %v3474 = vpop.f32.mrb[0].mxu0
        %v3475 = vadd.f32 0.0, %v3474
        %v3476 = vpop.f32.mrb[0].mxu0
        %3477 = vdwg.mxu0
        %v3478 = vadd.f32 %v2470, %v3400
        %v3479 = vadd.f32 %v2471, %v3405
        %v3480 = vadd.f32 %v2472, %v3410
        %v3481 = vadd.f32 %v2473, %v3415
        %v3482 = vadd.f32 %v2474, %v3420
        %v3483 = vadd.f32 %v2475, %v3425
        %v3484 = vadd.f32 %v2476, %v3430
        %v3485 = vadd.f32 %v2477, %v3435
        %v3486 = vadd.f32 %v2478, %v3440
        %v3487 = vadd.f32 %v2479, %v3445
        %v3488 = vadd.f32 %v2480, %v3450
        %v3489 = vadd.f32 %v2481, %v3455
        %v3490 = vadd.f32 %v2482, %v3460
        %v3491 = vadd.f32 %v2483, %v3465
        %v3492 = vadd.f32 %v2484, %v3470
        %v3493 = vadd.f32 %v2485, %v3475
        %v3494 = vsel %vm649, %v3478, -inf
        %3495 = vmax.xlane.f32.xlu0 %v3494
        %v3496 = vpop.xlane.xlu0 %3495
        %v3497 = vsel %vm649, %v3479, -inf
        %3498 = vmax.xlane.f32.xlu0 %v3497
        %v3499 = vpop.xlane.xlu0 %3498
        %v3500 = vsel %vm649, %v3480, -inf
        %3501 = vmax.xlane.f32.xlu0 %v3500
        %v3502 = vpop.xlane.xlu0 %3501
        %v3503 = vsel %vm649, %v3481, -inf
        %3504 = vmax.xlane.f32.xlu0 %v3503
        %v3505 = vpop.xlane.xlu0 %3504
        %v3506 = vsel %vm649, %v3482, -inf
        %3507 = vmax.xlane.f32.xlu0 %v3506
        %v3508 = vpop.xlane.xlu0 %3507
        %v3509 = vsel %vm649, %v3483, -inf
        %3510 = vmax.xlane.f32.xlu0 %v3509
        %v3511 = vpop.xlane.xlu0 %3510
        %v3512 = vsel %vm649, %v3484, -inf
        %3513 = vmax.xlane.f32.xlu0 %v3512
        %v3514 = vpop.xlane.xlu0 %3513
        %v3515 = vsel %vm649, %v3485, -inf
        %3516 = vmax.xlane.f32.xlu0 %v3515
        %v3517 = vpop.xlane.xlu0 %3516
        %v3518 = vsel %vm649, %v3486, -inf
        %3519 = vmax.xlane.f32.xlu0 %v3518
        %v3520 = vpop.xlane.xlu0 %3519
        %v3521 = vsel %vm649, %v3487, -inf
        %3522 = vmax.xlane.f32.xlu0 %v3521
        %v3523 = vpop.xlane.xlu0 %3522
        %v3524 = vsel %vm649, %v3488, -inf
        %3525 = vmax.xlane.f32.xlu0 %v3524
        %v3526 = vpop.xlane.xlu0 %3525
        %v3527 = vsel %vm649, %v3489, -inf
        %3528 = vmax.xlane.f32.xlu0 %v3527
        %v3529 = vpop.xlane.xlu0 %3528
        %v3530 = vsel %vm649, %v3490, -inf
        %3531 = vmax.xlane.f32.xlu0 %v3530
        %v3532 = vpop.xlane.xlu0 %3531
        %v3533 = vsel %vm649, %v3491, -inf
        %3534 = vmax.xlane.f32.xlu0 %v3533
        %v3535 = vpop.xlane.xlu0 %3534
        %v3536 = vsel %vm649, %v3492, -inf
        %3537 = vmax.xlane.f32.xlu0 %v3536
        %v3538 = vpop.xlane.xlu0 %3537
        %v3539 = vsel %vm649, %v3493, -inf
        %3540 = vmax.xlane.f32.xlu0 %v3539
        %v3541 = vpop.xlane.xlu0 %3540
        %v3542 = vsub.f32 %v3478, %v3496
        %v3543 = vsub.f32 %v3479, %v3499
        %v3544 = vsub.f32 %v3480, %v3502
        %v3545 = vsub.f32 %v3481, %v3505
        %v3546 = vsub.f32 %v3482, %v3508
        %v3547 = vsub.f32 %v3483, %v3511
        %v3548 = vsub.f32 %v3484, %v3514
        %v3549 = vsub.f32 %v3485, %v3517
        %v3550 = vsub.f32 %v3486, %v3520
        %v3551 = vsub.f32 %v3487, %v3523
        %v3552 = vsub.f32 %v3488, %v3526
        %v3553 = vsub.f32 %v3489, %v3529
        %v3554 = vsub.f32 %v3490, %v3532
        %v3555 = vsub.f32 %v3491, %v3535
        %v3556 = vsub.f32 %v3492, %v3538
        %v3557 = vsub.f32 %v3493, %v3541
        %v3558 = vmul.f32 %v3542, 1.442695
        %v3559 = vpow.pop %v3558
        %v3560 = vmul.f32 %v3543, 1.442695
        %v3561 = vpow.pop %v3560
        %v3562 = vmul.f32 %v3544, 1.442695
        %v3563 = vpow.pop %v3562
        %v3564 = vmul.f32 %v3545, 1.442695
        %v3565 = vpow.pop %v3564
        %v3566 = vmul.f32 %v3546, 1.442695
        %v3567 = vpow.pop %v3566
        %v3568 = vmul.f32 %v3547, 1.442695
        %v3569 = vpow.pop %v3568
        %v3570 = vmul.f32 %v3548, 1.442695
        %v3571 = vpow.pop %v3570
        %v3572 = vmul.f32 %v3549, 1.442695
        %v3573 = vpow.pop %v3572
        %v3574 = vmul.f32 %v3550, 1.442695
        %v3575 = vpow.pop %v3574
        %v3576 = vmul.f32 %v3551, 1.442695
        %v3577 = vpow.pop %v3576
        %v3578 = vmul.f32 %v3552, 1.442695
        %v3579 = vpow.pop %v3578
        %v3580 = vmul.f32 %v3553, 1.442695
        %v3581 = vpow.pop %v3580
        %v3582 = vmul.f32 %v3554, 1.442695
        %v3583 = vpow.pop %v3582
        %v3584 = vmul.f32 %v3555, 1.442695
        %v3585 = vpow.pop %v3584
        %v3586 = vmul.f32 %v3556, 1.442695
        %v3587 = vpow.pop %v3586
        %v3588 = vmul.f32 %v3557, 1.442695
        %v3589 = vpow.pop %v3588
        %v3590 = vsel %vm649, %v3559, 0.0
        %3591 = vadd.xlane.f32.xlu0 %v3590
        %v3592 = vpop.xlane.xlu0 %3591
        %v3593 = vsel %vm649, %v3561, 0.0
        %3594 = vadd.xlane.f32.xlu0 %v3593
        %v3595 = vpop.xlane.xlu0 %3594
        %v3596 = vsel %vm649, %v3563, 0.0
        %3597 = vadd.xlane.f32.xlu0 %v3596
        %v3598 = vpop.xlane.xlu0 %3597
        %v3599 = vsel %vm649, %v3565, 0.0
        %3600 = vadd.xlane.f32.xlu0 %v3599
        %v3601 = vpop.xlane.xlu0 %3600
        %v3602 = vsel %vm649, %v3567, 0.0
        %3603 = vadd.xlane.f32.xlu0 %v3602
        %v3604 = vpop.xlane.xlu0 %3603
        %v3605 = vsel %vm649, %v3569, 0.0
        %3606 = vadd.xlane.f32.xlu0 %v3605
        %v3607 = vpop.xlane.xlu0 %3606
        %v3608 = vsel %vm649, %v3571, 0.0
        %3609 = vadd.xlane.f32.xlu0 %v3608
        %v3610 = vpop.xlane.xlu0 %3609
        %v3611 = vsel %vm649, %v3573, 0.0
        %3612 = vadd.xlane.f32.xlu0 %v3611
        %v3613 = vpop.xlane.xlu0 %3612
        %v3614 = vsel %vm649, %v3575, 0.0
        %3615 = vadd.xlane.f32.xlu0 %v3614
        %v3616 = vpop.xlane.xlu0 %3615
        %v3617 = vsel %vm649, %v3577, 0.0
        %3618 = vadd.xlane.f32.xlu0 %v3617
        %v3619 = vpop.xlane.xlu0 %3618
        %v3620 = vsel %vm649, %v3579, 0.0
        %3621 = vadd.xlane.f32.xlu0 %v3620
        %v3622 = vpop.xlane.xlu0 %3621
        %v3623 = vsel %vm649, %v3581, 0.0
        %3624 = vadd.xlane.f32.xlu0 %v3623
        %v3625 = vpop.xlane.xlu0 %3624
        %v3626 = vsel %vm649, %v3583, 0.0
        %3627 = vadd.xlane.f32.xlu0 %v3626
        %v3628 = vpop.xlane.xlu0 %3627
        %v3629 = vsel %vm649, %v3585, 0.0
        %3630 = vadd.xlane.f32.xlu0 %v3629
        %v3631 = vpop.xlane.xlu0 %3630
        %v3632 = vsel %vm649, %v3587, 0.0
        %3633 = vadd.xlane.f32.xlu0 %v3632
        %v3634 = vpop.xlane.xlu0 %3633
        %v3635 = vsel %vm649, %v3589, 0.0
        %3636 = vadd.xlane.f32.xlu0 %v3635
        %v3637 = vpop.xlane.xlu0 %3636
        %v3638 = vrcp.pop %v3592
        %v3639 = vrcp.pop %v3595
        %v3640 = vrcp.pop %v3598
        %v3641 = vrcp.pop %v3601
        %v3642 = vrcp.pop %v3604
        %v3643 = vrcp.pop %v3607
        %v3644 = vrcp.pop %v3610
        %v3645 = vrcp.pop %v3613
        %v3646 = vrcp.pop %v3616
        %v3647 = vrcp.pop %v3619
        %v3648 = vrcp.pop %v3622
        %v3649 = vrcp.pop %v3625
        %v3650 = vrcp.pop %v3628
        %v3651 = vrcp.pop %v3631
        %v3652 = vrcp.pop %v3634
        %v3653 = vrcp.pop %v3637
        %v3654 = vmul.f32 %v3559, %v3638
        %v3655 = vmul.f32 %v3561, %v3639
        %v3656 = vmul.f32 %v3563, %v3640
        %v3657 = vmul.f32 %v3565, %v3641
        %v3658 = vmul.f32 %v3567, %v3642
        %v3659 = vmul.f32 %v3569, %v3643
        %v3660 = vmul.f32 %v3571, %v3644
        %v3661 = vmul.f32 %v3573, %v3645
        %v3662 = vmul.f32 %v3575, %v3646
        %v3663 = vmul.f32 %v3577, %v3647
        %v3664 = vmul.f32 %v3579, %v3648
        %v3665 = vmul.f32 %v3581, %v3649
        %v3666 = vmul.f32 %v3583, %v3650
        %v3667 = vmul.f32 %v3585, %v3651
        %v3668 = vmul.f32 %v3587, %v3652
        %v3669 = vmul.f32 %v3589, %v3653
        %v3671 = vsel %vm649, %v3654, 0
        %v3674 = vsel %vm649, %v3655, 0
        %v3677 = vsel %vm649, %v3656, 0
        %v3680 = vsel %vm649, %v3657, 0
        %v3683 = vsel %vm649, %v3658, 0
        %v3686 = vsel %vm649, %v3659, 0
        %v3689 = vsel %vm649, %v3660, 0
        %v3692 = vsel %vm649, %v3661, 0
        %v3695 = vsel %vm649, %v3662, 0
        %v3698 = vsel %vm649, %v3663, 0
        %v3701 = vsel %vm649, %v3664, 0
        %v3704 = vsel %vm649, %v3665, 0
        %v3707 = vsel %vm649, %v3666, 0
        %v3710 = vsel %vm649, %v3667, 0
        %v3713 = vsel %vm649, %v3668, 0
        %v3716 = vsel %vm649, %v3669, 0
        %3718 = vmatprep.subr.mxu0 0.0
        %3719 = vmatpush1.msra.mxu0 %v659
        %3720 = vmatprep.subr.mxu0 0.0
        %3721 = vmatpush1.msra.mxu0 0.0
        %3722 = vmatprep.subr.mxu0 0.0
        %3723 = vmatpush1.msra.mxu0 0.0
        %3724 = vmatprep.subr.mxu0 0.0
        %3725 = vmatpush1.msra.mxu0 0.0
        %3726 = vmatprep.subr.mxu0 0.0
        %3727 = vmatpush1.msra.mxu0 0.0
        %3728 = vmatprep.subr.mxu0 0.0
        %3729 = vmatpush1.msra.mxu0 0.0
        %3730 = vmatprep.subr.mxu0 0.0
        %3731 = vmatpush1.msra.mxu0 0.0
        %3732 = vmatprep.subr.mxu0 0.0
        %3733 = vmatpush1.msra.mxu0 0.0
        %3734 = vmatprep.subr.mxu0 0.0
        %3735 = vmatpush1.msra.mxu0 0.0
        %3736 = vmatprep.subr.mxu0 0.0
        %3737 = vmatpush1.msra.mxu0 0.0
        %3738 = vmatprep.subr.mxu0 0.0
        %3739 = vmatpush1.msra.mxu0 0.0
        %3740 = vmatprep.subr.mxu0 0.0
        %3741 = vmatpush1.msra.mxu0 0.0
        %3742 = vmatprep.subr.mxu0 0.0
        %3743 = vmatpush1.msra.mxu0 0.0
        %3744 = vmatprep.subr.mxu0 0.0
        %3745 = vmatpush1.msra.mxu0 0.0
        %3746 = vmatprep.subr.mxu0 0.0
        %3747 = vmatpush1.msra.mxu0 0.0
        %3748 = vmatprep.subr.mxu0 0.0
        %3749 = vmatpush1.msra.mxu0 0.0
        %3750 = vmatprep.subr.mxu0 0.0
        %3751 = vmatpush1.msra.mxu0 0.0
        %3752 = vmatprep.subr.mxu0 0.0
        %3753 = vmatpush1.msra.mxu0 0.0
        %3754 = vmatprep.subr.mxu0 0.0
        %3755 = vmatpush1.msra.mxu0 0.0
        %3756 = vmatprep.subr.mxu0 0.0
        %3757 = vmatpush1.msra.mxu0 0.0
        %3758 = vmatprep.subr.mxu0 0.0
        %3759 = vmatpush1.msra.mxu0 0.0
        %3760 = vmatprep.subr.mxu0 0.0
        %3761 = vmatpush1.msra.mxu0 0.0
        %3762 = vmatprep.subr.mxu0 0.0
        %3763 = vmatpush1.msra.mxu0 0.0
        %3764 = vmatprep.subr.mxu0 0.0
        %3765 = vmatpush1.msra.mxu0 0.0
        %3766 = vmatprep.subr.mxu0 0.0
        %3767 = vmatpush1.msra.mxu0 0.0
        %3768 = vmatprep.subr.mxu0 0.0
        %3769 = vmatpush1.msra.mxu0 0.0
        %3770 = vmatprep.subr.mxu0 0.0
        %3771 = vmatpush1.msra.mxu0 0.0
        %3772 = vmatprep.subr.mxu0 0.0
        %3773 = vmatpush1.msra.mxu0 0.0
        %3774 = vmatprep.subr.mxu0 0.0
        %3775 = vmatpush1.msra.mxu0 0.0
        %3776 = vmatprep.subr.mxu0 0.0
        %3777 = vmatpush1.msra.mxu0 0.0
        %3778 = vmatprep.subr.mxu0 0.0
        %3779 = vmatpush1.msra.mxu0 0.0
        %3780 = vmatprep.subr.mxu0 0.0
        %3781 = vmatpush1.msra.mxu0 0.0
        %3782 = vmatprep.mubr.f32.mxu0 0.0
        %3783 = vmatmul.mubr.f32.gmra.mrb[0].mxu0 %v3671
        %v3784 = vpop.f32.mrb[0].mxu0
        %v3785 = vadd.f32 0.0, %v3784
        %v3786 = vpop.f32.mrb[0].mxu0
        %3787 = vmatprep.mubr.f32.mxu0 0.0
        %3788 = vmatmul.mubr.f32.gmra.mrb[0].mxu0 %v3674
        %v3789 = vpop.f32.mrb[0].mxu0
        %v3790 = vadd.f32 0.0, %v3789
        %v3791 = vpop.f32.mrb[0].mxu0
        %3792 = vmatprep.mubr.f32.mxu0 0.0
        %3793 = vmatmul.mubr.f32.gmra.mrb[0].mxu0 %v3677
        %v3794 = vpop.f32.mrb[0].mxu0
        %v3795 = vadd.f32 0.0, %v3794
        %v3796 = vpop.f32.mrb[0].mxu0
        %3797 = vmatprep.mubr.f32.mxu0 0.0
        %3798 = vmatmul.mubr.f32.gmra.mrb[0].mxu0 %v3680
        %v3799 = vpop.f32.mrb[0].mxu0
        %v3800 = vadd.f32 0.0, %v3799
        %v3801 = vpop.f32.mrb[0].mxu0
        %3802 = vmatprep.mubr.f32.mxu0 0.0
        %3803 = vmatmul.mubr.f32.gmra.mrb[0].mxu0 %v3683
        %v3804 = vpop.f32.mrb[0].mxu0
        %v3805 = vadd.f32 0.0, %v3804
        %v3806 = vpop.f32.mrb[0].mxu0
        %3807 = vmatprep.mubr.f32.mxu0 0.0
        %3808 = vmatmul.mubr.f32.gmra.mrb[0].mxu0 %v3686
        %v3809 = vpop.f32.mrb[0].mxu0
        %v3810 = vadd.f32 0.0, %v3809
        %v3811 = vpop.f32.mrb[0].mxu0
        %3812 = vmatprep.mubr.f32.mxu0 0.0
        %3813 = vmatmul.mubr.f32.gmra.mrb[0].mxu0 %v3689
        %v3814 = vpop.f32.mrb[0].mxu0
        %v3815 = vadd.f32 0.0, %v3814
        %v3816 = vpop.f32.mrb[0].mxu0
        %3817 = vmatprep.mubr.f32.mxu0 0.0
        %3818 = vmatmul.mubr.f32.gmra.mrb[0].mxu0 %v3692
        %v3819 = vpop.f32.mrb[0].mxu0
        %v3820 = vadd.f32 0.0, %v3819
        %v3821 = vpop.f32.mrb[0].mxu0
        %3822 = vmatprep.mubr.f32.mxu0 0.0
        %3823 = vmatmul.mubr.f32.gmra.mrb[0].mxu0 %v3695
        %v3824 = vpop.f32.mrb[0].mxu0
        %v3825 = vadd.f32 0.0, %v3824
        %v3826 = vpop.f32.mrb[0].mxu0
        %3827 = vmatprep.mubr.f32.mxu0 0.0
        %3828 = vmatmul.mubr.f32.gmra.mrb[0].mxu0 %v3698
        %v3829 = vpop.f32.mrb[0].mxu0
        %v3830 = vadd.f32 0.0, %v3829
        %v3831 = vpop.f32.mrb[0].mxu0
        %3832 = vmatprep.mubr.f32.mxu0 0.0
        %3833 = vmatmul.mubr.f32.gmra.mrb[0].mxu0 %v3701
        %v3834 = vpop.f32.mrb[0].mxu0
        %v3835 = vadd.f32 0.0, %v3834
        %v3836 = vpop.f32.mrb[0].mxu0
        %3837 = vmatprep.mubr.f32.mxu0 0.0
        %3838 = vmatmul.mubr.f32.gmra.mrb[0].mxu0 %v3704
        %v3839 = vpop.f32.mrb[0].mxu0
        %v3840 = vadd.f32 0.0, %v3839
        %v3841 = vpop.f32.mrb[0].mxu0
        %3842 = vmatprep.mubr.f32.mxu0 0.0
        %3843 = vmatmul.mubr.f32.gmra.mrb[0].mxu0 %v3707
        %v3844 = vpop.f32.mrb[0].mxu0
        %v3845 = vadd.f32 0.0, %v3844
        %v3846 = vpop.f32.mrb[0].mxu0
        %3847 = vmatprep.mubr.f32.mxu0 0.0
        %3848 = vmatmul.mubr.f32.gmra.mrb[0].mxu0 %v3710
        %v3849 = vpop.f32.mrb[0].mxu0
        %v3850 = vadd.f32 0.0, %v3849
        %v3851 = vpop.f32.mrb[0].mxu0
        %3852 = vmatprep.mubr.f32.mxu0 0.0
        %3853 = vmatmul.mubr.f32.gmra.mrb[0].mxu0 %v3713
        %v3854 = vpop.f32.mrb[0].mxu0
        %v3855 = vadd.f32 0.0, %v3854
        %v3856 = vpop.f32.mrb[0].mxu0
        %3857 = vmatprep.mubr.f32.mxu0 0.0
        %3858 = vmatmul.mubr.f32.gmra.mrb[0].mxu0 %v3716
        %v3859 = vpop.f32.mrb[0].mxu0
        %v3860 = vadd.f32 0.0, %v3859
        %v3861 = vpop.f32.mrb[0].mxu0
        %3862 = vdwg.mxu0
        %v3863 = vmul.f32 %v3785, %v548
        %v3864 = vmul.f32 %v3790, %v553
        %v3865 = vmul.f32 %v3795, %v558
        %v3866 = vmul.f32 %v3800, %v563
        %v3867 = vmul.f32 %v3805, %v568
        %v3868 = vmul.f32 %v3810, %v573
        %v3869 = vmul.f32 %v3815, %v578
        %v3870 = vmul.f32 %v3820, %v583
        %v3871 = vmul.f32 %v3825, %v588
        %v3872 = vmul.f32 %v3830, %v593
        %v3873 = vmul.f32 %v3835, %v598
        %v3874 = vmul.f32 %v3840, %v603
        %v3875 = vmul.f32 %v3845, %v608
        %v3876 = vmul.f32 %v3850, %v613
        %v3877 = vmul.f32 %v3855, %v618
        %v3878 = vmul.f32 %v3860, %v623
        %3879 = vmatprep.subr.mxu0 0.0
        %3880 = vmatpush1.msra.mxu0 %v3863
        %3881 = vmatprep.subr.mxu0 0.0
        %3882 = vmatpush1.msra.mxu0 %v3864
        %3883 = vmatprep.subr.mxu0 0.0
        %3884 = vmatpush1.msra.mxu0 %v3865
        %3885 = vmatprep.subr.mxu0 0.0
        %3886 = vmatpush1.msra.mxu0 %v3866
        %3887 = vmatprep.subr.mxu0 0.0
        %3888 = vmatpush1.msra.mxu0 %v3867
        %3889 = vmatprep.subr.mxu0 0.0
        %3890 = vmatpush1.msra.mxu0 %v3868
        %3891 = vmatprep.subr.mxu0 0.0
        %3892 = vmatpush1.msra.mxu0 %v3869
        %3893 = vmatprep.subr.mxu0 0.0
        %3894 = vmatpush1.msra.mxu0 %v3870
        %3895 = vmatprep.subr.mxu0 0.0
        %3896 = vmatpush1.msra.mxu0 %v3871
        %3897 = vmatprep.subr.mxu0 0.0
        %3898 = vmatpush1.msra.mxu0 %v3872
        %3899 = vmatprep.subr.mxu0 0.0
        %3900 = vmatpush1.msra.mxu0 %v3873
        %3901 = vmatprep.subr.mxu0 0.0
        %3902 = vmatpush1.msra.mxu0 %v3874
        %3903 = vmatprep.subr.mxu0 0.0
        %3904 = vmatpush1.msra.mxu0 %v3875
        %3905 = vmatprep.subr.mxu0 0.0
        %3906 = vmatpush1.msra.mxu0 %v3876
        %3907 = vmatprep.subr.mxu0 0.0
        %3908 = vmatpush1.msra.mxu0 %v3877
        %3909 = vmatprep.subr.mxu0 0.0
        %3910 = vmatpush1.msra.mxu0 %v3878
        %3911 = vmatprep.subr.mxu0 0.0
        %3912 = vmatpush1.msra.mxu0 0.0
        %3913 = vmatprep.subr.mxu0 0.0
        %3914 = vmatpush1.msra.mxu0 0.0
        %3915 = vmatprep.subr.mxu0 0.0
        %3916 = vmatpush1.msra.mxu0 0.0
        %3917 = vmatprep.subr.mxu0 0.0
        %3918 = vmatpush1.msra.mxu0 0.0
        %3919 = vmatprep.subr.mxu0 0.0
        %3920 = vmatpush1.msra.mxu0 0.0
        %3921 = vmatprep.subr.mxu0 0.0
        %3922 = vmatpush1.msra.mxu0 0.0
        %3923 = vmatprep.subr.mxu0 0.0
        %3924 = vmatpush1.msra.mxu0 0.0
        %3925 = vmatprep.subr.mxu0 0.0
        %3926 = vmatpush1.msra.mxu0 0.0
        %3927 = vmatprep.subr.mxu0 0.0
        %3928 = vmatpush1.msra.mxu0 0.0
        %3929 = vmatprep.subr.mxu0 0.0
        %3930 = vmatpush1.msra.mxu0 0.0
        %3931 = vmatprep.subr.mxu0 0.0
        %3932 = vmatpush1.msra.mxu0 0.0
        %3933 = vmatprep.subr.mxu0 0.0
        %3934 = vmatpush1.msra.mxu0 0.0
        %3935 = vmatprep.subr.mxu0 0.0
        %3936 = vmatpush1.msra.mxu0 0.0
        %3937 = vmatprep.subr.mxu0 0.0
        %3938 = vmatpush1.msra.mxu0 0.0
        %3939 = vmatprep.subr.mxu0 0.0
        %3940 = vmatpush1.msra.mxu0 0.0
        %3941 = vmatprep.subr.mxu0 0.0
        %3942 = vmatpush1.msra.mxu0 0.0
        %3943 = vmatprep.mubr.f32.mxu0 0.0
        %3944 = vmatmul.mubr.f32.gmra.mrb[0].mxu0 %v647
        %v3945 = vpop.f32.mrb[0].mxu0
        %v3946 = vadd.f32 0.0, %v3945
        %v3947 = vpop.f32.mrb[0].mxu0
        %3948 = vmatprep.mubr.f32.mxu0 0.0
        %3949 = vmatmul.mubr.f32.gmra.mrb[0].mxu0 %v648
        %v3950 = vpop.f32.mrb[0].mxu0
        %v3951 = vadd.f32 0.0, %v3950
        %v3952 = vpop.f32.mrb[0].mxu0
        %3953 = vdwg.mxu0
        %v3954 = vmul.f32 %v3946, %v3946
        %v3955 = vmul.f32 %v3951, %v3951
        %v3957 = vsel %vm899, %v3954, 0
        %v3960 = vsel %vm899, %v3955, 0
        %3962 = vmatprep.subr.mxu0 0.0
        %3963 = vmatpush1.msra.mxu0 %v626
        %3964 = vmatprep.subr.mxu0 0.0
        %3965 = vmatpush1.msra.mxu0 %v627
        %3966 = vmatprep.subr.mxu0 0.0
        %3967 = vmatpush1.msra.mxu0 %v628
        %3968 = vmatprep.subr.mxu0 0.0
        %3969 = vmatpush1.msra.mxu0 %v629
        %3970 = vmatprep.subr.mxu0 0.0
        %3971 = vmatpush1.msra.mxu0 0.0
        %3972 = vmatprep.subr.mxu0 0.0
        %3973 = vmatpush1.msra.mxu0 0.0
        %3974 = vmatprep.subr.mxu0 0.0
        %3975 = vmatpush1.msra.mxu0 0.0
        %3976 = vmatprep.subr.mxu0 0.0
        %3977 = vmatpush1.msra.mxu0 0.0
        %3978 = vmatprep.subr.mxu0 0.0
        %3979 = vmatpush1.msra.mxu0 0.0
        %3980 = vmatprep.subr.mxu0 0.0
        %3981 = vmatpush1.msra.mxu0 0.0
        %3982 = vmatprep.subr.mxu0 0.0
        %3983 = vmatpush1.msra.mxu0 0.0
        %3984 = vmatprep.subr.mxu0 0.0
        %3985 = vmatpush1.msra.mxu0 0.0
        %3986 = vmatprep.subr.mxu0 0.0
        %3987 = vmatpush1.msra.mxu0 0.0
        %3988 = vmatprep.subr.mxu0 0.0
        %3989 = vmatpush1.msra.mxu0 0.0
        %3990 = vmatprep.subr.mxu0 0.0
        %3991 = vmatpush1.msra.mxu0 0.0
        %3992 = vmatprep.subr.mxu0 0.0
        %3993 = vmatpush1.msra.mxu0 0.0
        %3994 = vmatprep.subr.mxu0 0.0
        %3995 = vmatpush1.msra.mxu0 0.0
        %3996 = vmatprep.subr.mxu0 0.0
        %3997 = vmatpush1.msra.mxu0 0.0
        %3998 = vmatprep.subr.mxu0 0.0
        %3999 = vmatpush1.msra.mxu0 0.0
        %4000 = vmatprep.subr.mxu0 0.0
        %4001 = vmatpush1.msra.mxu0 0.0
        %4002 = vmatprep.subr.mxu0 0.0
        %4003 = vmatpush1.msra.mxu0 0.0
        %4004 = vmatprep.subr.mxu0 0.0
        %4005 = vmatpush1.msra.mxu0 0.0
        %4006 = vmatprep.subr.mxu0 0.0
        %4007 = vmatpush1.msra.mxu0 0.0
        %4008 = vmatprep.subr.mxu0 0.0
        %4009 = vmatpush1.msra.mxu0 0.0
        %4010 = vmatprep.subr.mxu0 0.0
        %4011 = vmatpush1.msra.mxu0 0.0
        %4012 = vmatprep.subr.mxu0 0.0
        %4013 = vmatpush1.msra.mxu0 0.0
        %4014 = vmatprep.subr.mxu0 0.0
        %4015 = vmatpush1.msra.mxu0 0.0
        %4016 = vmatprep.subr.mxu0 0.0
        %4017 = vmatpush1.msra.mxu0 0.0
        %4018 = vmatprep.subr.mxu0 0.0
        %4019 = vmatpush1.msra.mxu0 0.0
        %4020 = vmatprep.subr.mxu0 0.0
        %4021 = vmatpush1.msra.mxu0 0.0
        %4022 = vmatprep.subr.mxu0 0.0
        %4023 = vmatpush1.msra.mxu0 0.0
        %4024 = vmatprep.subr.mxu0 0.0
        %4025 = vmatpush1.msra.mxu0 0.0
        %4026 = vmatprep.mubr.f32.mxu0 0.0
        %4027 = vmatmul.mubr.f32.gmra.mrb[0].mxu0 %v3957
        %v4028 = vpop.f32.mrb[0].mxu0
        %v4029 = vadd.f32 0.0, %v4028
        %v4030 = vpop.f32.mrb[0].mxu0
        %4031 = vmatprep.mubr.f32.mxu0 0.0
        %4032 = vmatmul.mubr.f32.gmra.mrb[0].mxu0 %v3960
        %v4033 = vpop.f32.mrb[0].mxu0
        %v4034 = vadd.f32 0.0, %v4033
        %v4035 = vpop.f32.mrb[0].mxu0
        %4036 = vdwg.mxu0
        %v4037 = vadd.f32 %v4029, 1.0
        %v4038 = vadd.f32 %v4034, 1.0
        %v4039 = vrcp.pop %v4037
        %v4040 = vrcp.pop %v4038
        %v4041 = vmul.f32 %v4029, %v4039
        %v4042 = vmul.f32 %v4034, %v4040
        %v4043 = vadd.f32 %v4029, 1e-09
        %v4044 = vadd.f32 %v4034, 1e-09
        %v4045 = vrsqrt.pop %v4043
        %v4046 = vrsqrt.pop %v4044
        %v4047 = vmul.f32 %v4041, %v4045
        %v4048 = vmul.f32 %v4042, %v4046
        %v4050 = vsel %vm649, %v4047, 0
        %v4053 = vsel %vm649, %v4048, 0
        %4055 = vmatprep.subr.mxu0 0.0
        %4056 = vmatpush1.msra.mxu0 %v659
        %4057 = vmatprep.subr.mxu0 0.0
        %4058 = vmatpush1.msra.mxu0 0.0
        %4059 = vmatprep.subr.mxu0 0.0
        %4060 = vmatpush1.msra.mxu0 0.0
        %4061 = vmatprep.subr.mxu0 0.0
        %4062 = vmatpush1.msra.mxu0 0.0
        %4063 = vmatprep.subr.mxu0 0.0
        %4064 = vmatpush1.msra.mxu0 0.0
        %4065 = vmatprep.subr.mxu0 0.0
        %4066 = vmatpush1.msra.mxu0 0.0
        %4067 = vmatprep.subr.mxu0 0.0
        %4068 = vmatpush1.msra.mxu0 0.0
        %4069 = vmatprep.subr.mxu0 0.0
        %4070 = vmatpush1.msra.mxu0 0.0
        %4071 = vmatprep.subr.mxu0 0.0
        %4072 = vmatpush1.msra.mxu0 0.0
        %4073 = vmatprep.subr.mxu0 0.0
        %4074 = vmatpush1.msra.mxu0 0.0
        %4075 = vmatprep.subr.mxu0 0.0
        %4076 = vmatpush1.msra.mxu0 0.0
        %4077 = vmatprep.subr.mxu0 0.0
        %4078 = vmatpush1.msra.mxu0 0.0
        %4079 = vmatprep.subr.mxu0 0.0
        %4080 = vmatpush1.msra.mxu0 0.0
        %4081 = vmatprep.subr.mxu0 0.0
        %4082 = vmatpush1.msra.mxu0 0.0
        %4083 = vmatprep.subr.mxu0 0.0
        %4084 = vmatpush1.msra.mxu0 0.0
        %4085 = vmatprep.subr.mxu0 0.0
        %4086 = vmatpush1.msra.mxu0 0.0
        %4087 = vmatprep.subr.mxu0 0.0
        %4088 = vmatpush1.msra.mxu0 0.0
        %4089 = vmatprep.subr.mxu0 0.0
        %4090 = vmatpush1.msra.mxu0 0.0
        %4091 = vmatprep.subr.mxu0 0.0
        %4092 = vmatpush1.msra.mxu0 0.0
        %4093 = vmatprep.subr.mxu0 0.0
        %4094 = vmatpush1.msra.mxu0 0.0
        %4095 = vmatprep.subr.mxu0 0.0
        %4096 = vmatpush1.msra.mxu0 0.0
        %4097 = vmatprep.subr.mxu0 0.0
        %4098 = vmatpush1.msra.mxu0 0.0
        %4099 = vmatprep.subr.mxu0 0.0
        %4100 = vmatpush1.msra.mxu0 0.0
        %4101 = vmatprep.subr.mxu0 0.0
        %4102 = vmatpush1.msra.mxu0 0.0
        %4103 = vmatprep.subr.mxu0 0.0
        %4104 = vmatpush1.msra.mxu0 0.0
        %4105 = vmatprep.subr.mxu0 0.0
        %4106 = vmatpush1.msra.mxu0 0.0
        %4107 = vmatprep.subr.mxu0 0.0
        %4108 = vmatpush1.msra.mxu0 0.0
        %4109 = vmatprep.subr.mxu0 0.0
        %4110 = vmatpush1.msra.mxu0 0.0
        %4111 = vmatprep.subr.mxu0 0.0
        %4112 = vmatpush1.msra.mxu0 0.0
        %4113 = vmatprep.subr.mxu0 0.0
        %4114 = vmatpush1.msra.mxu0 0.0
        %4115 = vmatprep.subr.mxu0 0.0
        %4116 = vmatpush1.msra.mxu0 0.0
        %4117 = vmatprep.subr.mxu0 0.0
        %4118 = vmatpush1.msra.mxu0 0.0
        %4119 = vmatprep.mubr.f32.mxu0 0.0
        %4120 = vmatmul.mubr.f32.gmra.mrb[0].mxu0 %v4050
        %v4121 = vpop.f32.mrb[0].mxu0
        %v4122 = vadd.f32 0.0, %v4121
        %v4123 = vpop.f32.mrb[0].mxu0
        %4124 = vmatprep.mubr.f32.mxu0 0.0
        %4125 = vmatmul.mubr.f32.gmra.mrb[0].mxu0 %v4053
        %v4126 = vpop.f32.mrb[0].mxu0
        %v4127 = vadd.f32 0.0, %v4126
        %v4128 = vpop.f32.mrb[0].mxu0
        %4129 = vdwg.mxu0
        %v4130 = vmul.f32 %v4122, %v3946
        %v4131 = vmul.f32 %v4127, %v3951
        %4132 = vst.msk [vmem:[%s288] sm:$0xff] %vm899, %v4130
        %4133 = vst.msk [vmem:[%s288 + $0x8] sm:$0xff] %vm899, %v4131
        %s4134 = sand.u32 %s186, 1
        %s4135 = scalar_lea.sflag [#allocation3], %s4134
        %s4136 = sand.u32 %s186, 1
        %s4137 = smul.addr %s4136, 16
        %s4138 = scalar_lea.vmem [#allocation2], %s4137
        // Predicated region
        $region49: #{tpu_custom_call.1} parent=47 // pred_check
          %p4139 = pneg %p196
        $region50: #{tpu_custom_call.1} parent=47 // pred_check_branch
          %4141 = sbr.rel (%p4139) target = $region52
        $region51: #{tpu_custom_call.1} parent=47 // pred_region
          %s4142 = smul.u32 2, %s21
          %s4144 = ssub.s32 256, 256
          %4145 = vsyncadd %s4135, %s4144
          %s4146 = smul.addr %s4142, 128
          %s4147 = scalar_lea.hbm %s7, %s4146
          %s4148 = sshll.u32 %s4138, 4
          %s4149 = int_to_ptr.vmem [resolvable:$true] %s4148
          %4154 = dma.vmem_to_hbm [thread:$0]  %s4149, 256, %s4147, %s4135, 128, 128, 8
        $region52: #{tpu_custom_call.1} parent=47 // pred_fallthru
          _
      $region48: #{tpu_custom_call.1} parent=5 // pred_fallthru
        _
      %p4155 = scmp.le.s32.totalorder 2, %s16
      // Predicated region
      $region53: #{tpu_custom_call.1} parent=5 // pred_check
        %p4156 = pneg %p4155
      $region54: #{tpu_custom_call.1} parent=5 // pred_check_branch
        %4158 = sbr.rel (%p4156) target = $region56
      $region55: #{tpu_custom_call.1} parent=5 // pred_region
        %s4159 = ssub.s32 %s16, 2
        // Predicated region
        $region57: #{tpu_custom_call.1} parent=55 // pred_check
          %p4160 = pneg %p202
        $region58: #{tpu_custom_call.1} parent=55 // pred_check_branch
          %4162 = sbr.rel (%p4160) target = $region60
        $region59: #{tpu_custom_call.1} parent=55 // pred_region
          %s4163 = sand.u32 %s187, 1
          %s4164 = scalar_lea.sflag [#allocation3], %s4163
          %s4165 = sand.u32 %s187, 1
          %s4166 = smul.addr %s4165, 16
          %s4167 = scalar_lea.vmem [#allocation2], %s4166
          %4168 = dma.done %s4164, 256
        $region60: #{tpu_custom_call.1} parent=55 // pred_fallthru
          _
      $region56: #{tpu_custom_call.1} parent=5 // pred_fallthru
        _
    $region6: #{tpu_custom_call.1} parent=1 // loop_footer
      %s20 = sadd.s32 1, %s16
    $region7: #{tpu_custom_call.1} parent=1 // loop_footer_branch
      %15 = sbr.rel target = $region3
    $region8: #{tpu_custom_call.1} parent=1 // loop_exit
      _
    %4169 = vsyncpa [#allocation3], 1
    %s4170 = scalar_lea.sflag [#allocation3], 1
    %4171 = vsyncpa %s4170, 1

</llo_original>
